<compile_context>
chip_gen: v5e
topology: v5e:2x2
jax: 0.10.0
libtpu: 0.0.40
codegen_flags: <defaults>
</compile_context>

<pallas_src>
import jax
import jax.numpy as jnp
from jax.experimental import pallas as pl
from jax.experimental.pallas import tpu as pltpu


# --------------------------------------------------------------------------
# Fused BasicBlock kernel: one image per grid step, everything in VMEM.
# --------------------------------------------------------------------------
def _make_basic_block_kernel(H, W, Cin, P, Hout, Wout, stride, has_proj, cdt):
    HWo = Hout * Wout

    def _tap(ref, dy, dx):
        # One 3x3 kernel tap of the padded buffer; strided when the conv is.
        if stride == 1:
            return ref[pl.ds(dy, Hout), pl.ds(dx, Wout), :]
        return ref[pl.ds(dy, Hout, stride=stride),
                   pl.ds(dx, Wout, stride=stride), :]

    def kernel(x_ref, w1_ref, b1_ref, w2_ref, b2_ref, *rest):
        if has_proj:
            wsc_ref, bsc_ref, o_ref, xpad_ref, hpad_ref = rest
        else:
            o_ref, xpad_ref, hpad_ref = rest

        # ---- in-kernel zero padding of x (no wrapper jnp.pad / HBM pass) ----
        xpad_ref[...] = jnp.zeros_like(xpad_ref)
        xpad_ref[pl.ds(1, H), pl.ds(1, W), :] = x_ref[...]

        # ---- conv1 + bn1 + relu: im2col -> ONE big-K (9*Cin) MXU matmul ----
        taps1 = [_tap(xpad_ref, k // 3, k % 3) for k in range(9)]
        lhs1 = jnp.concatenate(taps1, axis=-1).reshape(HWo, 9 * Cin)
        h = jnp.dot(lhs1, w1_ref[...], preferred_element_type=jnp.float32)
        h = jnp.maximum(h + b1_ref[...], 0.0)        # bn1 scale folded into w1

        # ---- keep h (+ halo) resident in VMEM: no HBM round trip ----
        hpad_ref[...] = jnp.zeros_like(hpad_ref)
        hpad_ref[pl.ds(1, Hout), pl.ds(1, Wout), :] = (
            h.reshape(Hout, Wout, P).astype(cdt))

        # ---- conv2 + bn2: im2col -> ONE big-K (9*P) MXU matmul (stride 1) ----
        taps2 = [hpad_ref[pl.ds(k // 3, Hout), pl.ds(k % 3, Wout), :]
                 for k in range(9)]
        lhs2 = jnp.concatenate(taps2, axis=-1).reshape(HWo, 9 * P)
        y = jnp.dot(lhs2, w2_ref[...], preferred_element_type=jnp.float32)
        y = y + b2_ref[...]                          # bn2 scale folded into w2

        # ---- shortcut, fused into the same kernel ----
        if has_proj:
            if stride == 1:
                xs = x_ref[...]
            else:
                xs = x_ref[pl.ds(0, Hout, stride=stride),
                           pl.ds(0, Wout, stride=stride), :]
            sc = jnp.dot(xs.reshape(HWo, Cin), wsc_ref[...],
                         preferred_element_type=jnp.float32) + bsc_ref[...]
        else:
            sc = x_ref[...].reshape(HWo, Cin).astype(jnp.float32)

        o_ref[...] = jnp.maximum(y + sc, 0.0).astype(o_ref.dtype)

    return kernel


# --------------------------------------------------------------------------
# Wrappers.
# --------------------------------------------------------------------------
def basic_block_forward_nhwc(x_nhwc, params, *, stride=1,
                             compute_dtype=jnp.float32):
    """Fused BasicBlock forward on an NHWC activation (inference-mode BN)."""
    N, H, W, Cin = x_nhwc.shape
    planes = params["w1"].shape[0]
    Hout = (H - 1) // stride + 1
    Wout = (W - 1) // stride + 1
    cdt = compute_dtype
    out_dtype = x_nhwc.dtype

    # Fold the BN scale into the conv weights (one-time parameter-side work);
    # only the bias add stays in the kernel epilogue.
    # PyTorch OIHW -> (KH, KW, I, O) -> (KH*KW*I, O), matching the kernel's
    # im2col lane order (tap-major, channel-minor).
    def fold_w(w_oihw, scale):
        o, i, kh, kw = w_oihw.shape
        w = w_oihw * scale[:, None, None, None]
        return jnp.transpose(w, (2, 3, 1, 0)).reshape(kh * kw * i, o).astype(cdt)

    w1 = fold_w(params["w1"], params["bn1_scale"])            # (9*Cin, P)
    w2 = fold_w(params["w2"], params["bn2_scale"])            # (9*P,   P)
    b1 = params["bn1_bias"].reshape(1, planes).astype(jnp.float32)
    b2 = params["bn2_bias"].reshape(1, planes).astype(jnp.float32)

    has_proj = (stride != 1) or (Cin != planes)

    args = [x_nhwc.astype(cdt), w1, b1, w2, b2]
    in_specs = [
        pl.BlockSpec((None, H, W, Cin), lambda n: (n, 0, 0, 0)),
        # Constant index maps: weights / biases stay VMEM-resident across steps.
        pl.BlockSpec((9 * Cin, planes), lambda n: (0, 0)),
        pl.BlockSpec((1, planes), lambda n: (0, 0)),
        pl.BlockSpec((9 * planes, planes), lambda n: (0, 0)),
        pl.BlockSpec((1, planes), lambda n: (0, 0)),
    ]
    if has_proj:
        wsc = fold_w(params["w_sc"], params["bn_sc_scale"])   # (Cin, P)
        bsc = params["bn_sc_bias"].reshape(1, planes).astype(jnp.float32)
        args += [wsc, bsc]
        in_specs += [pl.BlockSpec((Cin, planes), lambda n: (0, 0)),
                     pl.BlockSpec((1, planes), lambda n: (0, 0))]

    kernel = _make_basic_block_kernel(H, W, Cin, planes, Hout, Wout,
                                      stride, has_proj, cdt)

    out = pl.pallas_call(
        kernel,
        out_shape=jax.ShapeDtypeStruct((N, Hout * Wout, planes), out_dtype),
        grid_spec=pltpu.PrefetchScalarGridSpec(
            num_scalar_prefetch=0,
            grid=(N,),
            in_specs=in_specs,
            out_specs=pl.BlockSpec((None, Hout * Wout, planes),
                                   lambda n: (n, 0, 0)),
            scratch_shapes=[
                pltpu.VMEM((H + 2, W + 2, Cin), cdt),           # padded x
                pltpu.VMEM((Hout + 2, Wout + 2, planes), cdt),  # padded h
            ],
        ),
        compiler_params=pltpu.CompilerParams(
            dimension_semantics=("parallel",),   # batch axis is independent
        ),
    )(*args)
    return out.reshape(N, Hout, Wout, planes)


def basic_block_forward(x, params, *, stride=1, compute_dtype=jnp.float32):
    """x: (N, Cin, H, W) NCHW (PyTorch convention).

    NOTE: for a full network keep activations NHWC and call
    `basic_block_forward_nhwc` directly; the transposes here only exist to
    match the PyTorch module boundary.
    """
    x_nhwc = jnp.transpose(x, (0, 2, 3, 1))
    out_nhwc = basic_block_forward_nhwc(x_nhwc, params, stride=stride,
                                        compute_dtype=compute_dtype)
    return jnp.transpose(out_nhwc, (0, 3, 1, 2))


def fold_bn(gamma, beta, mean, var, eps=1e-5):
    """BatchNorm (inference) -> per-channel scale/bias."""
    scale = gamma / jnp.sqrt(var + eps)
    bias = beta - mean * scale
    return scale, bias


# --------------------------------------------------------------------------
# Pure-JAX reference (same semantics as the PyTorch forward, eval-mode BN).
# --------------------------------------------------------------------------
def basic_block_reference(x, params, *, stride=1):
    def conv(lhs, w, s, pad):
        return jax.lax.conv_general_dilated(
            lhs, w, window_strides=(s, s), padding=((pad, pad), (pad, pad)),
            dimension_numbers=("NCHW", "OIHW", "NCHW"),
            precision=jax.lax.Precision.HIGHEST)

    def bn(y, scale, bias):
        return y * scale[None, :, None, None] + bias[None, :, None, None]

    planes = params["w1"].shape[0]
    h = jax.nn.relu(bn(conv(x, params["w1"], stride, 1),
                       params["bn1_scale"], params["bn1_bias"]))
    out = bn(conv(h, params["w2"], 1, 1),
             params["bn2_scale"], params["bn2_bias"])
    if stride != 1 or x.shape[1] != planes:
        sc = bn(conv(x, params["w_sc"], stride, 0),
                params["bn_sc_scale"], params["bn_sc_bias"])
    else:
        sc = x
    return jax.nn.relu(out + sc)


def make_params(key, in_planes, planes, stride):
    keys = jax.random.split(key, 20)

    def bn_params(k0, k1, k2, k3, c):
        gamma = 1.0 + 0.1 * jax.random.normal(k0, (c,), jnp.float32)
        beta = 0.1 * jax.random.normal(k1, (c,), jnp.float32)
        mean = 0.1 * jax.random.normal(k2, (c,), jnp.float32)
        var = 0.5 + jax.random.uniform(k3, (c,), jnp.float32)
        return fold_bn(gamma, beta, mean, var)

    p = {}
    p["w1"] = 0.3 * jax.random.normal(keys[0], (planes, in_planes, 3, 3), jnp.float32)
    p["w2"] = 0.3 * jax.random.normal(keys[1], (planes, planes, 3, 3), jnp.float32)
    p["bn1_scale"], p["bn1_bias"] = bn_params(keys[2], keys[3], keys[4], keys[5], planes)
    p["bn2_scale"], p["bn2_bias"] = bn_params(keys[6], keys[7], keys[8], keys[9], planes)
    if stride != 1 or in_planes != planes:
        p["w_sc"] = 0.3 * jax.random.normal(keys[10], (planes, in_planes, 1, 1), jnp.float32)
        p["bn_sc_scale"], p["bn_sc_bias"] = bn_params(keys[11], keys[12], keys[13], keys[14], planes)
    return p


if __name__ == "__main__":
    key = jax.random.PRNGKey(0)
    kx, kp1, kp2 = jax.random.split(key, 3)
    x = jax.random.normal(kx, (2, 4, 16, 16), dtype=jnp.float32)

    fwd = jax.jit(basic_block_forward, static_argnames=("stride", "compute_dtype"))

    # Config 1: identity shortcut (in_planes == planes, stride 1), f32 compute.
    p1 = make_params(kp1, 4, 4, 1)
    out1 = jax.block_until_ready(fwd(x, p1, stride=1))
    ref1 = basic_block_reference(x, p1, stride=1)
    assert out1.shape == ref1.shape == (2, 4, 16, 16)
    assert bool(jnp.allclose(out1, ref1, atol=2e-3, rtol=2e-3)), \
        float(jnp.max(jnp.abs(out1 - ref1)))

    # Config 2: projection shortcut (planes=8, stride=2), f32 compute.
    p2 = make_params(kp2, 4, 8, 2)
    out2 = jax.block_until_ready(fwd(x, p2, stride=2))
    ref2 = basic_block_reference(x, p2, stride=2)
    assert out2.shape == ref2.shape == (2, 8, 8, 8)
    assert bool(jnp.allclose(out2, ref2, atol=2e-3, rtol=2e-3)), \
        float(jnp.max(jnp.abs(out2 - ref2)))

    # Config 3: same block with bf16 activations/weights (f32 accumulation) --
    # the reduced-HBM-traffic fast path; looser (bf16-level) tolerance.
    out3 = jax.block_until_ready(fwd(x, p2, stride=2, compute_dtype=jnp.bfloat16))
    assert out3.shape == (2, 8, 8, 8)
    assert bool(jnp.allclose(out3, ref2, atol=0.35, rtol=0.05)), \
        float(jnp.max(jnp.abs(out3 - ref2)))

    print("KERNEL_OK")
</pallas_src>

<mosaic_0001>
module attributes {stable_mosaic.version = 11 : i64} {
  func.func @kernel(%arg0: i32, %arg1: memref<1x16x16x4xf32, #tpu.memory_space<vmem>>, %arg2: memref<36x4xf32, #tpu.memory_space<vmem>>, %arg3: memref<1x4xf32, #tpu.memory_space<vmem>>, %arg4: memref<36x4xf32, #tpu.memory_space<vmem>>, %arg5: memref<1x4xf32, #tpu.memory_space<vmem>>, %arg6: memref<1x256x4xf32, #tpu.memory_space<vmem>>, %arg7: memref<18x18x4xf32, #tpu.memory_space<vmem>>, %arg8: memref<18x18x4xf32, #tpu.memory_space<vmem>>) attributes {dimension_semantics = [#tpu.dimension_semantics<parallel>], iteration_bounds = array<i64: 2>, scalar_prefetch = 0 : i64, scratch_operands = 2 : i64, tpu.core_type = #tpu.core_type<tc>, window_params = [{transform_indices = @transform_0, window_bounds = array<i64: 1, 16, 16, 4>}, {pipeline_mode = #tpu.pipeline_mode<synchronous>, transform_indices = @transform_1, window_bounds = array<i64: 36, 4>}, {pipeline_mode = #tpu.pipeline_mode<synchronous>, transform_indices = @transform_2, window_bounds = array<i64: 1, 4>}, {pipeline_mode = #tpu.pipeline_mode<synchronous>, transform_indices = @transform_3, window_bounds = array<i64: 36, 4>}, {pipeline_mode = #tpu.pipeline_mode<synchronous>, transform_indices = @transform_4, window_bounds = array<i64: 1, 4>}, {transform_indices = @transform_5, window_bounds = array<i64: 1, 256, 4>}]} {
    %cst = arith.constant 0.000000e+00 : f32
    %0 = vector.broadcast %cst : f32 to vector<18x18x4xf32>
    %c0 = arith.constant 0 : index
    %c0_0 = arith.constant 0 : index
    %c0_1 = arith.constant 0 : index
    %1 = vector.load %arg7[%c0, %c0_0, %c0_1] : memref<18x18x4xf32, #tpu.memory_space<vmem>>, vector<18x18x4xf32>
    tpu.vector_store %arg7[%c0, %c0_0, %c0_1], %0 {strides = array<i32>} : memref<18x18x4xf32, #tpu.memory_space<vmem>>, vector<18x18x4xf32>,
    %c0_2 = arith.constant 0 : index
    %c0_3 = arith.constant 0 : index
    %c0_4 = arith.constant 0 : index
    %c0_5 = arith.constant 0 : index
    %2 = vector.load %arg1[%c0_2, %c0_3, %c0_4, %c0_5] : memref<1x16x16x4xf32, #tpu.memory_space<vmem>>, vector<1x16x16x4xf32>
    %3 = vector.shape_cast %2 : vector<1x16x16x4xf32> to vector<16x16x4xf32>
    %c1 = arith.constant 1 : index
    %c1_6 = arith.constant 1 : index
    %c0_7 = arith.constant 0 : index
    %4 = vector.load %arg7[%c1, %c1_6, %c0_7] : memref<18x18x4xf32, #tpu.memory_space<vmem>>, vector<16x16x4xf32>
    tpu.vector_store %arg7[%c1, %c1_6, %c0_7], %3 {strides = array<i32>} : memref<18x18x4xf32, #tpu.memory_space<vmem>>, vector<16x16x4xf32>,
    %c0_8 = arith.constant 0 : index
    %c0_9 = arith.constant 0 : index
    %c0_10 = arith.constant 0 : index
    %5 = vector.load %arg7[%c0_8, %c0_9, %c0_10] : memref<18x18x4xf32, #tpu.memory_space<vmem>>, vector<16x16x4xf32>
    %c0_11 = arith.constant 0 : index
    %c1_12 = arith.constant 1 : index
    %c0_13 = arith.constant 0 : index
    %6 = vector.load %arg7[%c0_11, %c1_12, %c0_13] : memref<18x18x4xf32, #tpu.memory_space<vmem>>, vector<16x16x4xf32>
    %c0_14 = arith.constant 0 : index
    %c2 = arith.constant 2 : index
    %c0_15 = arith.constant 0 : index
    %7 = vector.load %arg7[%c0_14, %c2, %c0_15] : memref<18x18x4xf32, #tpu.memory_space<vmem>>, vector<16x16x4xf32>
    %c1_16 = arith.constant 1 : index
    %c0_17 = arith.constant 0 : index
    %c0_18 = arith.constant 0 : index
    %8 = vector.load %arg7[%c1_16, %c0_17, %c0_18] : memref<18x18x4xf32, #tpu.memory_space<vmem>>, vector<16x16x4xf32>
    %c1_19 = arith.constant 1 : index
    %c1_20 = arith.constant 1 : index
    %c0_21 = arith.constant 0 : index
    %9 = vector.load %arg7[%c1_19, %c1_20, %c0_21] : memref<18x18x4xf32, #tpu.memory_space<vmem>>, vector<16x16x4xf32>
    %c1_22 = arith.constant 1 : index
    %c2_23 = arith.constant 2 : index
    %c0_24 = arith.constant 0 : index
    %10 = vector.load %arg7[%c1_22, %c2_23, %c0_24] : memref<18x18x4xf32, #tpu.memory_space<vmem>>, vector<16x16x4xf32>
    %c2_25 = arith.constant 2 : index
    %c0_26 = arith.constant 0 : index
    %c0_27 = arith.constant 0 : index
    %11 = vector.load %arg7[%c2_25, %c0_26, %c0_27] : memref<18x18x4xf32, #tpu.memory_space<vmem>>, vector<16x16x4xf32>
    %c2_28 = arith.constant 2 : index
    %c1_29 = arith.constant 1 : index
    %c0_30 = arith.constant 0 : index
    %12 = vector.load %arg7[%c2_28, %c1_29, %c0_30] : memref<18x18x4xf32, #tpu.memory_space<vmem>>, vector<16x16x4xf32>
    %c2_31 = arith.constant 2 : index
    %c2_32 = arith.constant 2 : index
    %c0_33 = arith.constant 0 : index
    %13 = vector.load %arg7[%c2_31, %c2_32, %c0_33] : memref<18x18x4xf32, #tpu.memory_space<vmem>>, vector<16x16x4xf32>
    %14 = tpu.concatenate %5, %6, %7, %8, %9, %10, %11, %12, %13 in 2 : vector<16x16x4xf32>, vector<16x16x4xf32>, vector<16x16x4xf32>, vector<16x16x4xf32>, vector<16x16x4xf32>, vector<16x16x4xf32>, vector<16x16x4xf32>, vector<16x16x4xf32>, vector<16x16x4xf32> -> vector<16x16x36xf32>
    %15 = vector.shape_cast %14 : vector<16x16x36xf32> to vector<256x36xf32>
    %c0_34 = arith.constant 0 : index
    %c0_35 = arith.constant 0 : index
    %16 = vector.load %arg2[%c0_34, %c0_35] : memref<36x4xf32, #tpu.memory_space<vmem>>, vector<36x4xf32>
    %cst_36 = arith.constant dense<0.000000e+00> : vector<256x4xf32>
    %17 = tpu.matmul %15, %16, %cst_36 {dimension_numbers = #tpu.dot_dimension_numbers<[1], [0], [0], [1], [0, 0, 1, 1], [], []>} : vector<256x36xf32>, vector<36x4xf32>, vector<256x4xf32> -> vector<256x4xf32>
    %c0_37 = arith.constant 0 : index
    %c0_38 = arith.constant 0 : index
    %18 = vector.load %arg3[%c0_37, %c0_38] : memref<1x4xf32, #tpu.memory_space<vmem>>, vector<1x4xf32>
    %19 = vector.broadcast %18 : vector<1x4xf32> to vector<256x4xf32>
    %20 = arith.addf %17, %19 : vector<256x4xf32>
    %cst_39 = arith.constant 0.000000e+00 : f32
    %21 = vector.broadcast %cst_39 : f32 to vector<256x4xf32>
    %22 = arith.maximumf %20, %21 : vector<256x4xf32>
    %cst_40 = arith.constant 0.000000e+00 : f32
    %23 = vector.broadcast %cst_40 : f32 to vector<18x18x4xf32>
    %c0_41 = arith.constant 0 : index
    %c0_42 = arith.constant 0 : index
    %c0_43 = arith.constant 0 : index
    %24 = vector.load %arg8[%c0_41, %c0_42, %c0_43] : memref<18x18x4xf32, #tpu.memory_space<vmem>>, vector<18x18x4xf32>
    tpu.vector_store %arg8[%c0_41, %c0_42, %c0_43], %23 {strides = array<i32>} : memref<18x18x4xf32, #tpu.memory_space<vmem>>, vector<18x18x4xf32>,
    %25 = vector.shape_cast %22 : vector<256x4xf32> to vector<16x16x4xf32>
    %c1_44 = arith.constant 1 : index
    %c1_45 = arith.constant 1 : index
    %c0_46 = arith.constant 0 : index
    %26 = vector.load %arg8[%c1_44, %c1_45, %c0_46] : memref<18x18x4xf32, #tpu.memory_space<vmem>>, vector<16x16x4xf32>
    tpu.vector_store %arg8[%c1_44, %c1_45, %c0_46], %25 {strides = array<i32>} : memref<18x18x4xf32, #tpu.memory_space<vmem>>, vector<16x16x4xf32>,
    %c0_47 = arith.constant 0 : index
    %c0_48 = arith.constant 0 : index
    %c0_49 = arith.constant 0 : index
    %27 = vector.load %arg8[%c0_47, %c0_48, %c0_49] : memref<18x18x4xf32, #tpu.memory_space<vmem>>, vector<16x16x4xf32>
    %c0_50 = arith.constant 0 : index
    %c1_51 = arith.constant 1 : index
    %c0_52 = arith.constant 0 : index
    %28 = vector.load %arg8[%c0_50, %c1_51, %c0_52] : memref<18x18x4xf32, #tpu.memory_space<vmem>>, vector<16x16x4xf32>
    %c0_53 = arith.constant 0 : index
    %c2_54 = arith.constant 2 : index
    %c0_55 = arith.constant 0 : index
    %29 = vector.load %arg8[%c0_53, %c2_54, %c0_55] : memref<18x18x4xf32, #tpu.memory_space<vmem>>, vector<16x16x4xf32>
    %c1_56 = arith.constant 1 : index
    %c0_57 = arith.constant 0 : index
    %c0_58 = arith.constant 0 : index
    %30 = vector.load %arg8[%c1_56, %c0_57, %c0_58] : memref<18x18x4xf32, #tpu.memory_space<vmem>>, vector<16x16x4xf32>
    %c1_59 = arith.constant 1 : index
    %c1_60 = arith.constant 1 : index
    %c0_61 = arith.constant 0 : index
    %31 = vector.load %arg8[%c1_59, %c1_60, %c0_61] : memref<18x18x4xf32, #tpu.memory_space<vmem>>, vector<16x16x4xf32>
    %c1_62 = arith.constant 1 : index
    %c2_63 = arith.constant 2 : index
    %c0_64 = arith.constant 0 : index
    %32 = vector.load %arg8[%c1_62, %c2_63, %c0_64] : memref<18x18x4xf32, #tpu.memory_space<vmem>>, vector<16x16x4xf32>
    %c2_65 = arith.constant 2 : index
    %c0_66 = arith.constant 0 : index
    %c0_67 = arith.constant 0 : index
    %33 = vector.load %arg8[%c2_65, %c0_66, %c0_67] : memref<18x18x4xf32, #tpu.memory_space<vmem>>, vector<16x16x4xf32>
    %c2_68 = arith.constant 2 : index
    %c1_69 = arith.constant 1 : index
    %c0_70 = arith.constant 0 : index
    %34 = vector.load %arg8[%c2_68, %c1_69, %c0_70] : memref<18x18x4xf32, #tpu.memory_space<vmem>>, vector<16x16x4xf32>
    %c2_71 = arith.constant 2 : index
    %c2_72 = arith.constant 2 : index
    %c0_73 = arith.constant 0 : index
    %35 = vector.load %arg8[%c2_71, %c2_72, %c0_73] : memref<18x18x4xf32, #tpu.memory_space<vmem>>, vector<16x16x4xf32>
    %36 = tpu.concatenate %27, %28, %29, %30, %31, %32, %33, %34, %35 in 2 : vector<16x16x4xf32>, vector<16x16x4xf32>, vector<16x16x4xf32>, vector<16x16x4xf32>, vector<16x16x4xf32>, vector<16x16x4xf32>, vector<16x16x4xf32>, vector<16x16x4xf32>, vector<16x16x4xf32> -> vector<16x16x36xf32>
    %37 = vector.shape_cast %36 : vector<16x16x36xf32> to vector<256x36xf32>
    %c0_74 = arith.constant 0 : index
    %c0_75 = arith.constant 0 : index
    %38 = vector.load %arg4[%c0_74, %c0_75] : memref<36x4xf32, #tpu.memory_space<vmem>>, vector<36x4xf32>
    %cst_76 = arith.constant dense<0.000000e+00> : vector<256x4xf32>
    %39 = tpu.matmul %37, %38, %cst_76 {dimension_numbers = #tpu.dot_dimension_numbers<[1], [0], [0], [1], [0, 0, 1, 1], [], []>} : vector<256x36xf32>, vector<36x4xf32>, vector<256x4xf32> -> vector<256x4xf32>
    %c0_77 = arith.constant 0 : index
    %c0_78 = arith.constant 0 : index
    %40 = vector.load %arg5[%c0_77, %c0_78] : memref<1x4xf32, #tpu.memory_space<vmem>>, vector<1x4xf32>
    %41 = vector.broadcast %40 : vector<1x4xf32> to vector<256x4xf32>
    %42 = arith.addf %39, %41 : vector<256x4xf32>
    %c0_79 = arith.constant 0 : index
    %c0_80 = arith.constant 0 : index
    %c0_81 = arith.constant 0 : index
    %c0_82 = arith.constant 0 : index
    %43 = vector.load %arg1[%c0_79, %c0_80, %c0_81, %c0_82] : memref<1x16x16x4xf32, #tpu.memory_space<vmem>>, vector<1x16x16x4xf32>
    %44 = vector.shape_cast %43 : vector<1x16x16x4xf32> to vector<16x16x4xf32>
    %45 = vector.shape_cast %44 : vector<16x16x4xf32> to vector<256x4xf32>
    %46 = arith.addf %42, %45 : vector<256x4xf32>
    %cst_83 = arith.constant 0.000000e+00 : f32
    %47 = vector.broadcast %cst_83 : f32 to vector<256x4xf32>
    %48 = arith.maximumf %46, %47 : vector<256x4xf32>
    %c0_84 = arith.constant 0 : index
    %c0_85 = arith.constant 0 : index
    %c0_86 = arith.constant 0 : index
    %49 = vector.load %arg6[%c0_84, %c0_85, %c0_86] : memref<1x256x4xf32, #tpu.memory_space<vmem>>, vector<1x256x4xf32>
    %50 = vector.shape_cast %49 : vector<1x256x4xf32> to vector<256x4xf32>
    %51 = vector.shape_cast %48 : vector<256x4xf32> to vector<1x256x4xf32>
    tpu.vector_store %arg6[%c0_84, %c0_85, %c0_86], %51 {strides = array<i32>} : memref<1x256x4xf32, #tpu.memory_space<vmem>>, vector<1x256x4xf32>,
    return
  }
  func.func @transform_0(%arg0: i32) -> (i32, i32, i32, i32) {
    %c0_i32 = arith.constant 0 : i32
    %c0_i32_0 = arith.constant 0 : i32
    %c0_i32_1 = arith.constant 0 : i32
    %c0_i32_2 = arith.constant 0 : i32
    return %arg0, %c0_i32, %c0_i32_0, %c0_i32_1 : i32, i32, i32, i32
  }
  func.func @transform_1(%arg0: i32) -> (i32, i32) {
    %c0_i32 = arith.constant 0 : i32
    %c0_i32_0 = arith.constant 0 : i32
    %c0_i32_1 = arith.constant 0 : i32
    return %c0_i32, %c0_i32_0 : i32, i32
  }
  func.func @transform_2(%arg0: i32) -> (i32, i32) {
    %c0_i32 = arith.constant 0 : i32
    %c0_i32_0 = arith.constant 0 : i32
    %c0_i32_1 = arith.constant 0 : i32
    return %c0_i32, %c0_i32_0 : i32, i32
  }
  func.func @transform_3(%arg0: i32) -> (i32, i32) {
    %c0_i32 = arith.constant 0 : i32
    %c0_i32_0 = arith.constant 0 : i32
    %c0_i32_1 = arith.constant 0 : i32
    return %c0_i32, %c0_i32_0 : i32, i32
  }
  func.func @transform_4(%arg0: i32) -> (i32, i32) {
    %c0_i32 = arith.constant 0 : i32
    %c0_i32_0 = arith.constant 0 : i32
    %c0_i32_1 = arith.constant 0 : i32
    return %c0_i32, %c0_i32_0 : i32, i32
  }
  func.func @transform_5(%arg0: i32) -> (i32, i32, i32) {
    %c0_i32 = arith.constant 0 : i32
    %c0_i32_0 = arith.constant 0 : i32
    %c0_i32_1 = arith.constant 0 : i32
    return %arg0, %c0_i32, %c0_i32_0 : i32, i32, i32
  }
}

</mosaic_0001>

<llo_original>
// kernel: basic_block_forward.1
$region0: #{basic_block_forward.1}
  #allocation0 [shape = 'u32[]', space=smem, size = 0x4, offset = 0x4, fixed_abs, tag = 'smem constant byte address 0x4 - core index']
  #allocation1 [shape = 'u32[72,128]{1,0:T(1,128)}', space=vmem, size = 0x9000, scoped, tag = 'internal scratch']
  #allocation2 [shape = 'f32[18,18,4]{2,1,0:T(8,128)}', space=vmem, size = 0x36000, scoped, tag = 'scratch operand']
  #allocation3 [shape = 'f32[18,18,4]{2,1,0:T(8,128)}', space=vmem, size = 0x36000, scoped, tag = 'scratch operand']
  %s0 = inlined_call_operand.vmem [shape: f32[2,16,16,4], index: 0, kind: input, shape index: {}]
  %s1 = inlined_call_operand.vmem [shape: f32[36,4], index: 1, kind: input, shape index: {}]
  %s2 = inlined_call_operand.vmem [shape: f32[1,4], index: 2, kind: input, shape index: {}]
  %s3 = inlined_call_operand.vmem [shape: f32[36,4], index: 3, kind: input, shape index: {}]
  %s4 = inlined_call_operand.vmem [shape: f32[1,4], index: 4, kind: input, shape index: {}]
  %s5 = inlined_call_operand.vmem [shape: f32[2,256,4], index: 5, kind: output, shape index: {}]
  %s6 = sld [smem:[#allocation0]]
  $region53: #{basic_block_forward.1} parent=0
    _
  %s8 = ssub.s32 1, %s6
  %s9 = scalar_select 0, %s8, %s6
  loop: start=0, step=1, limit=4
  $region2: #{basic_block_forward.1} parent=0 // loop_pre_header
    _
  $region3: #{basic_block_forward.1} parent=0 // loop_header
    %s11 = sphi 0, %s15
    %p12 = scmp.ge.s32.totalorder %s11, 4
    %s21 = sphi 0, %s23
    %s24 = sphi 0, %s21
    %s25 = sphi 0, %s24
    %s41 = sphi 0, %s25
    %s45 = sphi 0, %s45
    %s47 = sphi 0, %s45
    %s48 = sphi 0, %s47
    %s62 = sphi 0, %s48
    %s66 = sphi 0, %s66
    %s68 = sphi 0, %s66
    %s69 = sphi 0, %s68
    %s83 = sphi 0, %s69
    %s87 = sphi 0, %s87
    %s89 = sphi 0, %s87
    %s90 = sphi 0, %s89
    %s104 = sphi 0, %s90
    %s108 = sphi 0, %s108
    %s110 = sphi 0, %s108
    %s111 = sphi 0, %s110
    %s125 = sphi 0, %s111
    %s131 = sphi 0, %s133
    %s134 = sphi 0, %s131
    %s135 = sphi 0, %s134
    %s151 = sphi 0, %s135
  $region4: #{basic_block_forward.1} parent=0 // loop_header_branch
    %14 = sbr.rel (%p12) target = $region8
  $region5: #{basic_block_forward.1} parent=0 // loop_body
    %s16 = ssub.s32 %s11, 1
    %s17 = ssub.s32 %s11, 2
    %s18 = sadd.s32 %s11, 1
    %s19 = ssub.s32 %s11, %s18
    %p20 = scmp.eq.s32.totalorder %s19, 0
    %s22 = sadd.s32 %s21, 1
    %s23 = scalar_select %p20, %s21, %s22
    %p26 = pneg %p20
    %p27 = scmp.eq.s32.totalorder %s11, 1
    %p28 = por %p26, %p27
    %p29 = scmp.ne.s32.totalorder %s21, %s24
    %p30 = scmp.eq.s32.totalorder %s11, 0
    %p31 = por %p29, %p30
    %p32 = scmp.ne.s32.totalorder %s21, %s24
    %p33 = scmp.eq.s32.totalorder %s16, 1
    %p34 = por %p32, %p33
    %p35 = scmp.ne.s32.totalorder %s24, %s25
    %p36 = scmp.eq.s32.totalorder %s16, 0
    %p37 = por %p35, %p36
    %p38 = scmp.ne.s32.totalorder %s24, %s25
    %p39 = scmp.eq.s32.totalorder %s17, 1
    %p40 = por %p38, %p39
    %p42 = scmp.ne.s32.totalorder %s25, %s41
    %p43 = scmp.eq.s32.totalorder %s17, 0
    %p44 = por %p42, %p43
    %s46 = sadd.s32 %s45, 1
    %p49 = scmp.eq.s32.totalorder %s11, 1
    %p50 = scmp.ne.s32.totalorder %s45, %s47
    %p51 = scmp.eq.s32.totalorder %s11, 0
    %p52 = por %p50, %p51
    %p53 = scmp.ne.s32.totalorder %s45, %s47
    %p54 = scmp.eq.s32.totalorder %s16, 1
    %p55 = por %p53, %p54
    %p56 = scmp.ne.s32.totalorder %s47, %s48
    %p57 = scmp.eq.s32.totalorder %s16, 0
    %p58 = por %p56, %p57
    %p59 = scmp.ne.s32.totalorder %s47, %s48
    %p60 = scmp.eq.s32.totalorder %s17, 1
    %p61 = por %p59, %p60
    %p63 = scmp.ne.s32.totalorder %s48, %s62
    %p64 = scmp.eq.s32.totalorder %s17, 0
    %p65 = por %p63, %p64
    %s67 = sadd.s32 %s66, 1
    %p70 = scmp.eq.s32.totalorder %s11, 1
    %p71 = scmp.ne.s32.totalorder %s66, %s68
    %p72 = scmp.eq.s32.totalorder %s11, 0
    %p73 = por %p71, %p72
    %p74 = scmp.ne.s32.totalorder %s66, %s68
    %p75 = scmp.eq.s32.totalorder %s16, 1
    %p76 = por %p74, %p75
    %p77 = scmp.ne.s32.totalorder %s68, %s69
    %p78 = scmp.eq.s32.totalorder %s16, 0
    %p79 = por %p77, %p78
    %p80 = scmp.ne.s32.totalorder %s68, %s69
    %p81 = scmp.eq.s32.totalorder %s17, 1
    %p82 = por %p80, %p81
    %p84 = scmp.ne.s32.totalorder %s69, %s83
    %p85 = scmp.eq.s32.totalorder %s17, 0
    %p86 = por %p84, %p85
    %s88 = sadd.s32 %s87, 1
    %p91 = scmp.eq.s32.totalorder %s11, 1
    %p92 = scmp.ne.s32.totalorder %s87, %s89
    %p93 = scmp.eq.s32.totalorder %s11, 0
    %p94 = por %p92, %p93
    %p95 = scmp.ne.s32.totalorder %s87, %s89
    %p96 = scmp.eq.s32.totalorder %s16, 1
    %p97 = por %p95, %p96
    %p98 = scmp.ne.s32.totalorder %s89, %s90
    %p99 = scmp.eq.s32.totalorder %s16, 0
    %p100 = por %p98, %p99
    %p101 = scmp.ne.s32.totalorder %s89, %s90
    %p102 = scmp.eq.s32.totalorder %s17, 1
    %p103 = por %p101, %p102
    %p105 = scmp.ne.s32.totalorder %s90, %s104
    %p106 = scmp.eq.s32.totalorder %s17, 0
    %p107 = por %p105, %p106
    %s109 = sadd.s32 %s108, 1
    %p112 = scmp.eq.s32.totalorder %s11, 1
    %p113 = scmp.ne.s32.totalorder %s108, %s110
    %p114 = scmp.eq.s32.totalorder %s11, 0
    %p115 = por %p113, %p114
    %p116 = scmp.ne.s32.totalorder %s108, %s110
    %p117 = scmp.eq.s32.totalorder %s16, 1
    %p118 = por %p116, %p117
    %p119 = scmp.ne.s32.totalorder %s110, %s111
    %p120 = scmp.eq.s32.totalorder %s16, 0
    %p121 = por %p119, %p120
    %p122 = scmp.ne.s32.totalorder %s110, %s111
    %p123 = scmp.eq.s32.totalorder %s17, 1
    %p124 = por %p122, %p123
    %p126 = scmp.ne.s32.totalorder %s111, %s125
    %p127 = scmp.eq.s32.totalorder %s17, 0
    %p128 = por %p126, %p127
    %s129 = ssub.s32 %s11, %s18
    %p130 = scmp.eq.s32.totalorder %s129, 0
    %s132 = sadd.s32 %s131, 1
    %s133 = scalar_select %p130, %s131, %s132
    %p136 = pneg %p130
    %p137 = scmp.eq.s32.totalorder %s11, 1
    %p138 = por %p136, %p137
    %p139 = scmp.ne.s32.totalorder %s131, %s134
    %p140 = scmp.eq.s32.totalorder %s11, 0
    %p141 = por %p139, %p140
    %p142 = scmp.ne.s32.totalorder %s131, %s134
    %p143 = scmp.eq.s32.totalorder %s16, 1
    %p144 = por %p142, %p143
    %p145 = scmp.ne.s32.totalorder %s134, %s135
    %p146 = scmp.eq.s32.totalorder %s16, 0
    %p147 = por %p145, %p146
    %p148 = scmp.ne.s32.totalorder %s134, %s135
    %p149 = scmp.eq.s32.totalorder %s17, 1
    %p150 = por %p148, %p149
    %p152 = scmp.ne.s32.totalorder %s135, %s151
    %p153 = scmp.eq.s32.totalorder %s17, 0
    %p154 = por %p152, %p153
    %p155 = scmp.le.s32.totalorder 1, %s11
    %p156 = scmp.lt.s32.totalorder %s11, 3
    %p157 = pnand %p155, %p156
    %p158 = pneg %p157
    // Predicated region
    $region9: #{basic_block_forward.1} parent=5 // pred_check
      _
    $region10: #{basic_block_forward.1} parent=5 // pred_check_branch
      %160 = sbr.rel (%p157) target = $region12
    $region11: #{basic_block_forward.1} parent=5 // pred_region
      %s161 = ssub.s32 %s11, 1
      // Predicated region
      $region13: #{basic_block_forward.1} parent=11 // pred_check
        %p162 = pneg %p58
      $region14: #{basic_block_forward.1} parent=11 // pred_check_branch
        %164 = sbr.rel (%p162) target = $region16
      $region15: #{basic_block_forward.1} parent=11 // pred_region
        _
      $region16: #{basic_block_forward.1} parent=11 // pred_fallthru
        _
      // Predicated region
      $region17: #{basic_block_forward.1} parent=11 // pred_check
        %p165 = pneg %p79
      $region18: #{basic_block_forward.1} parent=11 // pred_check_branch
        %167 = sbr.rel (%p165) target = $region20
      $region19: #{basic_block_forward.1} parent=11 // pred_region
        _
      $region20: #{basic_block_forward.1} parent=11 // pred_fallthru
        _
      // Predicated region
      $region21: #{basic_block_forward.1} parent=11 // pred_check
        %p168 = pneg %p100
      $region22: #{basic_block_forward.1} parent=11 // pred_check_branch
        %170 = sbr.rel (%p168) target = $region24
      $region23: #{basic_block_forward.1} parent=11 // pred_region
        _
      $region24: #{basic_block_forward.1} parent=11 // pred_fallthru
        _
      // Predicated region
      $region25: #{basic_block_forward.1} parent=11 // pred_check
        %p171 = pneg %p121
      $region26: #{basic_block_forward.1} parent=11 // pred_check_branch
        %173 = sbr.rel (%p171) target = $region28
      $region27: #{basic_block_forward.1} parent=11 // pred_region
        _
      $region28: #{basic_block_forward.1} parent=11 // pred_fallthru
        _
    $region12: #{basic_block_forward.1} parent=5 // pred_fallthru
      _
    %p174 = scmp.lt.s32.totalorder %s11, 2
    // Predicated region
    $region29: #{basic_block_forward.1} parent=5 // pred_check
      %p175 = pneg %p174
    $region30: #{basic_block_forward.1} parent=5 // pred_check_branch
      %177 = sbr.rel (%p175) target = $region32
    $region31: #{basic_block_forward.1} parent=5 // pred_region
      // Predicated region
      $region33: #{basic_block_forward.1} parent=31 // pred_check
        %p178 = pneg %p31
      $region34: #{basic_block_forward.1} parent=31 // pred_check_branch
        %180 = sbr.rel (%p178) target = $region36
      $region35: #{basic_block_forward.1} parent=31 // pred_region
        %p181 = scmp.lt.s32.totalorder %s11, 1
        %s182 = scalar_select %p181, %s11, 1
        %s183 = smul.addr %s182, 32
        %s184 = smul.addr %s183, 8
        %s185 = scalar_lea.vmem %s0, %s184
      $region36: #{basic_block_forward.1} parent=31 // pred_fallthru
        _
    $region32: #{basic_block_forward.1} parent=5 // pred_fallthru
      _
    %p186 = scmp.le.s32.totalorder 1, %s11
    %p187 = scmp.lt.s32.totalorder %s11, 3
    %p188 = pnand %p186, %p187
    %p189 = pneg %p188
    // Predicated region
    $region37: #{basic_block_forward.1} parent=5 // pred_check
      _
    $region38: #{basic_block_forward.1} parent=5 // pred_check_branch
      %191 = sbr.rel (%p188) target = $region40
    $region39: #{basic_block_forward.1} parent=5 // pred_region
      %s192 = ssub.s32 %s11, 1
      %p193 = scmp.lt.s32.totalorder %s16, 1
      %s194 = scalar_select %p193, %s16, 1
      %s195 = smul.addr %s194, 32
      %s196 = smul.addr %s195, 8
      %s197 = scalar_lea.vmem %s0, %s196
      %p198 = pneg %p37
      %p199 = pneg %p34
      %p200 = pneg %p58
      %p201 = pneg %p55
      %p202 = pneg %p79
      %p203 = pneg %p76
      %p204 = pneg %p100
      %p205 = pneg %p97
      %p206 = pneg %p121
      %p207 = pneg %p118
      %p208 = pneg %p147
      %p209 = pneg %p144
      %p210 = scmp.lt.s32.totalorder %s16, 1
      %s211 = scalar_select %p210, %s16, 1
      %s212 = smul.addr %s211, 32
      %s213 = smul.addr %s212, 8
      %s214 = scalar_lea.vmem %s5, %s213
      %p215 = scmp.lt.s32.totalorder %s16, 1
      %s216 = scalar_select %p215, %s16, 1
      %s217 = smul.addr %s216, 32
      %s218 = smul.addr %s217, 8
      %s219 = scalar_lea.vmem %s0, %s218
      %p220 = scmp.lt.s32.totalorder %s16, 1
      %s221 = scalar_select %p220, %s16, 1
      %s222 = smul.addr %s221, 32
      %s223 = smul.addr %s222, 8
      %s224 = scalar_lea.vmem %s5, %s223
      %vm225 = vcmask 31744
      %226 = vst.msk [vmem:[#allocation2] sm:$0xff] %vm225, 0.0
      %227 = vst.msk [vmem:[#allocation2 + $0x8] sm:$0xff] %vm225, 0.0
      %vm228 = vcmask 25600
      %229 = vst.msk [vmem:[#allocation2 + $0x10] sm:$0x3] %vm228, 0.0
      %230 = vst.msk [vmem:[#allocation2 + $0x18] sm:$0xff] %vm225, 0.0
      %231 = vst.msk [vmem:[#allocation2 + $0x20] sm:$0xff] %vm225, 0.0
      %232 = vst.msk [vmem:[#allocation2 + $0x28] sm:$0x3] %vm228, 0.0
      %233 = vst.msk [vmem:[#allocation2 + $0x30] sm:$0xff] %vm225, 0.0
      %234 = vst.msk [vmem:[#allocation2 + $0x38] sm:$0xff] %vm225, 0.0
      %235 = vst.msk [vmem:[#allocation2 + $0x40] sm:$0x3] %vm228, 0.0
      %236 = vst.msk [vmem:[#allocation2 + $0x48] sm:$0xff] %vm225, 0.0
      %237 = vst.msk [vmem:[#allocation2 + $0x50] sm:$0xff] %vm225, 0.0
      %238 = vst.msk [vmem:[#allocation2 + $0x58] sm:$0x3] %vm228, 0.0
      %239 = vst.msk [vmem:[#allocation2 + $0x60] sm:$0xff] %vm225, 0.0
      %240 = vst.msk [vmem:[#allocation2 + $0x68] sm:$0xff] %vm225, 0.0
      %241 = vst.msk [vmem:[#allocation2 + $0x70] sm:$0x3] %vm228, 0.0
      %242 = vst.msk [vmem:[#allocation2 + $0x78] sm:$0xff] %vm225, 0.0
      %243 = vst.msk [vmem:[#allocation2 + $0x80] sm:$0xff] %vm225, 0.0
      %244 = vst.msk [vmem:[#allocation2 + $0x88] sm:$0x3] %vm228, 0.0
      %245 = vst.msk [vmem:[#allocation2 + $0x90] sm:$0xff] %vm225, 0.0
      %246 = vst.msk [vmem:[#allocation2 + $0x98] sm:$0xff] %vm225, 0.0
      %247 = vst.msk [vmem:[#allocation2 + $0xa0] sm:$0x3] %vm228, 0.0
      %248 = vst.msk [vmem:[#allocation2 + $0xa8] sm:$0xff] %vm225, 0.0
      %249 = vst.msk [vmem:[#allocation2 + $0xb0] sm:$0xff] %vm225, 0.0
      %250 = vst.msk [vmem:[#allocation2 + $0xb8] sm:$0x3] %vm228, 0.0
      %251 = vst.msk [vmem:[#allocation2 + $0xc0] sm:$0xff] %vm225, 0.0
      %252 = vst.msk [vmem:[#allocation2 + $0xc8] sm:$0xff] %vm225, 0.0
      %253 = vst.msk [vmem:[#allocation2 + $0xd0] sm:$0x3] %vm228, 0.0
      %254 = vst.msk [vmem:[#allocation2 + $0xd8] sm:$0xff] %vm225, 0.0
      %255 = vst.msk [vmem:[#allocation2 + $0xe0] sm:$0xff] %vm225, 0.0
      %256 = vst.msk [vmem:[#allocation2 + $0xe8] sm:$0x3] %vm228, 0.0
      %257 = vst.msk [vmem:[#allocation2 + $0xf0] sm:$0xff] %vm225, 0.0
      %258 = vst.msk [vmem:[#allocation2 + $0xf8] sm:$0xff] %vm225, 0.0
      %259 = vst.msk [vmem:[#allocation2 + $0x100] sm:$0x3] %vm228, 0.0
      %260 = vst.msk [vmem:[#allocation2 + $0x108] sm:$0xff] %vm225, 0.0
      %261 = vst.msk [vmem:[#allocation2 + $0x110] sm:$0xff] %vm225, 0.0
      %262 = vst.msk [vmem:[#allocation2 + $0x118] sm:$0x3] %vm228, 0.0
      %263 = vst.msk [vmem:[#allocation2 + $0x120] sm:$0xff] %vm225, 0.0
      %264 = vst.msk [vmem:[#allocation2 + $0x128] sm:$0xff] %vm225, 0.0
      %265 = vst.msk [vmem:[#allocation2 + $0x130] sm:$0x3] %vm228, 0.0
      %266 = vst.msk [vmem:[#allocation2 + $0x138] sm:$0xff] %vm225, 0.0
      %267 = vst.msk [vmem:[#allocation2 + $0x140] sm:$0xff] %vm225, 0.0
      %268 = vst.msk [vmem:[#allocation2 + $0x148] sm:$0x3] %vm228, 0.0
      %269 = vst.msk [vmem:[#allocation2 + $0x150] sm:$0xff] %vm225, 0.0
      %270 = vst.msk [vmem:[#allocation2 + $0x158] sm:$0xff] %vm225, 0.0
      %271 = vst.msk [vmem:[#allocation2 + $0x160] sm:$0x3] %vm228, 0.0
      %272 = vst.msk [vmem:[#allocation2 + $0x168] sm:$0xff] %vm225, 0.0
      %273 = vst.msk [vmem:[#allocation2 + $0x170] sm:$0xff] %vm225, 0.0
      %274 = vst.msk [vmem:[#allocation2 + $0x178] sm:$0x3] %vm228, 0.0
      %275 = vst.msk [vmem:[#allocation2 + $0x180] sm:$0xff] %vm225, 0.0
      %276 = vst.msk [vmem:[#allocation2 + $0x188] sm:$0xff] %vm225, 0.0
      %277 = vst.msk [vmem:[#allocation2 + $0x190] sm:$0x3] %vm228, 0.0
      %278 = vst.msk [vmem:[#allocation2 + $0x198] sm:$0xff] %vm225, 0.0
      %279 = vst.msk [vmem:[#allocation2 + $0x1a0] sm:$0xff] %vm225, 0.0
      %280 = vst.msk [vmem:[#allocation2 + $0x1a8] sm:$0x3] %vm228, 0.0
      %v281 = vld [vmem:[%s219] sm:$0xff]
      %v282 = vld [vmem:[%s219 + $0x8] sm:$0xff]
      %v283 = vld [vmem:[%s219 + $0x10] sm:$0xff]
      %v284 = vld [vmem:[%s219 + $0x18] sm:$0xff]
      %v285 = vld [vmem:[%s219 + $0x20] sm:$0xff]
      %v286 = vld [vmem:[%s219 + $0x28] sm:$0xff]
      %v287 = vld [vmem:[%s219 + $0x30] sm:$0xff]
      %v288 = vld [vmem:[%s219 + $0x38] sm:$0xff]
      %v289 = vld [vmem:[%s219 + $0x40] sm:$0xff]
      %v290 = vld [vmem:[%s219 + $0x48] sm:$0xff]
      %v291 = vld [vmem:[%s219 + $0x50] sm:$0xff]
      %v292 = vld [vmem:[%s219 + $0x58] sm:$0xff]
      %v293 = vld [vmem:[%s219 + $0x60] sm:$0xff]
      %v294 = vld [vmem:[%s219 + $0x68] sm:$0xff]
      %v295 = vld [vmem:[%s219 + $0x70] sm:$0xff]
      %v296 = vld [vmem:[%s219 + $0x78] sm:$0xff]
      %v297 = vld [vmem:[%s219 + $0x80] sm:$0xff]
      %v298 = vld [vmem:[%s219 + $0x88] sm:$0xff]
      %v299 = vld [vmem:[%s219 + $0x90] sm:$0xff]
      %v300 = vld [vmem:[%s219 + $0x98] sm:$0xff]
      %v301 = vld [vmem:[%s219 + $0xa0] sm:$0xff]
      %v302 = vld [vmem:[%s219 + $0xa8] sm:$0xff]
      %v303 = vld [vmem:[%s219 + $0xb0] sm:$0xff]
      %v304 = vld [vmem:[%s219 + $0xb8] sm:$0xff]
      %v305 = vld [vmem:[%s219 + $0xc0] sm:$0xff]
      %v306 = vld [vmem:[%s219 + $0xc8] sm:$0xff]
      %v307 = vld [vmem:[%s219 + $0xd0] sm:$0xff]
      %v308 = vld [vmem:[%s219 + $0xd8] sm:$0xff]
      %v309 = vld [vmem:[%s219 + $0xe0] sm:$0xff]
      %v310 = vld [vmem:[%s219 + $0xe8] sm:$0xff]
      %v311 = vld [vmem:[%s219 + $0xf0] sm:$0xff]
      %v312 = vld [vmem:[%s219 + $0xf8] sm:$0xff]
      %s313 = scalar_lea.vmem [#allocation2], 24
      %314 = vst.msk [vmem:[%s313 + $0x1] sm:$0xff] %vm225, %v281
      %315 = vst.msk [vmem:[%s313 + $0x9] sm:$0xff] %vm225, %v282
      %316 = vst.msk [vmem:[%s313 + $0x19] sm:$0xff] %vm225, %v283
      %317 = vst.msk [vmem:[%s313 + $0x21] sm:$0xff] %vm225, %v284
      %318 = vst.msk [vmem:[%s313 + $0x31] sm:$0xff] %vm225, %v285
      %319 = vst.msk [vmem:[%s313 + $0x39] sm:$0xff] %vm225, %v286
      %320 = vst.msk [vmem:[%s313 + $0x49] sm:$0xff] %vm225, %v287
      %321 = vst.msk [vmem:[%s313 + $0x51] sm:$0xff] %vm225, %v288
      %322 = vst.msk [vmem:[%s313 + $0x61] sm:$0xff] %vm225, %v289
      %323 = vst.msk [vmem:[%s313 + $0x69] sm:$0xff] %vm225, %v290
      %324 = vst.msk [vmem:[%s313 + $0x79] sm:$0xff] %vm225, %v291
      %325 = vst.msk [vmem:[%s313 + $0x81] sm:$0xff] %vm225, %v292
      %326 = vst.msk [vmem:[%s313 + $0x91] sm:$0xff] %vm225, %v293
      %327 = vst.msk [vmem:[%s313 + $0x99] sm:$0xff] %vm225, %v294
      %328 = vst.msk [vmem:[%s313 + $0xa9] sm:$0xff] %vm225, %v295
      %329 = vst.msk [vmem:[%s313 + $0xb1] sm:$0xff] %vm225, %v296
      %330 = vst.msk [vmem:[%s313 + $0xc1] sm:$0xff] %vm225, %v297
      %331 = vst.msk [vmem:[%s313 + $0xc9] sm:$0xff] %vm225, %v298
      %332 = vst.msk [vmem:[%s313 + $0xd9] sm:$0xff] %vm225, %v299
      %333 = vst.msk [vmem:[%s313 + $0xe1] sm:$0xff] %vm225, %v300
      %334 = vst.msk [vmem:[%s313 + $0xf1] sm:$0xff] %vm225, %v301
      %335 = vst.msk [vmem:[%s313 + $0xf9] sm:$0xff] %vm225, %v302
      %336 = vst.msk [vmem:[%s313 + $0x109] sm:$0xff] %vm225, %v303
      %337 = vst.msk [vmem:[%s313 + $0x111] sm:$0xff] %vm225, %v304
      %338 = vst.msk [vmem:[%s313 + $0x121] sm:$0xff] %vm225, %v305
      %339 = vst.msk [vmem:[%s313 + $0x129] sm:$0xff] %vm225, %v306
      %340 = vst.msk [vmem:[%s313 + $0x139] sm:$0xff] %vm225, %v307
      %341 = vst.msk [vmem:[%s313 + $0x141] sm:$0xff] %vm225, %v308
      %342 = vst.msk [vmem:[%s313 + $0x151] sm:$0xff] %vm225, %v309
      %343 = vst.msk [vmem:[%s313 + $0x159] sm:$0xff] %vm225, %v310
      %344 = vst.msk [vmem:[%s313 + $0x169] sm:$0xff] %vm225, %v311
      %345 = vst.msk [vmem:[%s313 + $0x171] sm:$0xff] %vm225, %v312
      %v346 = vld [vmem:[#allocation2] sm:$0xff]
      %v347 = vld [vmem:[#allocation2 + $0x8] sm:$0xff]
      %v348 = vld [vmem:[#allocation2 + $0x18] sm:$0xff]
      %v349 = vld [vmem:[#allocation2 + $0x20] sm:$0xff]
      %v350 = vld [vmem:[#allocation2 + $0x30] sm:$0xff]
      %v351 = vld [vmem:[#allocation2 + $0x38] sm:$0xff]
      %v352 = vld [vmem:[#allocation2 + $0x48] sm:$0xff]
      %v353 = vld [vmem:[#allocation2 + $0x50] sm:$0xff]
      %v354 = vld [vmem:[#allocation2 + $0x60] sm:$0xff]
      %v355 = vld [vmem:[#allocation2 + $0x68] sm:$0xff]
      %v356 = vld [vmem:[#allocation2 + $0x78] sm:$0xff]
      %v357 = vld [vmem:[#allocation2 + $0x80] sm:$0xff]
      %v358 = vld [vmem:[#allocation2 + $0x90] sm:$0xff]
      %v359 = vld [vmem:[#allocation2 + $0x98] sm:$0xff]
      %v360 = vld [vmem:[#allocation2 + $0xa8] sm:$0xff]
      %v361 = vld [vmem:[#allocation2 + $0xb0] sm:$0xff]
      %v362 = vld [vmem:[#allocation2 + $0xc0] sm:$0xff]
      %v363 = vld [vmem:[#allocation2 + $0xc8] sm:$0xff]
      %v364 = vld [vmem:[#allocation2 + $0xd8] sm:$0xff]
      %v365 = vld [vmem:[#allocation2 + $0xe0] sm:$0xff]
      %v366 = vld [vmem:[#allocation2 + $0xf0] sm:$0xff]
      %v367 = vld [vmem:[#allocation2 + $0xf8] sm:$0xff]
      %v368 = vld [vmem:[#allocation2 + $0x108] sm:$0xff]
      %v369 = vld [vmem:[#allocation2 + $0x110] sm:$0xff]
      %v370 = vld [vmem:[#allocation2 + $0x120] sm:$0xff]
      %v371 = vld [vmem:[#allocation2 + $0x128] sm:$0xff]
      %v372 = vld [vmem:[#allocation2 + $0x138] sm:$0xff]
      %v373 = vld [vmem:[#allocation2 + $0x140] sm:$0xff]
      %v374 = vld [vmem:[#allocation2 + $0x150] sm:$0xff]
      %v375 = vld [vmem:[#allocation2 + $0x158] sm:$0xff]
      %v376 = vld [vmem:[#allocation2 + $0x168] sm:$0xff]
      %v377 = vld [vmem:[#allocation2 + $0x170] sm:$0xff]
      %v378 = vld [vmem:[#allocation2 + $0x1] sm:$0xff]
      %v379 = vld [vmem:[#allocation2 + $0x9] sm:$0xff]
      %v380 = vld [vmem:[#allocation2 + $0x19] sm:$0xff]
      %v381 = vld [vmem:[#allocation2 + $0x21] sm:$0xff]
      %v382 = vld [vmem:[#allocation2 + $0x31] sm:$0xff]
      %v383 = vld [vmem:[#allocation2 + $0x39] sm:$0xff]
      %v384 = vld [vmem:[#allocation2 + $0x49] sm:$0xff]
      %v385 = vld [vmem:[#allocation2 + $0x51] sm:$0xff]
      %v386 = vld [vmem:[#allocation2 + $0x61] sm:$0xff]
      %v387 = vld [vmem:[#allocation2 + $0x69] sm:$0xff]
      %v388 = vld [vmem:[#allocation2 + $0x79] sm:$0xff]
      %v389 = vld [vmem:[#allocation2 + $0x81] sm:$0xff]
      %v390 = vld [vmem:[#allocation2 + $0x91] sm:$0xff]
      %v391 = vld [vmem:[#allocation2 + $0x99] sm:$0xff]
      %v392 = vld [vmem:[#allocation2 + $0xa9] sm:$0xff]
      %v393 = vld [vmem:[#allocation2 + $0xb1] sm:$0xff]
      %v394 = vld [vmem:[#allocation2 + $0xc1] sm:$0xff]
      %v395 = vld [vmem:[#allocation2 + $0xc9] sm:$0xff]
      %v396 = vld [vmem:[#allocation2 + $0xd9] sm:$0xff]
      %v397 = vld [vmem:[#allocation2 + $0xe1] sm:$0xff]
      %v398 = vld [vmem:[#allocation2 + $0xf1] sm:$0xff]
      %v399 = vld [vmem:[#allocation2 + $0xf9] sm:$0xff]
      %v400 = vld [vmem:[#allocation2 + $0x109] sm:$0xff]
      %v401 = vld [vmem:[#allocation2 + $0x111] sm:$0xff]
      %v402 = vld [vmem:[#allocation2 + $0x121] sm:$0xff]
      %v403 = vld [vmem:[#allocation2 + $0x129] sm:$0xff]
      %v404 = vld [vmem:[#allocation2 + $0x139] sm:$0xff]
      %v405 = vld [vmem:[#allocation2 + $0x141] sm:$0xff]
      %v406 = vld [vmem:[#allocation2 + $0x151] sm:$0xff]
      %v407 = vld [vmem:[#allocation2 + $0x159] sm:$0xff]
      %v408 = vld [vmem:[#allocation2 + $0x169] sm:$0xff]
      %v409 = vld [vmem:[#allocation2 + $0x171] sm:$0xff]
      %v410 = vld [vmem:[#allocation2 + $0x2] sm:$0xff]
      %v411 = vld [vmem:[#allocation2 + $0xa] sm:$0xff]
      %v412 = vld [vmem:[#allocation2 + $0x1a] sm:$0xff]
      %v413 = vld [vmem:[#allocation2 + $0x22] sm:$0xff]
      %v414 = vld [vmem:[#allocation2 + $0x32] sm:$0xff]
      %v415 = vld [vmem:[#allocation2 + $0x3a] sm:$0xff]
      %v416 = vld [vmem:[#allocation2 + $0x4a] sm:$0xff]
      %v417 = vld [vmem:[#allocation2 + $0x52] sm:$0xff]
      %v418 = vld [vmem:[#allocation2 + $0x62] sm:$0xff]
      %v419 = vld [vmem:[#allocation2 + $0x6a] sm:$0xff]
      %v420 = vld [vmem:[#allocation2 + $0x7a] sm:$0xff]
      %v421 = vld [vmem:[#allocation2 + $0x82] sm:$0xff]
      %v422 = vld [vmem:[#allocation2 + $0x92] sm:$0xff]
      %v423 = vld [vmem:[#allocation2 + $0x9a] sm:$0xff]
      %v424 = vld [vmem:[#allocation2 + $0xaa] sm:$0xff]
      %v425 = vld [vmem:[#allocation2 + $0xb2] sm:$0xff]
      %v426 = vld [vmem:[#allocation2 + $0xc2] sm:$0xff]
      %v427 = vld [vmem:[#allocation2 + $0xca] sm:$0xff]
      %v428 = vld [vmem:[#allocation2 + $0xda] sm:$0xff]
      %v429 = vld [vmem:[#allocation2 + $0xe2] sm:$0xff]
      %v430 = vld [vmem:[#allocation2 + $0xf2] sm:$0xff]
      %v431 = vld [vmem:[#allocation2 + $0xfa] sm:$0xff]
      %v432 = vld [vmem:[#allocation2 + $0x10a] sm:$0xff]
      %v433 = vld [vmem:[#allocation2 + $0x112] sm:$0xff]
      %v434 = vld [vmem:[#allocation2 + $0x122] sm:$0xff]
      %v435 = vld [vmem:[#allocation2 + $0x12a] sm:$0xff]
      %v436 = vld [vmem:[#allocation2 + $0x13a] sm:$0xff]
      %v437 = vld [vmem:[#allocation2 + $0x142] sm:$0xff]
      %v438 = vld [vmem:[#allocation2 + $0x152] sm:$0xff]
      %v439 = vld [vmem:[#allocation2 + $0x15a] sm:$0xff]
      %v440 = vld [vmem:[#allocation2 + $0x16a] sm:$0xff]
      %v441 = vld [vmem:[#allocation2 + $0x172] sm:$0xff]
      %v442 = vld [vmem:[%s313] sm:$0xff]
      %v443 = vld [vmem:[%s313 + $0x8] sm:$0xff]
      %v444 = vld [vmem:[%s313 + $0x18] sm:$0xff]
      %v445 = vld [vmem:[%s313 + $0x20] sm:$0xff]
      %v446 = vld [vmem:[%s313 + $0x30] sm:$0xff]
      %v447 = vld [vmem:[%s313 + $0x38] sm:$0xff]
      %v448 = vld [vmem:[%s313 + $0x48] sm:$0xff]
      %v449 = vld [vmem:[%s313 + $0x50] sm:$0xff]
      %v450 = vld [vmem:[%s313 + $0x60] sm:$0xff]
      %v451 = vld [vmem:[%s313 + $0x68] sm:$0xff]
      %v452 = vld [vmem:[%s313 + $0x78] sm:$0xff]
      %v453 = vld [vmem:[%s313 + $0x80] sm:$0xff]
      %v454 = vld [vmem:[%s313 + $0x90] sm:$0xff]
      %v455 = vld [vmem:[%s313 + $0x98] sm:$0xff]
      %v456 = vld [vmem:[%s313 + $0xa8] sm:$0xff]
      %v457 = vld [vmem:[%s313 + $0xb0] sm:$0xff]
      %v458 = vld [vmem:[%s313 + $0xc0] sm:$0xff]
      %v459 = vld [vmem:[%s313 + $0xc8] sm:$0xff]
      %v460 = vld [vmem:[%s313 + $0xd8] sm:$0xff]
      %v461 = vld [vmem:[%s313 + $0xe0] sm:$0xff]
      %v462 = vld [vmem:[%s313 + $0xf0] sm:$0xff]
      %v463 = vld [vmem:[%s313 + $0xf8] sm:$0xff]
      %v464 = vld [vmem:[%s313 + $0x108] sm:$0xff]
      %v465 = vld [vmem:[%s313 + $0x110] sm:$0xff]
      %v466 = vld [vmem:[%s313 + $0x120] sm:$0xff]
      %v467 = vld [vmem:[%s313 + $0x128] sm:$0xff]
      %v468 = vld [vmem:[%s313 + $0x138] sm:$0xff]
      %v469 = vld [vmem:[%s313 + $0x140] sm:$0xff]
      %v470 = vld [vmem:[%s313 + $0x150] sm:$0xff]
      %v471 = vld [vmem:[%s313 + $0x158] sm:$0xff]
      %v472 = vld [vmem:[%s313 + $0x168] sm:$0xff]
      %v473 = vld [vmem:[%s313 + $0x170] sm:$0xff]
      %v474 = vld [vmem:[%s313 + $0x1] sm:$0xff]
      %v475 = vld [vmem:[%s313 + $0x9] sm:$0xff]
      %v476 = vld [vmem:[%s313 + $0x19] sm:$0xff]
      %v477 = vld [vmem:[%s313 + $0x21] sm:$0xff]
      %v478 = vld [vmem:[%s313 + $0x31] sm:$0xff]
      %v479 = vld [vmem:[%s313 + $0x39] sm:$0xff]
      %v480 = vld [vmem:[%s313 + $0x49] sm:$0xff]
      %v481 = vld [vmem:[%s313 + $0x51] sm:$0xff]
      %v482 = vld [vmem:[%s313 + $0x61] sm:$0xff]
      %v483 = vld [vmem:[%s313 + $0x69] sm:$0xff]
      %v484 = vld [vmem:[%s313 + $0x79] sm:$0xff]
      %v485 = vld [vmem:[%s313 + $0x81] sm:$0xff]
      %v486 = vld [vmem:[%s313 + $0x91] sm:$0xff]
      %v487 = vld [vmem:[%s313 + $0x99] sm:$0xff]
      %v488 = vld [vmem:[%s313 + $0xa9] sm:$0xff]
      %v489 = vld [vmem:[%s313 + $0xb1] sm:$0xff]
      %v490 = vld [vmem:[%s313 + $0xc1] sm:$0xff]
      %v491 = vld [vmem:[%s313 + $0xc9] sm:$0xff]
      %v492 = vld [vmem:[%s313 + $0xd9] sm:$0xff]
      %v493 = vld [vmem:[%s313 + $0xe1] sm:$0xff]
      %v494 = vld [vmem:[%s313 + $0xf1] sm:$0xff]
      %v495 = vld [vmem:[%s313 + $0xf9] sm:$0xff]
      %v496 = vld [vmem:[%s313 + $0x109] sm:$0xff]
      %v497 = vld [vmem:[%s313 + $0x111] sm:$0xff]
      %v498 = vld [vmem:[%s313 + $0x121] sm:$0xff]
      %v499 = vld [vmem:[%s313 + $0x129] sm:$0xff]
      %v500 = vld [vmem:[%s313 + $0x139] sm:$0xff]
      %v501 = vld [vmem:[%s313 + $0x141] sm:$0xff]
      %v502 = vld [vmem:[%s313 + $0x151] sm:$0xff]
      %v503 = vld [vmem:[%s313 + $0x159] sm:$0xff]
      %v504 = vld [vmem:[%s313 + $0x169] sm:$0xff]
      %v505 = vld [vmem:[%s313 + $0x171] sm:$0xff]
      %v506 = vld [vmem:[%s313 + $0x2] sm:$0xff]
      %v507 = vld [vmem:[%s313 + $0xa] sm:$0xff]
      %v508 = vld [vmem:[%s313 + $0x1a] sm:$0xff]
      %v509 = vld [vmem:[%s313 + $0x22] sm:$0xff]
      %v510 = vld [vmem:[%s313 + $0x32] sm:$0xff]
      %v511 = vld [vmem:[%s313 + $0x3a] sm:$0xff]
      %v512 = vld [vmem:[%s313 + $0x4a] sm:$0xff]
      %v513 = vld [vmem:[%s313 + $0x52] sm:$0xff]
      %v514 = vld [vmem:[%s313 + $0x62] sm:$0xff]
      %v515 = vld [vmem:[%s313 + $0x6a] sm:$0xff]
      %v516 = vld [vmem:[%s313 + $0x7a] sm:$0xff]
      %v517 = vld [vmem:[%s313 + $0x82] sm:$0xff]
      %v518 = vld [vmem:[%s313 + $0x92] sm:$0xff]
      %v519 = vld [vmem:[%s313 + $0x9a] sm:$0xff]
      %v520 = vld [vmem:[%s313 + $0xaa] sm:$0xff]
      %v521 = vld [vmem:[%s313 + $0xb2] sm:$0xff]
      %v522 = vld [vmem:[%s313 + $0xc2] sm:$0xff]
      %v523 = vld [vmem:[%s313 + $0xca] sm:$0xff]
      %v524 = vld [vmem:[%s313 + $0xda] sm:$0xff]
      %v525 = vld [vmem:[%s313 + $0xe2] sm:$0xff]
      %v526 = vld [vmem:[%s313 + $0xf2] sm:$0xff]
      %v527 = vld [vmem:[%s313 + $0xfa] sm:$0xff]
      %v528 = vld [vmem:[%s313 + $0x10a] sm:$0xff]
      %v529 = vld [vmem:[%s313 + $0x112] sm:$0xff]
      %v530 = vld [vmem:[%s313 + $0x122] sm:$0xff]
      %v531 = vld [vmem:[%s313 + $0x12a] sm:$0xff]
      %v532 = vld [vmem:[%s313 + $0x13a] sm:$0xff]
      %v533 = vld [vmem:[%s313 + $0x142] sm:$0xff]
      %v534 = vld [vmem:[%s313 + $0x152] sm:$0xff]
      %v535 = vld [vmem:[%s313 + $0x15a] sm:$0xff]
      %v536 = vld [vmem:[%s313 + $0x16a] sm:$0xff]
      %v537 = vld [vmem:[%s313 + $0x172] sm:$0xff]
      %s538 = scalar_lea.vmem [#allocation2], 48
      %v539 = vld [vmem:[%s538] sm:$0xff]
      %v540 = vld [vmem:[%s538 + $0x8] sm:$0xff]
      %v541 = vld [vmem:[%s538 + $0x18] sm:$0xff]
      %v542 = vld [vmem:[%s538 + $0x20] sm:$0xff]
      %v543 = vld [vmem:[%s538 + $0x30] sm:$0xff]
      %v544 = vld [vmem:[%s538 + $0x38] sm:$0xff]
      %v545 = vld [vmem:[%s538 + $0x48] sm:$0xff]
      %v546 = vld [vmem:[%s538 + $0x50] sm:$0xff]
      %v547 = vld [vmem:[%s538 + $0x60] sm:$0xff]
      %v548 = vld [vmem:[%s538 + $0x68] sm:$0xff]
      %v549 = vld [vmem:[%s538 + $0x78] sm:$0xff]
      %v550 = vld [vmem:[%s538 + $0x80] sm:$0xff]
      %v551 = vld [vmem:[%s538 + $0x90] sm:$0xff]
      %v552 = vld [vmem:[%s538 + $0x98] sm:$0xff]
      %v553 = vld [vmem:[%s538 + $0xa8] sm:$0xff]
      %v554 = vld [vmem:[%s538 + $0xb0] sm:$0xff]
      %v555 = vld [vmem:[%s538 + $0xc0] sm:$0xff]
      %v556 = vld [vmem:[%s538 + $0xc8] sm:$0xff]
      %v557 = vld [vmem:[%s538 + $0xd8] sm:$0xff]
      %v558 = vld [vmem:[%s538 + $0xe0] sm:$0xff]
      %v559 = vld [vmem:[%s538 + $0xf0] sm:$0xff]
      %v560 = vld [vmem:[%s538 + $0xf8] sm:$0xff]
      %v561 = vld [vmem:[%s538 + $0x108] sm:$0xff]
      %v562 = vld [vmem:[%s538 + $0x110] sm:$0xff]
      %v563 = vld [vmem:[%s538 + $0x120] sm:$0xff]
      %v564 = vld [vmem:[%s538 + $0x128] sm:$0xff]
      %v565 = vld [vmem:[%s538 + $0x138] sm:$0xff]
      %v566 = vld [vmem:[%s538 + $0x140] sm:$0xff]
      %v567 = vld [vmem:[%s538 + $0x150] sm:$0xff]
      %v568 = vld [vmem:[%s538 + $0x158] sm:$0xff]
      %v569 = vld [vmem:[%s538 + $0x168] sm:$0xff]
      %v570 = vld [vmem:[%s538 + $0x170] sm:$0xff]
      %v571 = vld [vmem:[%s538 + $0x1] sm:$0xff]
      %v572 = vld [vmem:[%s538 + $0x9] sm:$0xff]
      %v573 = vld [vmem:[%s538 + $0x19] sm:$0xff]
      %v574 = vld [vmem:[%s538 + $0x21] sm:$0xff]
      %v575 = vld [vmem:[%s538 + $0x31] sm:$0xff]
      %v576 = vld [vmem:[%s538 + $0x39] sm:$0xff]
      %v577 = vld [vmem:[%s538 + $0x49] sm:$0xff]
      %v578 = vld [vmem:[%s538 + $0x51] sm:$0xff]
      %v579 = vld [vmem:[%s538 + $0x61] sm:$0xff]
      %v580 = vld [vmem:[%s538 + $0x69] sm:$0xff]
      %v581 = vld [vmem:[%s538 + $0x79] sm:$0xff]
      %v582 = vld [vmem:[%s538 + $0x81] sm:$0xff]
      %v583 = vld [vmem:[%s538 + $0x91] sm:$0xff]
      %v584 = vld [vmem:[%s538 + $0x99] sm:$0xff]
      %v585 = vld [vmem:[%s538 + $0xa9] sm:$0xff]
      %v586 = vld [vmem:[%s538 + $0xb1] sm:$0xff]
      %v587 = vld [vmem:[%s538 + $0xc1] sm:$0xff]
      %v588 = vld [vmem:[%s538 + $0xc9] sm:$0xff]
      %v589 = vld [vmem:[%s538 + $0xd9] sm:$0xff]
      %v590 = vld [vmem:[%s538 + $0xe1] sm:$0xff]
      %v591 = vld [vmem:[%s538 + $0xf1] sm:$0xff]
      %v592 = vld [vmem:[%s538 + $0xf9] sm:$0xff]
      %v593 = vld [vmem:[%s538 + $0x109] sm:$0xff]
      %v594 = vld [vmem:[%s538 + $0x111] sm:$0xff]
      %v595 = vld [vmem:[%s538 + $0x121] sm:$0xff]
      %v596 = vld [vmem:[%s538 + $0x129] sm:$0xff]
      %v597 = vld [vmem:[%s538 + $0x139] sm:$0xff]
      %v598 = vld [vmem:[%s538 + $0x141] sm:$0xff]
      %v599 = vld [vmem:[%s538 + $0x151] sm:$0xff]
      %v600 = vld [vmem:[%s538 + $0x159] sm:$0xff]
      %v601 = vld [vmem:[%s538 + $0x169] sm:$0xff]
      %v602 = vld [vmem:[%s538 + $0x171] sm:$0xff]
      %v603 = vld [vmem:[%s538 + $0x2] sm:$0xff]
      %v604 = vld [vmem:[%s538 + $0xa] sm:$0xff]
      %v605 = vld [vmem:[%s538 + $0x1a] sm:$0xff]
      %v606 = vld [vmem:[%s538 + $0x22] sm:$0xff]
      %v607 = vld [vmem:[%s538 + $0x32] sm:$0xff]
      %v608 = vld [vmem:[%s538 + $0x3a] sm:$0xff]
      %v609 = vld [vmem:[%s538 + $0x4a] sm:$0xff]
      %v610 = vld [vmem:[%s538 + $0x52] sm:$0xff]
      %v611 = vld [vmem:[%s538 + $0x62] sm:$0xff]
      %v612 = vld [vmem:[%s538 + $0x6a] sm:$0xff]
      %v613 = vld [vmem:[%s538 + $0x7a] sm:$0xff]
      %v614 = vld [vmem:[%s538 + $0x82] sm:$0xff]
      %v615 = vld [vmem:[%s538 + $0x92] sm:$0xff]
      %v616 = vld [vmem:[%s538 + $0x9a] sm:$0xff]
      %v617 = vld [vmem:[%s538 + $0xaa] sm:$0xff]
      %v618 = vld [vmem:[%s538 + $0xb2] sm:$0xff]
      %v619 = vld [vmem:[%s538 + $0xc2] sm:$0xff]
      %v620 = vld [vmem:[%s538 + $0xca] sm:$0xff]
      %v621 = vld [vmem:[%s538 + $0xda] sm:$0xff]
      %v622 = vld [vmem:[%s538 + $0xe2] sm:$0xff]
      %v623 = vld [vmem:[%s538 + $0xf2] sm:$0xff]
      %v624 = vld [vmem:[%s538 + $0xfa] sm:$0xff]
      %v625 = vld [vmem:[%s538 + $0x10a] sm:$0xff]
      %v626 = vld [vmem:[%s538 + $0x112] sm:$0xff]
      %v627 = vld [vmem:[%s538 + $0x122] sm:$0xff]
      %v628 = vld [vmem:[%s538 + $0x12a] sm:$0xff]
      %v629 = vld [vmem:[%s538 + $0x13a] sm:$0xff]
      %v630 = vld [vmem:[%s538 + $0x142] sm:$0xff]
      %v631 = vld [vmem:[%s538 + $0x152] sm:$0xff]
      %v632 = vld [vmem:[%s538 + $0x15a] sm:$0xff]
      %v633 = vld [vmem:[%s538 + $0x16a] sm:$0xff]
      %v634 = vld [vmem:[%s538 + $0x172] sm:$0xff]
      %667 = vrot.lane.b32.xlu0 %v378, 4
      %v668 = vpop.permute.xlu0 %667
      %669 = vrot.lane.b32.xlu0 %v379, 4
      %v670 = vpop.permute.xlu0 %669
      %671 = vrot.lane.b32.xlu0 %v380, 4
      %v672 = vpop.permute.xlu0 %671
      %673 = vrot.lane.b32.xlu0 %v381, 4
      %v674 = vpop.permute.xlu0 %673
      %675 = vrot.lane.b32.xlu0 %v382, 4
      %v676 = vpop.permute.xlu0 %675
      %677 = vrot.lane.b32.xlu0 %v383, 4
      %v678 = vpop.permute.xlu0 %677
      %679 = vrot.lane.b32.xlu0 %v384, 4
      %v680 = vpop.permute.xlu0 %679
      %681 = vrot.lane.b32.xlu0 %v385, 4
      %v682 = vpop.permute.xlu0 %681
      %683 = vrot.lane.b32.xlu0 %v386, 4
      %v684 = vpop.permute.xlu0 %683
      %685 = vrot.lane.b32.xlu0 %v387, 4
      %v686 = vpop.permute.xlu0 %685
      %687 = vrot.lane.b32.xlu0 %v388, 4
      %v688 = vpop.permute.xlu0 %687
      %689 = vrot.lane.b32.xlu0 %v389, 4
      %v690 = vpop.permute.xlu0 %689
      %691 = vrot.lane.b32.xlu0 %v390, 4
      %v692 = vpop.permute.xlu0 %691
      %693 = vrot.lane.b32.xlu0 %v391, 4
      %v694 = vpop.permute.xlu0 %693
      %695 = vrot.lane.b32.xlu0 %v392, 4
      %v696 = vpop.permute.xlu0 %695
      %697 = vrot.lane.b32.xlu0 %v393, 4
      %v698 = vpop.permute.xlu0 %697
      %699 = vrot.lane.b32.xlu0 %v394, 4
      %v700 = vpop.permute.xlu0 %699
      %701 = vrot.lane.b32.xlu0 %v395, 4
      %v702 = vpop.permute.xlu0 %701
      %703 = vrot.lane.b32.xlu0 %v396, 4
      %v704 = vpop.permute.xlu0 %703
      %705 = vrot.lane.b32.xlu0 %v397, 4
      %v706 = vpop.permute.xlu0 %705
      %707 = vrot.lane.b32.xlu0 %v398, 4
      %v708 = vpop.permute.xlu0 %707
      %709 = vrot.lane.b32.xlu0 %v399, 4
      %v710 = vpop.permute.xlu0 %709
      %711 = vrot.lane.b32.xlu0 %v400, 4
      %v712 = vpop.permute.xlu0 %711
      %713 = vrot.lane.b32.xlu0 %v401, 4
      %v714 = vpop.permute.xlu0 %713
      %715 = vrot.lane.b32.xlu0 %v402, 4
      %v716 = vpop.permute.xlu0 %715
      %717 = vrot.lane.b32.xlu0 %v403, 4
      %v718 = vpop.permute.xlu0 %717
      %719 = vrot.lane.b32.xlu0 %v404, 4
      %v720 = vpop.permute.xlu0 %719
      %721 = vrot.lane.b32.xlu0 %v405, 4
      %v722 = vpop.permute.xlu0 %721
      %723 = vrot.lane.b32.xlu0 %v406, 4
      %v724 = vpop.permute.xlu0 %723
      %725 = vrot.lane.b32.xlu0 %v407, 4
      %v726 = vpop.permute.xlu0 %725
      %727 = vrot.lane.b32.xlu0 %v408, 4
      %v728 = vpop.permute.xlu0 %727
      %729 = vrot.lane.b32.xlu0 %v409, 4
      %v730 = vpop.permute.xlu0 %729
      %795 = vrot.lane.b32.xlu0 %v410, 8
      %v796 = vpop.permute.xlu0 %795
      %797 = vrot.lane.b32.xlu0 %v411, 8
      %v798 = vpop.permute.xlu0 %797
      %799 = vrot.lane.b32.xlu0 %v412, 8
      %v800 = vpop.permute.xlu0 %799
      %801 = vrot.lane.b32.xlu0 %v413, 8
      %v802 = vpop.permute.xlu0 %801
      %803 = vrot.lane.b32.xlu0 %v414, 8
      %v804 = vpop.permute.xlu0 %803
      %805 = vrot.lane.b32.xlu0 %v415, 8
      %v806 = vpop.permute.xlu0 %805
      %807 = vrot.lane.b32.xlu0 %v416, 8
      %v808 = vpop.permute.xlu0 %807
      %809 = vrot.lane.b32.xlu0 %v417, 8
      %v810 = vpop.permute.xlu0 %809
      %811 = vrot.lane.b32.xlu0 %v418, 8
      %v812 = vpop.permute.xlu0 %811
      %813 = vrot.lane.b32.xlu0 %v419, 8
      %v814 = vpop.permute.xlu0 %813
      %815 = vrot.lane.b32.xlu0 %v420, 8
      %v816 = vpop.permute.xlu0 %815
      %817 = vrot.lane.b32.xlu0 %v421, 8
      %v818 = vpop.permute.xlu0 %817
      %819 = vrot.lane.b32.xlu0 %v422, 8
      %v820 = vpop.permute.xlu0 %819
      %821 = vrot.lane.b32.xlu0 %v423, 8
      %v822 = vpop.permute.xlu0 %821
      %823 = vrot.lane.b32.xlu0 %v424, 8
      %v824 = vpop.permute.xlu0 %823
      %825 = vrot.lane.b32.xlu0 %v425, 8
      %v826 = vpop.permute.xlu0 %825
      %827 = vrot.lane.b32.xlu0 %v426, 8
      %v828 = vpop.permute.xlu0 %827
      %829 = vrot.lane.b32.xlu0 %v427, 8
      %v830 = vpop.permute.xlu0 %829
      %831 = vrot.lane.b32.xlu0 %v428, 8
      %v832 = vpop.permute.xlu0 %831
      %833 = vrot.lane.b32.xlu0 %v429, 8
      %v834 = vpop.permute.xlu0 %833
      %835 = vrot.lane.b32.xlu0 %v430, 8
      %v836 = vpop.permute.xlu0 %835
      %837 = vrot.lane.b32.xlu0 %v431, 8
      %v838 = vpop.permute.xlu0 %837
      %839 = vrot.lane.b32.xlu0 %v432, 8
      %v840 = vpop.permute.xlu0 %839
      %841 = vrot.lane.b32.xlu0 %v433, 8
      %v842 = vpop.permute.xlu0 %841
      %843 = vrot.lane.b32.xlu0 %v434, 8
      %v844 = vpop.permute.xlu0 %843
      %845 = vrot.lane.b32.xlu0 %v435, 8
      %v846 = vpop.permute.xlu0 %845
      %847 = vrot.lane.b32.xlu0 %v436, 8
      %v848 = vpop.permute.xlu0 %847
      %849 = vrot.lane.b32.xlu0 %v437, 8
      %v850 = vpop.permute.xlu0 %849
      %851 = vrot.lane.b32.xlu0 %v438, 8
      %v852 = vpop.permute.xlu0 %851
      %853 = vrot.lane.b32.xlu0 %v439, 8
      %v854 = vpop.permute.xlu0 %853
      %855 = vrot.lane.b32.xlu0 %v440, 8
      %v856 = vpop.permute.xlu0 %855
      %857 = vrot.lane.b32.xlu0 %v441, 8
      %v858 = vpop.permute.xlu0 %857
      %923 = vrot.lane.b32.xlu0 %v442, 12
      %v924 = vpop.permute.xlu0 %923
      %925 = vrot.lane.b32.xlu0 %v443, 12
      %v926 = vpop.permute.xlu0 %925
      %927 = vrot.lane.b32.xlu0 %v444, 12
      %v928 = vpop.permute.xlu0 %927
      %929 = vrot.lane.b32.xlu0 %v445, 12
      %v930 = vpop.permute.xlu0 %929
      %931 = vrot.lane.b32.xlu0 %v446, 12
      %v932 = vpop.permute.xlu0 %931
      %933 = vrot.lane.b32.xlu0 %v447, 12
      %v934 = vpop.permute.xlu0 %933
      %935 = vrot.lane.b32.xlu0 %v448, 12
      %v936 = vpop.permute.xlu0 %935
      %937 = vrot.lane.b32.xlu0 %v449, 12
      %v938 = vpop.permute.xlu0 %937
      %939 = vrot.lane.b32.xlu0 %v450, 12
      %v940 = vpop.permute.xlu0 %939
      %941 = vrot.lane.b32.xlu0 %v451, 12
      %v942 = vpop.permute.xlu0 %941
      %943 = vrot.lane.b32.xlu0 %v452, 12
      %v944 = vpop.permute.xlu0 %943
      %945 = vrot.lane.b32.xlu0 %v453, 12
      %v946 = vpop.permute.xlu0 %945
      %947 = vrot.lane.b32.xlu0 %v454, 12
      %v948 = vpop.permute.xlu0 %947
      %949 = vrot.lane.b32.xlu0 %v455, 12
      %v950 = vpop.permute.xlu0 %949
      %951 = vrot.lane.b32.xlu0 %v456, 12
      %v952 = vpop.permute.xlu0 %951
      %953 = vrot.lane.b32.xlu0 %v457, 12
      %v954 = vpop.permute.xlu0 %953
      %955 = vrot.lane.b32.xlu0 %v458, 12
      %v956 = vpop.permute.xlu0 %955
      %957 = vrot.lane.b32.xlu0 %v459, 12
      %v958 = vpop.permute.xlu0 %957
      %959 = vrot.lane.b32.xlu0 %v460, 12
      %v960 = vpop.permute.xlu0 %959
      %961 = vrot.lane.b32.xlu0 %v461, 12
      %v962 = vpop.permute.xlu0 %961
      %963 = vrot.lane.b32.xlu0 %v462, 12
      %v964 = vpop.permute.xlu0 %963
      %965 = vrot.lane.b32.xlu0 %v463, 12
      %v966 = vpop.permute.xlu0 %965
      %967 = vrot.lane.b32.xlu0 %v464, 12
      %v968 = vpop.permute.xlu0 %967
      %969 = vrot.lane.b32.xlu0 %v465, 12
      %v970 = vpop.permute.xlu0 %969
      %971 = vrot.lane.b32.xlu0 %v466, 12
      %v972 = vpop.permute.xlu0 %971
      %973 = vrot.lane.b32.xlu0 %v467, 12
      %v974 = vpop.permute.xlu0 %973
      %975 = vrot.lane.b32.xlu0 %v468, 12
      %v976 = vpop.permute.xlu0 %975
      %977 = vrot.lane.b32.xlu0 %v469, 12
      %v978 = vpop.permute.xlu0 %977
      %979 = vrot.lane.b32.xlu0 %v470, 12
      %v980 = vpop.permute.xlu0 %979
      %981 = vrot.lane.b32.xlu0 %v471, 12
      %v982 = vpop.permute.xlu0 %981
      %983 = vrot.lane.b32.xlu0 %v472, 12
      %v984 = vpop.permute.xlu0 %983
      %985 = vrot.lane.b32.xlu0 %v473, 12
      %v986 = vpop.permute.xlu0 %985
      %1051 = vrot.lane.b32.xlu0 %v474, 16
      %v1052 = vpop.permute.xlu0 %1051
      %1053 = vrot.lane.b32.xlu0 %v475, 16
      %v1054 = vpop.permute.xlu0 %1053
      %1055 = vrot.lane.b32.xlu0 %v476, 16
      %v1056 = vpop.permute.xlu0 %1055
      %1057 = vrot.lane.b32.xlu0 %v477, 16
      %v1058 = vpop.permute.xlu0 %1057
      %1059 = vrot.lane.b32.xlu0 %v478, 16
      %v1060 = vpop.permute.xlu0 %1059
      %1061 = vrot.lane.b32.xlu0 %v479, 16
      %v1062 = vpop.permute.xlu0 %1061
      %1063 = vrot.lane.b32.xlu0 %v480, 16
      %v1064 = vpop.permute.xlu0 %1063
      %1065 = vrot.lane.b32.xlu0 %v481, 16
      %v1066 = vpop.permute.xlu0 %1065
      %1067 = vrot.lane.b32.xlu0 %v482, 16
      %v1068 = vpop.permute.xlu0 %1067
      %1069 = vrot.lane.b32.xlu0 %v483, 16
      %v1070 = vpop.permute.xlu0 %1069
      %1071 = vrot.lane.b32.xlu0 %v484, 16
      %v1072 = vpop.permute.xlu0 %1071
      %1073 = vrot.lane.b32.xlu0 %v485, 16
      %v1074 = vpop.permute.xlu0 %1073
      %1075 = vrot.lane.b32.xlu0 %v486, 16
      %v1076 = vpop.permute.xlu0 %1075
      %1077 = vrot.lane.b32.xlu0 %v487, 16
      %v1078 = vpop.permute.xlu0 %1077
      %1079 = vrot.lane.b32.xlu0 %v488, 16
      %v1080 = vpop.permute.xlu0 %1079
      %1081 = vrot.lane.b32.xlu0 %v489, 16
      %v1082 = vpop.permute.xlu0 %1081
      %1083 = vrot.lane.b32.xlu0 %v490, 16
      %v1084 = vpop.permute.xlu0 %1083
      %1085 = vrot.lane.b32.xlu0 %v491, 16
      %v1086 = vpop.permute.xlu0 %1085
      %1087 = vrot.lane.b32.xlu0 %v492, 16
      %v1088 = vpop.permute.xlu0 %1087
      %1089 = vrot.lane.b32.xlu0 %v493, 16
      %v1090 = vpop.permute.xlu0 %1089
      %1091 = vrot.lane.b32.xlu0 %v494, 16
      %v1092 = vpop.permute.xlu0 %1091
      %1093 = vrot.lane.b32.xlu0 %v495, 16
      %v1094 = vpop.permute.xlu0 %1093
      %1095 = vrot.lane.b32.xlu0 %v496, 16
      %v1096 = vpop.permute.xlu0 %1095
      %1097 = vrot.lane.b32.xlu0 %v497, 16
      %v1098 = vpop.permute.xlu0 %1097
      %1099 = vrot.lane.b32.xlu0 %v498, 16
      %v1100 = vpop.permute.xlu0 %1099
      %1101 = vrot.lane.b32.xlu0 %v499, 16
      %v1102 = vpop.permute.xlu0 %1101
      %1103 = vrot.lane.b32.xlu0 %v500, 16
      %v1104 = vpop.permute.xlu0 %1103
      %1105 = vrot.lane.b32.xlu0 %v501, 16
      %v1106 = vpop.permute.xlu0 %1105
      %1107 = vrot.lane.b32.xlu0 %v502, 16
      %v1108 = vpop.permute.xlu0 %1107
      %1109 = vrot.lane.b32.xlu0 %v503, 16
      %v1110 = vpop.permute.xlu0 %1109
      %1111 = vrot.lane.b32.xlu0 %v504, 16
      %v1112 = vpop.permute.xlu0 %1111
      %1113 = vrot.lane.b32.xlu0 %v505, 16
      %v1114 = vpop.permute.xlu0 %1113
      %1179 = vrot.lane.b32.xlu0 %v506, 20
      %v1180 = vpop.permute.xlu0 %1179
      %1181 = vrot.lane.b32.xlu0 %v507, 20
      %v1182 = vpop.permute.xlu0 %1181
      %1183 = vrot.lane.b32.xlu0 %v508, 20
      %v1184 = vpop.permute.xlu0 %1183
      %1185 = vrot.lane.b32.xlu0 %v509, 20
      %v1186 = vpop.permute.xlu0 %1185
      %1187 = vrot.lane.b32.xlu0 %v510, 20
      %v1188 = vpop.permute.xlu0 %1187
      %1189 = vrot.lane.b32.xlu0 %v511, 20
      %v1190 = vpop.permute.xlu0 %1189
      %1191 = vrot.lane.b32.xlu0 %v512, 20
      %v1192 = vpop.permute.xlu0 %1191
      %1193 = vrot.lane.b32.xlu0 %v513, 20
      %v1194 = vpop.permute.xlu0 %1193
      %1195 = vrot.lane.b32.xlu0 %v514, 20
      %v1196 = vpop.permute.xlu0 %1195
      %1197 = vrot.lane.b32.xlu0 %v515, 20
      %v1198 = vpop.permute.xlu0 %1197
      %1199 = vrot.lane.b32.xlu0 %v516, 20
      %v1200 = vpop.permute.xlu0 %1199
      %1201 = vrot.lane.b32.xlu0 %v517, 20
      %v1202 = vpop.permute.xlu0 %1201
      %1203 = vrot.lane.b32.xlu0 %v518, 20
      %v1204 = vpop.permute.xlu0 %1203
      %1205 = vrot.lane.b32.xlu0 %v519, 20
      %v1206 = vpop.permute.xlu0 %1205
      %1207 = vrot.lane.b32.xlu0 %v520, 20
      %v1208 = vpop.permute.xlu0 %1207
      %1209 = vrot.lane.b32.xlu0 %v521, 20
      %v1210 = vpop.permute.xlu0 %1209
      %1211 = vrot.lane.b32.xlu0 %v522, 20
      %v1212 = vpop.permute.xlu0 %1211
      %1213 = vrot.lane.b32.xlu0 %v523, 20
      %v1214 = vpop.permute.xlu0 %1213
      %1215 = vrot.lane.b32.xlu0 %v524, 20
      %v1216 = vpop.permute.xlu0 %1215
      %1217 = vrot.lane.b32.xlu0 %v525, 20
      %v1218 = vpop.permute.xlu0 %1217
      %1219 = vrot.lane.b32.xlu0 %v526, 20
      %v1220 = vpop.permute.xlu0 %1219
      %1221 = vrot.lane.b32.xlu0 %v527, 20
      %v1222 = vpop.permute.xlu0 %1221
      %1223 = vrot.lane.b32.xlu0 %v528, 20
      %v1224 = vpop.permute.xlu0 %1223
      %1225 = vrot.lane.b32.xlu0 %v529, 20
      %v1226 = vpop.permute.xlu0 %1225
      %1227 = vrot.lane.b32.xlu0 %v530, 20
      %v1228 = vpop.permute.xlu0 %1227
      %1229 = vrot.lane.b32.xlu0 %v531, 20
      %v1230 = vpop.permute.xlu0 %1229
      %1231 = vrot.lane.b32.xlu0 %v532, 20
      %v1232 = vpop.permute.xlu0 %1231
      %1233 = vrot.lane.b32.xlu0 %v533, 20
      %v1234 = vpop.permute.xlu0 %1233
      %1235 = vrot.lane.b32.xlu0 %v534, 20
      %v1236 = vpop.permute.xlu0 %1235
      %1237 = vrot.lane.b32.xlu0 %v535, 20
      %v1238 = vpop.permute.xlu0 %1237
      %1239 = vrot.lane.b32.xlu0 %v536, 20
      %v1240 = vpop.permute.xlu0 %1239
      %1241 = vrot.lane.b32.xlu0 %v537, 20
      %v1242 = vpop.permute.xlu0 %1241
      %1307 = vrot.lane.b32.xlu0 %v539, 24
      %v1308 = vpop.permute.xlu0 %1307
      %1309 = vrot.lane.b32.xlu0 %v540, 24
      %v1310 = vpop.permute.xlu0 %1309
      %1311 = vrot.lane.b32.xlu0 %v541, 24
      %v1312 = vpop.permute.xlu0 %1311
      %1313 = vrot.lane.b32.xlu0 %v542, 24
      %v1314 = vpop.permute.xlu0 %1313
      %1315 = vrot.lane.b32.xlu0 %v543, 24
      %v1316 = vpop.permute.xlu0 %1315
      %1317 = vrot.lane.b32.xlu0 %v544, 24
      %v1318 = vpop.permute.xlu0 %1317
      %1319 = vrot.lane.b32.xlu0 %v545, 24
      %v1320 = vpop.permute.xlu0 %1319
      %1321 = vrot.lane.b32.xlu0 %v546, 24
      %v1322 = vpop.permute.xlu0 %1321
      %1323 = vrot.lane.b32.xlu0 %v547, 24
      %v1324 = vpop.permute.xlu0 %1323
      %1325 = vrot.lane.b32.xlu0 %v548, 24
      %v1326 = vpop.permute.xlu0 %1325
      %1327 = vrot.lane.b32.xlu0 %v549, 24
      %v1328 = vpop.permute.xlu0 %1327
      %1329 = vrot.lane.b32.xlu0 %v550, 24
      %v1330 = vpop.permute.xlu0 %1329
      %1331 = vrot.lane.b32.xlu0 %v551, 24
      %v1332 = vpop.permute.xlu0 %1331
      %1333 = vrot.lane.b32.xlu0 %v552, 24
      %v1334 = vpop.permute.xlu0 %1333
      %1335 = vrot.lane.b32.xlu0 %v553, 24
      %v1336 = vpop.permute.xlu0 %1335
      %1337 = vrot.lane.b32.xlu0 %v554, 24
      %v1338 = vpop.permute.xlu0 %1337
      %1339 = vrot.lane.b32.xlu0 %v555, 24
      %v1340 = vpop.permute.xlu0 %1339
      %1341 = vrot.lane.b32.xlu0 %v556, 24
      %v1342 = vpop.permute.xlu0 %1341
      %1343 = vrot.lane.b32.xlu0 %v557, 24
      %v1344 = vpop.permute.xlu0 %1343
      %1345 = vrot.lane.b32.xlu0 %v558, 24
      %v1346 = vpop.permute.xlu0 %1345
      %1347 = vrot.lane.b32.xlu0 %v559, 24
      %v1348 = vpop.permute.xlu0 %1347
      %1349 = vrot.lane.b32.xlu0 %v560, 24
      %v1350 = vpop.permute.xlu0 %1349
      %1351 = vrot.lane.b32.xlu0 %v561, 24
      %v1352 = vpop.permute.xlu0 %1351
      %1353 = vrot.lane.b32.xlu0 %v562, 24
      %v1354 = vpop.permute.xlu0 %1353
      %1355 = vrot.lane.b32.xlu0 %v563, 24
      %v1356 = vpop.permute.xlu0 %1355
      %1357 = vrot.lane.b32.xlu0 %v564, 24
      %v1358 = vpop.permute.xlu0 %1357
      %1359 = vrot.lane.b32.xlu0 %v565, 24
      %v1360 = vpop.permute.xlu0 %1359
      %1361 = vrot.lane.b32.xlu0 %v566, 24
      %v1362 = vpop.permute.xlu0 %1361
      %1363 = vrot.lane.b32.xlu0 %v567, 24
      %v1364 = vpop.permute.xlu0 %1363
      %1365 = vrot.lane.b32.xlu0 %v568, 24
      %v1366 = vpop.permute.xlu0 %1365
      %1367 = vrot.lane.b32.xlu0 %v569, 24
      %v1368 = vpop.permute.xlu0 %1367
      %1369 = vrot.lane.b32.xlu0 %v570, 24
      %v1370 = vpop.permute.xlu0 %1369
      %1435 = vrot.lane.b32.xlu0 %v571, 28
      %v1436 = vpop.permute.xlu0 %1435
      %1437 = vrot.lane.b32.xlu0 %v572, 28
      %v1438 = vpop.permute.xlu0 %1437
      %1439 = vrot.lane.b32.xlu0 %v573, 28
      %v1440 = vpop.permute.xlu0 %1439
      %1441 = vrot.lane.b32.xlu0 %v574, 28
      %v1442 = vpop.permute.xlu0 %1441
      %1443 = vrot.lane.b32.xlu0 %v575, 28
      %v1444 = vpop.permute.xlu0 %1443
      %1445 = vrot.lane.b32.xlu0 %v576, 28
      %v1446 = vpop.permute.xlu0 %1445
      %1447 = vrot.lane.b32.xlu0 %v577, 28
      %v1448 = vpop.permute.xlu0 %1447
      %1449 = vrot.lane.b32.xlu0 %v578, 28
      %v1450 = vpop.permute.xlu0 %1449
      %1451 = vrot.lane.b32.xlu0 %v579, 28
      %v1452 = vpop.permute.xlu0 %1451
      %1453 = vrot.lane.b32.xlu0 %v580, 28
      %v1454 = vpop.permute.xlu0 %1453
      %1455 = vrot.lane.b32.xlu0 %v581, 28
      %v1456 = vpop.permute.xlu0 %1455
      %1457 = vrot.lane.b32.xlu0 %v582, 28
      %v1458 = vpop.permute.xlu0 %1457
      %1459 = vrot.lane.b32.xlu0 %v583, 28
      %v1460 = vpop.permute.xlu0 %1459
      %1461 = vrot.lane.b32.xlu0 %v584, 28
      %v1462 = vpop.permute.xlu0 %1461
      %1463 = vrot.lane.b32.xlu0 %v585, 28
      %v1464 = vpop.permute.xlu0 %1463
      %1465 = vrot.lane.b32.xlu0 %v586, 28
      %v1466 = vpop.permute.xlu0 %1465
      %1467 = vrot.lane.b32.xlu0 %v587, 28
      %v1468 = vpop.permute.xlu0 %1467
      %1469 = vrot.lane.b32.xlu0 %v588, 28
      %v1470 = vpop.permute.xlu0 %1469
      %1471 = vrot.lane.b32.xlu0 %v589, 28
      %v1472 = vpop.permute.xlu0 %1471
      %1473 = vrot.lane.b32.xlu0 %v590, 28
      %v1474 = vpop.permute.xlu0 %1473
      %1475 = vrot.lane.b32.xlu0 %v591, 28
      %v1476 = vpop.permute.xlu0 %1475
      %1477 = vrot.lane.b32.xlu0 %v592, 28
      %v1478 = vpop.permute.xlu0 %1477
      %1479 = vrot.lane.b32.xlu0 %v593, 28
      %v1480 = vpop.permute.xlu0 %1479
      %1481 = vrot.lane.b32.xlu0 %v594, 28
      %v1482 = vpop.permute.xlu0 %1481
      %1483 = vrot.lane.b32.xlu0 %v595, 28
      %v1484 = vpop.permute.xlu0 %1483
      %1485 = vrot.lane.b32.xlu0 %v596, 28
      %v1486 = vpop.permute.xlu0 %1485
      %1487 = vrot.lane.b32.xlu0 %v597, 28
      %v1488 = vpop.permute.xlu0 %1487
      %1489 = vrot.lane.b32.xlu0 %v598, 28
      %v1490 = vpop.permute.xlu0 %1489
      %1491 = vrot.lane.b32.xlu0 %v599, 28
      %v1492 = vpop.permute.xlu0 %1491
      %1493 = vrot.lane.b32.xlu0 %v600, 28
      %v1494 = vpop.permute.xlu0 %1493
      %1495 = vrot.lane.b32.xlu0 %v601, 28
      %v1496 = vpop.permute.xlu0 %1495
      %1497 = vrot.lane.b32.xlu0 %v602, 28
      %v1498 = vpop.permute.xlu0 %1497
      %1563 = vrot.lane.b32.xlu0 %v603, 32
      %v1564 = vpop.permute.xlu0 %1563
      %1565 = vrot.lane.b32.xlu0 %v604, 32
      %v1566 = vpop.permute.xlu0 %1565
      %1567 = vrot.lane.b32.xlu0 %v605, 32
      %v1568 = vpop.permute.xlu0 %1567
      %1569 = vrot.lane.b32.xlu0 %v606, 32
      %v1570 = vpop.permute.xlu0 %1569
      %1571 = vrot.lane.b32.xlu0 %v607, 32
      %v1572 = vpop.permute.xlu0 %1571
      %1573 = vrot.lane.b32.xlu0 %v608, 32
      %v1574 = vpop.permute.xlu0 %1573
      %1575 = vrot.lane.b32.xlu0 %v609, 32
      %v1576 = vpop.permute.xlu0 %1575
      %1577 = vrot.lane.b32.xlu0 %v610, 32
      %v1578 = vpop.permute.xlu0 %1577
      %1579 = vrot.lane.b32.xlu0 %v611, 32
      %v1580 = vpop.permute.xlu0 %1579
      %1581 = vrot.lane.b32.xlu0 %v612, 32
      %v1582 = vpop.permute.xlu0 %1581
      %1583 = vrot.lane.b32.xlu0 %v613, 32
      %v1584 = vpop.permute.xlu0 %1583
      %1585 = vrot.lane.b32.xlu0 %v614, 32
      %v1586 = vpop.permute.xlu0 %1585
      %1587 = vrot.lane.b32.xlu0 %v615, 32
      %v1588 = vpop.permute.xlu0 %1587
      %1589 = vrot.lane.b32.xlu0 %v616, 32
      %v1590 = vpop.permute.xlu0 %1589
      %1591 = vrot.lane.b32.xlu0 %v617, 32
      %v1592 = vpop.permute.xlu0 %1591
      %1593 = vrot.lane.b32.xlu0 %v618, 32
      %v1594 = vpop.permute.xlu0 %1593
      %1595 = vrot.lane.b32.xlu0 %v619, 32
      %v1596 = vpop.permute.xlu0 %1595
      %1597 = vrot.lane.b32.xlu0 %v620, 32
      %v1598 = vpop.permute.xlu0 %1597
      %1599 = vrot.lane.b32.xlu0 %v621, 32
      %v1600 = vpop.permute.xlu0 %1599
      %1601 = vrot.lane.b32.xlu0 %v622, 32
      %v1602 = vpop.permute.xlu0 %1601
      %1603 = vrot.lane.b32.xlu0 %v623, 32
      %v1604 = vpop.permute.xlu0 %1603
      %1605 = vrot.lane.b32.xlu0 %v624, 32
      %v1606 = vpop.permute.xlu0 %1605
      %1607 = vrot.lane.b32.xlu0 %v625, 32
      %v1608 = vpop.permute.xlu0 %1607
      %1609 = vrot.lane.b32.xlu0 %v626, 32
      %v1610 = vpop.permute.xlu0 %1609
      %1611 = vrot.lane.b32.xlu0 %v627, 32
      %v1612 = vpop.permute.xlu0 %1611
      %1613 = vrot.lane.b32.xlu0 %v628, 32
      %v1614 = vpop.permute.xlu0 %1613
      %1615 = vrot.lane.b32.xlu0 %v629, 32
      %v1616 = vpop.permute.xlu0 %1615
      %1617 = vrot.lane.b32.xlu0 %v630, 32
      %v1618 = vpop.permute.xlu0 %1617
      %1619 = vrot.lane.b32.xlu0 %v631, 32
      %v1620 = vpop.permute.xlu0 %1619
      %1621 = vrot.lane.b32.xlu0 %v632, 32
      %v1622 = vpop.permute.xlu0 %1621
      %1623 = vrot.lane.b32.xlu0 %v633, 32
      %v1624 = vpop.permute.xlu0 %1623
      %1625 = vrot.lane.b32.xlu0 %v634, 32
      %v1626 = vpop.permute.xlu0 %1625
      %v1659 = vsel %vm225, %v346, %v668
      %v1660 = vsel %vm225, %v347, %v670
      %v1661 = vsel %vm225, %v348, %v672
      %v1662 = vsel %vm225, %v349, %v674
      %v1663 = vsel %vm225, %v350, %v676
      %v1664 = vsel %vm225, %v351, %v678
      %v1665 = vsel %vm225, %v352, %v680
      %v1666 = vsel %vm225, %v353, %v682
      %v1667 = vsel %vm225, %v354, %v684
      %v1668 = vsel %vm225, %v355, %v686
      %v1669 = vsel %vm225, %v356, %v688
      %v1670 = vsel %vm225, %v357, %v690
      %v1671 = vsel %vm225, %v358, %v692
      %v1672 = vsel %vm225, %v359, %v694
      %v1673 = vsel %vm225, %v360, %v696
      %v1674 = vsel %vm225, %v361, %v698
      %v1675 = vsel %vm225, %v362, %v700
      %v1676 = vsel %vm225, %v363, %v702
      %v1677 = vsel %vm225, %v364, %v704
      %v1678 = vsel %vm225, %v365, %v706
      %v1679 = vsel %vm225, %v366, %v708
      %v1680 = vsel %vm225, %v367, %v710
      %v1681 = vsel %vm225, %v368, %v712
      %v1682 = vsel %vm225, %v369, %v714
      %v1683 = vsel %vm225, %v370, %v716
      %v1684 = vsel %vm225, %v371, %v718
      %v1685 = vsel %vm225, %v372, %v720
      %v1686 = vsel %vm225, %v373, %v722
      %v1687 = vsel %vm225, %v374, %v724
      %v1688 = vsel %vm225, %v375, %v726
      %v1689 = vsel %vm225, %v376, %v728
      %v1690 = vsel %vm225, %v377, %v730
      %vm1691 = vcmask 64512
      %v1692 = vsel %vm1691, %v1659, %v796
      %v1693 = vsel %vm1691, %v1660, %v798
      %v1694 = vsel %vm1691, %v1661, %v800
      %v1695 = vsel %vm1691, %v1662, %v802
      %v1696 = vsel %vm1691, %v1663, %v804
      %v1697 = vsel %vm1691, %v1664, %v806
      %v1698 = vsel %vm1691, %v1665, %v808
      %v1699 = vsel %vm1691, %v1666, %v810
      %v1700 = vsel %vm1691, %v1667, %v812
      %v1701 = vsel %vm1691, %v1668, %v814
      %v1702 = vsel %vm1691, %v1669, %v816
      %v1703 = vsel %vm1691, %v1670, %v818
      %v1704 = vsel %vm1691, %v1671, %v820
      %v1705 = vsel %vm1691, %v1672, %v822
      %v1706 = vsel %vm1691, %v1673, %v824
      %v1707 = vsel %vm1691, %v1674, %v826
      %v1708 = vsel %vm1691, %v1675, %v828
      %v1709 = vsel %vm1691, %v1676, %v830
      %v1710 = vsel %vm1691, %v1677, %v832
      %v1711 = vsel %vm1691, %v1678, %v834
      %v1712 = vsel %vm1691, %v1679, %v836
      %v1713 = vsel %vm1691, %v1680, %v838
      %v1714 = vsel %vm1691, %v1681, %v840
      %v1715 = vsel %vm1691, %v1682, %v842
      %v1716 = vsel %vm1691, %v1683, %v844
      %v1717 = vsel %vm1691, %v1684, %v846
      %v1718 = vsel %vm1691, %v1685, %v848
      %v1719 = vsel %vm1691, %v1686, %v850
      %v1720 = vsel %vm1691, %v1687, %v852
      %v1721 = vsel %vm1691, %v1688, %v854
      %v1722 = vsel %vm1691, %v1689, %v856
      %v1723 = vsel %vm1691, %v1690, %v858
      %vm1724 = vcmask 97280
      %v1725 = vsel %vm1724, %v1692, %v924
      %v1726 = vsel %vm1724, %v1693, %v926
      %v1727 = vsel %vm1724, %v1694, %v928
      %v1728 = vsel %vm1724, %v1695, %v930
      %v1729 = vsel %vm1724, %v1696, %v932
      %v1730 = vsel %vm1724, %v1697, %v934
      %v1731 = vsel %vm1724, %v1698, %v936
      %v1732 = vsel %vm1724, %v1699, %v938
      %v1733 = vsel %vm1724, %v1700, %v940
      %v1734 = vsel %vm1724, %v1701, %v942
      %v1735 = vsel %vm1724, %v1702, %v944
      %v1736 = vsel %vm1724, %v1703, %v946
      %v1737 = vsel %vm1724, %v1704, %v948
      %v1738 = vsel %vm1724, %v1705, %v950
      %v1739 = vsel %vm1724, %v1706, %v952
      %v1740 = vsel %vm1724, %v1707, %v954
      %v1741 = vsel %vm1724, %v1708, %v956
      %v1742 = vsel %vm1724, %v1709, %v958
      %v1743 = vsel %vm1724, %v1710, %v960
      %v1744 = vsel %vm1724, %v1711, %v962
      %v1745 = vsel %vm1724, %v1712, %v964
      %v1746 = vsel %vm1724, %v1713, %v966
      %v1747 = vsel %vm1724, %v1714, %v968
      %v1748 = vsel %vm1724, %v1715, %v970
      %v1749 = vsel %vm1724, %v1716, %v972
      %v1750 = vsel %vm1724, %v1717, %v974
      %v1751 = vsel %vm1724, %v1718, %v976
      %v1752 = vsel %vm1724, %v1719, %v978
      %v1753 = vsel %vm1724, %v1720, %v980
      %v1754 = vsel %vm1724, %v1721, %v982
      %v1755 = vsel %vm1724, %v1722, %v984
      %v1756 = vsel %vm1724, %v1723, %v986
      %vm1757 = vcmask 130048
      %v1758 = vsel %vm1757, %v1725, %v1052
      %v1759 = vsel %vm1757, %v1726, %v1054
      %v1760 = vsel %vm1757, %v1727, %v1056
      %v1761 = vsel %vm1757, %v1728, %v1058
      %v1762 = vsel %vm1757, %v1729, %v1060
      %v1763 = vsel %vm1757, %v1730, %v1062
      %v1764 = vsel %vm1757, %v1731, %v1064
      %v1765 = vsel %vm1757, %v1732, %v1066
      %v1766 = vsel %vm1757, %v1733, %v1068
      %v1767 = vsel %vm1757, %v1734, %v1070
      %v1768 = vsel %vm1757, %v1735, %v1072
      %v1769 = vsel %vm1757, %v1736, %v1074
      %v1770 = vsel %vm1757, %v1737, %v1076
      %v1771 = vsel %vm1757, %v1738, %v1078
      %v1772 = vsel %vm1757, %v1739, %v1080
      %v1773 = vsel %vm1757, %v1740, %v1082
      %v1774 = vsel %vm1757, %v1741, %v1084
      %v1775 = vsel %vm1757, %v1742, %v1086
      %v1776 = vsel %vm1757, %v1743, %v1088
      %v1777 = vsel %vm1757, %v1744, %v1090
      %v1778 = vsel %vm1757, %v1745, %v1092
      %v1779 = vsel %vm1757, %v1746, %v1094
      %v1780 = vsel %vm1757, %v1747, %v1096
      %v1781 = vsel %vm1757, %v1748, %v1098
      %v1782 = vsel %vm1757, %v1749, %v1100
      %v1783 = vsel %vm1757, %v1750, %v1102
      %v1784 = vsel %vm1757, %v1751, %v1104
      %v1785 = vsel %vm1757, %v1752, %v1106
      %v1786 = vsel %vm1757, %v1753, %v1108
      %v1787 = vsel %vm1757, %v1754, %v1110
      %v1788 = vsel %vm1757, %v1755, %v1112
      %v1789 = vsel %vm1757, %v1756, %v1114
      %vm1790 = vcmask 162816
      %v1791 = vsel %vm1790, %v1758, %v1180
      %v1792 = vsel %vm1790, %v1759, %v1182
      %v1793 = vsel %vm1790, %v1760, %v1184
      %v1794 = vsel %vm1790, %v1761, %v1186
      %v1795 = vsel %vm1790, %v1762, %v1188
      %v1796 = vsel %vm1790, %v1763, %v1190
      %v1797 = vsel %vm1790, %v1764, %v1192
      %v1798 = vsel %vm1790, %v1765, %v1194
      %v1799 = vsel %vm1790, %v1766, %v1196
      %v1800 = vsel %vm1790, %v1767, %v1198
      %v1801 = vsel %vm1790, %v1768, %v1200
      %v1802 = vsel %vm1790, %v1769, %v1202
      %v1803 = vsel %vm1790, %v1770, %v1204
      %v1804 = vsel %vm1790, %v1771, %v1206
      %v1805 = vsel %vm1790, %v1772, %v1208
      %v1806 = vsel %vm1790, %v1773, %v1210
      %v1807 = vsel %vm1790, %v1774, %v1212
      %v1808 = vsel %vm1790, %v1775, %v1214
      %v1809 = vsel %vm1790, %v1776, %v1216
      %v1810 = vsel %vm1790, %v1777, %v1218
      %v1811 = vsel %vm1790, %v1778, %v1220
      %v1812 = vsel %vm1790, %v1779, %v1222
      %v1813 = vsel %vm1790, %v1780, %v1224
      %v1814 = vsel %vm1790, %v1781, %v1226
      %v1815 = vsel %vm1790, %v1782, %v1228
      %v1816 = vsel %vm1790, %v1783, %v1230
      %v1817 = vsel %vm1790, %v1784, %v1232
      %v1818 = vsel %vm1790, %v1785, %v1234
      %v1819 = vsel %vm1790, %v1786, %v1236
      %v1820 = vsel %vm1790, %v1787, %v1238
      %v1821 = vsel %vm1790, %v1788, %v1240
      %v1822 = vsel %vm1790, %v1789, %v1242
      %vm1823 = vcmask 195584
      %v1824 = vsel %vm1823, %v1791, %v1308
      %v1825 = vsel %vm1823, %v1792, %v1310
      %v1826 = vsel %vm1823, %v1793, %v1312
      %v1827 = vsel %vm1823, %v1794, %v1314
      %v1828 = vsel %vm1823, %v1795, %v1316
      %v1829 = vsel %vm1823, %v1796, %v1318
      %v1830 = vsel %vm1823, %v1797, %v1320
      %v1831 = vsel %vm1823, %v1798, %v1322
      %v1832 = vsel %vm1823, %v1799, %v1324
      %v1833 = vsel %vm1823, %v1800, %v1326
      %v1834 = vsel %vm1823, %v1801, %v1328
      %v1835 = vsel %vm1823, %v1802, %v1330
      %v1836 = vsel %vm1823, %v1803, %v1332
      %v1837 = vsel %vm1823, %v1804, %v1334
      %v1838 = vsel %vm1823, %v1805, %v1336
      %v1839 = vsel %vm1823, %v1806, %v1338
      %v1840 = vsel %vm1823, %v1807, %v1340
      %v1841 = vsel %vm1823, %v1808, %v1342
      %v1842 = vsel %vm1823, %v1809, %v1344
      %v1843 = vsel %vm1823, %v1810, %v1346
      %v1844 = vsel %vm1823, %v1811, %v1348
      %v1845 = vsel %vm1823, %v1812, %v1350
      %v1846 = vsel %vm1823, %v1813, %v1352
      %v1847 = vsel %vm1823, %v1814, %v1354
      %v1848 = vsel %vm1823, %v1815, %v1356
      %v1849 = vsel %vm1823, %v1816, %v1358
      %v1850 = vsel %vm1823, %v1817, %v1360
      %v1851 = vsel %vm1823, %v1818, %v1362
      %v1852 = vsel %vm1823, %v1819, %v1364
      %v1853 = vsel %vm1823, %v1820, %v1366
      %v1854 = vsel %vm1823, %v1821, %v1368
      %v1855 = vsel %vm1823, %v1822, %v1370
      %vm1856 = vcmask 228352
      %v1857 = vsel %vm1856, %v1824, %v1436
      %v1858 = vsel %vm1856, %v1825, %v1438
      %v1859 = vsel %vm1856, %v1826, %v1440
      %v1860 = vsel %vm1856, %v1827, %v1442
      %v1861 = vsel %vm1856, %v1828, %v1444
      %v1862 = vsel %vm1856, %v1829, %v1446
      %v1863 = vsel %vm1856, %v1830, %v1448
      %v1864 = vsel %vm1856, %v1831, %v1450
      %v1865 = vsel %vm1856, %v1832, %v1452
      %v1866 = vsel %vm1856, %v1833, %v1454
      %v1867 = vsel %vm1856, %v1834, %v1456
      %v1868 = vsel %vm1856, %v1835, %v1458
      %v1869 = vsel %vm1856, %v1836, %v1460
      %v1870 = vsel %vm1856, %v1837, %v1462
      %v1871 = vsel %vm1856, %v1838, %v1464
      %v1872 = vsel %vm1856, %v1839, %v1466
      %v1873 = vsel %vm1856, %v1840, %v1468
      %v1874 = vsel %vm1856, %v1841, %v1470
      %v1875 = vsel %vm1856, %v1842, %v1472
      %v1876 = vsel %vm1856, %v1843, %v1474
      %v1877 = vsel %vm1856, %v1844, %v1476
      %v1878 = vsel %vm1856, %v1845, %v1478
      %v1879 = vsel %vm1856, %v1846, %v1480
      %v1880 = vsel %vm1856, %v1847, %v1482
      %v1881 = vsel %vm1856, %v1848, %v1484
      %v1882 = vsel %vm1856, %v1849, %v1486
      %v1883 = vsel %vm1856, %v1850, %v1488
      %v1884 = vsel %vm1856, %v1851, %v1490
      %v1885 = vsel %vm1856, %v1852, %v1492
      %v1886 = vsel %vm1856, %v1853, %v1494
      %v1887 = vsel %vm1856, %v1854, %v1496
      %v1888 = vsel %vm1856, %v1855, %v1498
      %vm1889 = vcmask 261120
      %v1890 = vsel %vm1889, %v1857, %v1564
      %v1891 = vsel %vm1889, %v1858, %v1566
      %v1892 = vsel %vm1889, %v1859, %v1568
      %v1893 = vsel %vm1889, %v1860, %v1570
      %v1894 = vsel %vm1889, %v1861, %v1572
      %v1895 = vsel %vm1889, %v1862, %v1574
      %v1896 = vsel %vm1889, %v1863, %v1576
      %v1897 = vsel %vm1889, %v1864, %v1578
      %v1898 = vsel %vm1889, %v1865, %v1580
      %v1899 = vsel %vm1889, %v1866, %v1582
      %v1900 = vsel %vm1889, %v1867, %v1584
      %v1901 = vsel %vm1889, %v1868, %v1586
      %v1902 = vsel %vm1889, %v1869, %v1588
      %v1903 = vsel %vm1889, %v1870, %v1590
      %v1904 = vsel %vm1889, %v1871, %v1592
      %v1905 = vsel %vm1889, %v1872, %v1594
      %v1906 = vsel %vm1889, %v1873, %v1596
      %v1907 = vsel %vm1889, %v1874, %v1598
      %v1908 = vsel %vm1889, %v1875, %v1600
      %v1909 = vsel %vm1889, %v1876, %v1602
      %v1910 = vsel %vm1889, %v1877, %v1604
      %v1911 = vsel %vm1889, %v1878, %v1606
      %v1912 = vsel %vm1889, %v1879, %v1608
      %v1913 = vsel %vm1889, %v1880, %v1610
      %v1914 = vsel %vm1889, %v1881, %v1612
      %v1915 = vsel %vm1889, %v1882, %v1614
      %v1916 = vsel %vm1889, %v1883, %v1616
      %v1917 = vsel %vm1889, %v1884, %v1618
      %v1918 = vsel %vm1889, %v1885, %v1620
      %v1919 = vsel %vm1889, %v1886, %v1622
      %v1920 = vsel %vm1889, %v1887, %v1624
      %v1921 = vsel %vm1889, %v1888, %v1626
      %v1922 = vld [vmem:[%s1] sm:$0xff]
      %v1923 = vld [vmem:[%s1 + $0x8] sm:$0xff]
      %v1924 = vld [vmem:[%s1 + $0x10] sm:$0xff]
      %v1925 = vld [vmem:[%s1 + $0x18] sm:$0xff]
      %v1926 = vld [vmem:[%s1 + $0x20] sm:$0xf]
      %v1927 = vld [vmem:[%s2] sm:$0x1]
      %v1929 = vperm.slane %v1927, 0
      %vm1931 = vcmask 293888
      %v1933 = vsel %vm1931, %v1890, 0
      %v1936 = vsel %vm1931, %v1891, 0
      %v1939 = vsel %vm1931, %v1892, 0
      %v1942 = vsel %vm1931, %v1893, 0
      %v1945 = vsel %vm1931, %v1894, 0
      %v1948 = vsel %vm1931, %v1895, 0
      %v1951 = vsel %vm1931, %v1896, 0
      %v1954 = vsel %vm1931, %v1897, 0
      %v1957 = vsel %vm1931, %v1898, 0
      %v1960 = vsel %vm1931, %v1899, 0
      %v1963 = vsel %vm1931, %v1900, 0
      %v1966 = vsel %vm1931, %v1901, 0
      %v1969 = vsel %vm1931, %v1902, 0
      %v1972 = vsel %vm1931, %v1903, 0
      %v1975 = vsel %vm1931, %v1904, 0
      %v1978 = vsel %vm1931, %v1905, 0
      %v1981 = vsel %vm1931, %v1906, 0
      %v1984 = vsel %vm1931, %v1907, 0
      %v1987 = vsel %vm1931, %v1908, 0
      %v1990 = vsel %vm1931, %v1909, 0
      %v1993 = vsel %vm1931, %v1910, 0
      %v1996 = vsel %vm1931, %v1911, 0
      %v1999 = vsel %vm1931, %v1912, 0
      %v2002 = vsel %vm1931, %v1913, 0
      %v2005 = vsel %vm1931, %v1914, 0
      %v2008 = vsel %vm1931, %v1915, 0
      %v2011 = vsel %vm1931, %v1916, 0
      %v2014 = vsel %vm1931, %v1917, 0
      %v2017 = vsel %vm1931, %v1918, 0
      %v2020 = vsel %vm1931, %v1919, 0
      %v2023 = vsel %vm1931, %v1920, 0
      %v2026 = vsel %vm1931, %v1921, 0
      %vm2028 = vcmask 1043456
      %v2030 = vsel %vm2028, %v1926, 0
      %2032 = vmatpush.msra.mxu0 0.0
      %2033 = vmatpush.msra.mxu0 0.0
      %2034 = vmatpush.msra.mxu0 0.0
      %2035 = vmatpush.msra.mxu0 0.0
      %2036 = vmatpush.msra.mxu0 0.0
      %2037 = vmatpush.msra.mxu0 0.0
      %2038 = vmatpush.msra.mxu0 0.0
      %2039 = vmatpush.msra.mxu0 0.0
      %2040 = vmatpush.msra.mxu0 0.0
      %2041 = vmatpush.msra.mxu0 0.0
      %2042 = vmatpush.msra.mxu0 0.0
      %2043 = vmatpush.msra.mxu0 %v2030
      %2044 = vmatpush.msra.mxu0 %v1925
      %2045 = vmatpush.msra.mxu0 %v1924
      %2046 = vmatpush.msra.mxu0 %v1923
      %2047 = vmatpush.msra.mxu0 %v1922
      %2048 = vmatmul.f32.gmra.mxu0 %v1933
      %v2049 = vpop.f32.mrf.mxu0
      %v2050 = vadd.f32 %v1929, %v2049
      %2051 = vmatmul.f32.gmra.mxu0 %v1936
      %v2052 = vpop.f32.mrf.mxu0
      %v2053 = vadd.f32 %v1929, %v2052
      %2054 = vmatmul.f32.gmra.mxu0 %v1939
      %v2055 = vpop.f32.mrf.mxu0
      %v2056 = vadd.f32 %v1929, %v2055
      %2057 = vmatmul.f32.gmra.mxu0 %v1942
      %v2058 = vpop.f32.mrf.mxu0
      %v2059 = vadd.f32 %v1929, %v2058
      %2060 = vmatmul.f32.gmra.mxu0 %v1945
      %v2061 = vpop.f32.mrf.mxu0
      %v2062 = vadd.f32 %v1929, %v2061
      %2063 = vmatmul.f32.gmra.mxu0 %v1948
      %v2064 = vpop.f32.mrf.mxu0
      %v2065 = vadd.f32 %v1929, %v2064
      %2066 = vmatmul.f32.gmra.mxu0 %v1951
      %v2067 = vpop.f32.mrf.mxu0
      %v2068 = vadd.f32 %v1929, %v2067
      %2069 = vmatmul.f32.gmra.mxu0 %v1954
      %v2070 = vpop.f32.mrf.mxu0
      %v2071 = vadd.f32 %v1929, %v2070
      %2072 = vmatmul.f32.gmra.mxu0 %v1957
      %v2073 = vpop.f32.mrf.mxu0
      %v2074 = vadd.f32 %v1929, %v2073
      %2075 = vmatmul.f32.gmra.mxu0 %v1960
      %v2076 = vpop.f32.mrf.mxu0
      %v2077 = vadd.f32 %v1929, %v2076
      %2078 = vmatmul.f32.gmra.mxu0 %v1963
      %v2079 = vpop.f32.mrf.mxu0
      %v2080 = vadd.f32 %v1929, %v2079
      %2081 = vmatmul.f32.gmra.mxu0 %v1966
      %v2082 = vpop.f32.mrf.mxu0
      %v2083 = vadd.f32 %v1929, %v2082
      %2084 = vmatmul.f32.gmra.mxu0 %v1969
      %v2085 = vpop.f32.mrf.mxu0
      %v2086 = vadd.f32 %v1929, %v2085
      %2087 = vmatmul.f32.gmra.mxu0 %v1972
      %v2088 = vpop.f32.mrf.mxu0
      %v2089 = vadd.f32 %v1929, %v2088
      %2090 = vmatmul.f32.gmra.mxu0 %v1975
      %v2091 = vpop.f32.mrf.mxu0
      %v2092 = vadd.f32 %v1929, %v2091
      %2093 = vmatmul.f32.gmra.mxu0 %v1978
      %v2094 = vpop.f32.mrf.mxu0
      %v2095 = vadd.f32 %v1929, %v2094
      %2096 = vmatmul.f32.gmra.mxu0 %v1981
      %v2097 = vpop.f32.mrf.mxu0
      %v2098 = vadd.f32 %v1929, %v2097
      %2099 = vmatmul.f32.gmra.mxu0 %v1984
      %v2100 = vpop.f32.mrf.mxu0
      %v2101 = vadd.f32 %v1929, %v2100
      %2102 = vmatmul.f32.gmra.mxu0 %v1987
      %v2103 = vpop.f32.mrf.mxu0
      %v2104 = vadd.f32 %v1929, %v2103
      %2105 = vmatmul.f32.gmra.mxu0 %v1990
      %v2106 = vpop.f32.mrf.mxu0
      %v2107 = vadd.f32 %v1929, %v2106
      %2108 = vmatmul.f32.gmra.mxu0 %v1993
      %v2109 = vpop.f32.mrf.mxu0
      %v2110 = vadd.f32 %v1929, %v2109
      %2111 = vmatmul.f32.gmra.mxu0 %v1996
      %v2112 = vpop.f32.mrf.mxu0
      %v2113 = vadd.f32 %v1929, %v2112
      %2114 = vmatmul.f32.gmra.mxu0 %v1999
      %v2115 = vpop.f32.mrf.mxu0
      %v2116 = vadd.f32 %v1929, %v2115
      %2117 = vmatmul.f32.gmra.mxu0 %v2002
      %v2118 = vpop.f32.mrf.mxu0
      %v2119 = vadd.f32 %v1929, %v2118
      %2120 = vmatmul.f32.gmra.mxu0 %v2005
      %v2121 = vpop.f32.mrf.mxu0
      %v2122 = vadd.f32 %v1929, %v2121
      %2123 = vmatmul.f32.gmra.mxu0 %v2008
      %v2124 = vpop.f32.mrf.mxu0
      %v2125 = vadd.f32 %v1929, %v2124
      %2126 = vmatmul.f32.gmra.mxu0 %v2011
      %v2127 = vpop.f32.mrf.mxu0
      %v2128 = vadd.f32 %v1929, %v2127
      %2129 = vmatmul.f32.gmra.mxu0 %v2014
      %v2130 = vpop.f32.mrf.mxu0
      %v2131 = vadd.f32 %v1929, %v2130
      %2132 = vmatmul.f32.gmra.mxu0 %v2017
      %v2133 = vpop.f32.mrf.mxu0
      %v2134 = vadd.f32 %v1929, %v2133
      %2135 = vmatmul.f32.gmra.mxu0 %v2020
      %v2136 = vpop.f32.mrf.mxu0
      %v2137 = vadd.f32 %v1929, %v2136
      %2138 = vmatmul.f32.gmra.mxu0 %v2023
      %v2139 = vpop.f32.mrf.mxu0
      %v2140 = vadd.f32 %v1929, %v2139
      %2141 = vmatmul.f32.gmra.mxu0 %v2026
      %v2142 = vpop.f32.mrf.mxu0
      %v2143 = vadd.f32 %v1929, %v2142
      %2144 = vdwg.mxu0
      %v2145 = vmax.f32 %v2050, 0.0
      %v2146 = vmax.f32 %v2053, 0.0
      %v2147 = vmax.f32 %v2056, 0.0
      %v2148 = vmax.f32 %v2059, 0.0
      %v2149 = vmax.f32 %v2062, 0.0
      %v2150 = vmax.f32 %v2065, 0.0
      %v2151 = vmax.f32 %v2068, 0.0
      %v2152 = vmax.f32 %v2071, 0.0
      %v2153 = vmax.f32 %v2074, 0.0
      %v2154 = vmax.f32 %v2077, 0.0
      %v2155 = vmax.f32 %v2080, 0.0
      %v2156 = vmax.f32 %v2083, 0.0
      %v2157 = vmax.f32 %v2086, 0.0
      %v2158 = vmax.f32 %v2089, 0.0
      %v2159 = vmax.f32 %v2092, 0.0
      %v2160 = vmax.f32 %v2095, 0.0
      %v2161 = vmax.f32 %v2098, 0.0
      %v2162 = vmax.f32 %v2101, 0.0
      %v2163 = vmax.f32 %v2104, 0.0
      %v2164 = vmax.f32 %v2107, 0.0
      %v2165 = vmax.f32 %v2110, 0.0
      %v2166 = vmax.f32 %v2113, 0.0
      %v2167 = vmax.f32 %v2116, 0.0
      %v2168 = vmax.f32 %v2119, 0.0
      %v2169 = vmax.f32 %v2122, 0.0
      %v2170 = vmax.f32 %v2125, 0.0
      %v2171 = vmax.f32 %v2128, 0.0
      %v2172 = vmax.f32 %v2131, 0.0
      %v2173 = vmax.f32 %v2134, 0.0
      %v2174 = vmax.f32 %v2137, 0.0
      %v2175 = vmax.f32 %v2140, 0.0
      %v2176 = vmax.f32 %v2143, 0.0
      %2177 = vst.msk [vmem:[#allocation3] sm:$0xff] %vm225, 0.0
      %2178 = vst.msk [vmem:[#allocation3 + $0x8] sm:$0xff] %vm225, 0.0
      %2179 = vst.msk [vmem:[#allocation3 + $0x10] sm:$0x3] %vm228, 0.0
      %2180 = vst.msk [vmem:[#allocation3 + $0x18] sm:$0xff] %vm225, 0.0
      %2181 = vst.msk [vmem:[#allocation3 + $0x20] sm:$0xff] %vm225, 0.0
      %2182 = vst.msk [vmem:[#allocation3 + $0x28] sm:$0x3] %vm228, 0.0
      %2183 = vst.msk [vmem:[#allocation3 + $0x30] sm:$0xff] %vm225, 0.0
      %2184 = vst.msk [vmem:[#allocation3 + $0x38] sm:$0xff] %vm225, 0.0
      %2185 = vst.msk [vmem:[#allocation3 + $0x40] sm:$0x3] %vm228, 0.0
      %2186 = vst.msk [vmem:[#allocation3 + $0x48] sm:$0xff] %vm225, 0.0
      %2187 = vst.msk [vmem:[#allocation3 + $0x50] sm:$0xff] %vm225, 0.0
      %2188 = vst.msk [vmem:[#allocation3 + $0x58] sm:$0x3] %vm228, 0.0
      %2189 = vst.msk [vmem:[#allocation3 + $0x60] sm:$0xff] %vm225, 0.0
      %2190 = vst.msk [vmem:[#allocation3 + $0x68] sm:$0xff] %vm225, 0.0
      %2191 = vst.msk [vmem:[#allocation3 + $0x70] sm:$0x3] %vm228, 0.0
      %2192 = vst.msk [vmem:[#allocation3 + $0x78] sm:$0xff] %vm225, 0.0
      %2193 = vst.msk [vmem:[#allocation3 + $0x80] sm:$0xff] %vm225, 0.0
      %2194 = vst.msk [vmem:[#allocation3 + $0x88] sm:$0x3] %vm228, 0.0
      %2195 = vst.msk [vmem:[#allocation3 + $0x90] sm:$0xff] %vm225, 0.0
      %2196 = vst.msk [vmem:[#allocation3 + $0x98] sm:$0xff] %vm225, 0.0
      %2197 = vst.msk [vmem:[#allocation3 + $0xa0] sm:$0x3] %vm228, 0.0
      %2198 = vst.msk [vmem:[#allocation3 + $0xa8] sm:$0xff] %vm225, 0.0
      %2199 = vst.msk [vmem:[#allocation3 + $0xb0] sm:$0xff] %vm225, 0.0
      %2200 = vst.msk [vmem:[#allocation3 + $0xb8] sm:$0x3] %vm228, 0.0
      %2201 = vst.msk [vmem:[#allocation3 + $0xc0] sm:$0xff] %vm225, 0.0
      %2202 = vst.msk [vmem:[#allocation3 + $0xc8] sm:$0xff] %vm225, 0.0
      %2203 = vst.msk [vmem:[#allocation3 + $0xd0] sm:$0x3] %vm228, 0.0
      %2204 = vst.msk [vmem:[#allocation3 + $0xd8] sm:$0xff] %vm225, 0.0
      %2205 = vst.msk [vmem:[#allocation3 + $0xe0] sm:$0xff] %vm225, 0.0
      %2206 = vst.msk [vmem:[#allocation3 + $0xe8] sm:$0x3] %vm228, 0.0
      %2207 = vst.msk [vmem:[#allocation3 + $0xf0] sm:$0xff] %vm225, 0.0
      %2208 = vst.msk [vmem:[#allocation3 + $0xf8] sm:$0xff] %vm225, 0.0
      %2209 = vst.msk [vmem:[#allocation3 + $0x100] sm:$0x3] %vm228, 0.0
      %2210 = vst.msk [vmem:[#allocation3 + $0x108] sm:$0xff] %vm225, 0.0
      %2211 = vst.msk [vmem:[#allocation3 + $0x110] sm:$0xff] %vm225, 0.0
      %2212 = vst.msk [vmem:[#allocation3 + $0x118] sm:$0x3] %vm228, 0.0
      %2213 = vst.msk [vmem:[#allocation3 + $0x120] sm:$0xff] %vm225, 0.0
      %2214 = vst.msk [vmem:[#allocation3 + $0x128] sm:$0xff] %vm225, 0.0
      %2215 = vst.msk [vmem:[#allocation3 + $0x130] sm:$0x3] %vm228, 0.0
      %2216 = vst.msk [vmem:[#allocation3 + $0x138] sm:$0xff] %vm225, 0.0
      %2217 = vst.msk [vmem:[#allocation3 + $0x140] sm:$0xff] %vm225, 0.0
      %2218 = vst.msk [vmem:[#allocation3 + $0x148] sm:$0x3] %vm228, 0.0
      %2219 = vst.msk [vmem:[#allocation3 + $0x150] sm:$0xff] %vm225, 0.0
      %2220 = vst.msk [vmem:[#allocation3 + $0x158] sm:$0xff] %vm225, 0.0
      %2221 = vst.msk [vmem:[#allocation3 + $0x160] sm:$0x3] %vm228, 0.0
      %2222 = vst.msk [vmem:[#allocation3 + $0x168] sm:$0xff] %vm225, 0.0
      %2223 = vst.msk [vmem:[#allocation3 + $0x170] sm:$0xff] %vm225, 0.0
      %2224 = vst.msk [vmem:[#allocation3 + $0x178] sm:$0x3] %vm228, 0.0
      %2225 = vst.msk [vmem:[#allocation3 + $0x180] sm:$0xff] %vm225, 0.0
      %2226 = vst.msk [vmem:[#allocation3 + $0x188] sm:$0xff] %vm225, 0.0
      %2227 = vst.msk [vmem:[#allocation3 + $0x190] sm:$0x3] %vm228, 0.0
      %2228 = vst.msk [vmem:[#allocation3 + $0x198] sm:$0xff] %vm225, 0.0
      %2229 = vst.msk [vmem:[#allocation3 + $0x1a0] sm:$0xff] %vm225, 0.0
      %2230 = vst.msk [vmem:[#allocation3 + $0x1a8] sm:$0x3] %vm228, 0.0
      %s2231 = scalar_lea.vmem [#allocation3], 24
      %2232 = vst.msk [vmem:[%s2231 + $0x1] sm:$0xff] %vm225, %v2145
      %2233 = vst.msk [vmem:[%s2231 + $0x9] sm:$0xff] %vm225, %v2146
      %2234 = vst.msk [vmem:[%s2231 + $0x19] sm:$0xff] %vm225, %v2147
      %2235 = vst.msk [vmem:[%s2231 + $0x21] sm:$0xff] %vm225, %v2148
      %2236 = vst.msk [vmem:[%s2231 + $0x31] sm:$0xff] %vm225, %v2149
      %2237 = vst.msk [vmem:[%s2231 + $0x39] sm:$0xff] %vm225, %v2150
      %2238 = vst.msk [vmem:[%s2231 + $0x49] sm:$0xff] %vm225, %v2151
      %2239 = vst.msk [vmem:[%s2231 + $0x51] sm:$0xff] %vm225, %v2152
      %2240 = vst.msk [vmem:[%s2231 + $0x61] sm:$0xff] %vm225, %v2153
      %2241 = vst.msk [vmem:[%s2231 + $0x69] sm:$0xff] %vm225, %v2154
      %2242 = vst.msk [vmem:[%s2231 + $0x79] sm:$0xff] %vm225, %v2155
      %2243 = vst.msk [vmem:[%s2231 + $0x81] sm:$0xff] %vm225, %v2156
      %2244 = vst.msk [vmem:[%s2231 + $0x91] sm:$0xff] %vm225, %v2157
      %2245 = vst.msk [vmem:[%s2231 + $0x99] sm:$0xff] %vm225, %v2158
      %2246 = vst.msk [vmem:[%s2231 + $0xa9] sm:$0xff] %vm225, %v2159
      %2247 = vst.msk [vmem:[%s2231 + $0xb1] sm:$0xff] %vm225, %v2160
      %2248 = vst.msk [vmem:[%s2231 + $0xc1] sm:$0xff] %vm225, %v2161
      %2249 = vst.msk [vmem:[%s2231 + $0xc9] sm:$0xff] %vm225, %v2162
      %2250 = vst.msk [vmem:[%s2231 + $0xd9] sm:$0xff] %vm225, %v2163
      %2251 = vst.msk [vmem:[%s2231 + $0xe1] sm:$0xff] %vm225, %v2164
      %2252 = vst.msk [vmem:[%s2231 + $0xf1] sm:$0xff] %vm225, %v2165
      %2253 = vst.msk [vmem:[%s2231 + $0xf9] sm:$0xff] %vm225, %v2166
      %2254 = vst.msk [vmem:[%s2231 + $0x109] sm:$0xff] %vm225, %v2167
      %2255 = vst.msk [vmem:[%s2231 + $0x111] sm:$0xff] %vm225, %v2168
      %2256 = vst.msk [vmem:[%s2231 + $0x121] sm:$0xff] %vm225, %v2169
      %2257 = vst.msk [vmem:[%s2231 + $0x129] sm:$0xff] %vm225, %v2170
      %2258 = vst.msk [vmem:[%s2231 + $0x139] sm:$0xff] %vm225, %v2171
      %2259 = vst.msk [vmem:[%s2231 + $0x141] sm:$0xff] %vm225, %v2172
      %2260 = vst.msk [vmem:[%s2231 + $0x151] sm:$0xff] %vm225, %v2173
      %2261 = vst.msk [vmem:[%s2231 + $0x159] sm:$0xff] %vm225, %v2174
      %2262 = vst.msk [vmem:[%s2231 + $0x169] sm:$0xff] %vm225, %v2175
      %2263 = vst.msk [vmem:[%s2231 + $0x171] sm:$0xff] %vm225, %v2176
      %v2264 = vld [vmem:[#allocation3] sm:$0xff]
      %v2265 = vld [vmem:[#allocation3 + $0x8] sm:$0xff]
      %v2266 = vld [vmem:[#allocation3 + $0x18] sm:$0xff]
      %v2267 = vld [vmem:[#allocation3 + $0x20] sm:$0xff]
      %v2268 = vld [vmem:[#allocation3 + $0x30] sm:$0xff]
      %v2269 = vld [vmem:[#allocation3 + $0x38] sm:$0xff]
      %v2270 = vld [vmem:[#allocation3 + $0x48] sm:$0xff]
      %v2271 = vld [vmem:[#allocation3 + $0x50] sm:$0xff]
      %v2272 = vld [vmem:[#allocation3 + $0x60] sm:$0xff]
      %v2273 = vld [vmem:[#allocation3 + $0x68] sm:$0xff]
      %v2274 = vld [vmem:[#allocation3 + $0x78] sm:$0xff]
      %v2275 = vld [vmem:[#allocation3 + $0x80] sm:$0xff]
      %v2276 = vld [vmem:[#allocation3 + $0x90] sm:$0xff]
      %v2277 = vld [vmem:[#allocation3 + $0x98] sm:$0xff]
      %v2278 = vld [vmem:[#allocation3 + $0xa8] sm:$0xff]
      %v2279 = vld [vmem:[#allocation3 + $0xb0] sm:$0xff]
      %v2280 = vld [vmem:[#allocation3 + $0xc0] sm:$0xff]
      %v2281 = vld [vmem:[#allocation3 + $0xc8] sm:$0xff]
      %v2282 = vld [vmem:[#allocation3 + $0xd8] sm:$0xff]
      %v2283 = vld [vmem:[#allocation3 + $0xe0] sm:$0xff]
      %v2284 = vld [vmem:[#allocation3 + $0xf0] sm:$0xff]
      %v2285 = vld [vmem:[#allocation3 + $0xf8] sm:$0xff]
      %v2286 = vld [vmem:[#allocation3 + $0x108] sm:$0xff]
      %v2287 = vld [vmem:[#allocation3 + $0x110] sm:$0xff]
      %v2288 = vld [vmem:[#allocation3 + $0x120] sm:$0xff]
      %v2289 = vld [vmem:[#allocation3 + $0x128] sm:$0xff]
      %v2290 = vld [vmem:[#allocation3 + $0x138] sm:$0xff]
      %v2291 = vld [vmem:[#allocation3 + $0x140] sm:$0xff]
      %v2292 = vld [vmem:[#allocation3 + $0x150] sm:$0xff]
      %v2293 = vld [vmem:[#allocation3 + $0x158] sm:$0xff]
      %v2294 = vld [vmem:[#allocation3 + $0x168] sm:$0xff]
      %v2295 = vld [vmem:[#allocation3 + $0x170] sm:$0xff]
      %v2296 = vld [vmem:[#allocation3 + $0x1] sm:$0xff]
      %v2297 = vld [vmem:[#allocation3 + $0x9] sm:$0xff]
      %v2298 = vld [vmem:[#allocation3 + $0x19] sm:$0xff]
      %v2299 = vld [vmem:[#allocation3 + $0x21] sm:$0xff]
      %v2300 = vld [vmem:[#allocation3 + $0x31] sm:$0xff]
      %v2301 = vld [vmem:[#allocation3 + $0x39] sm:$0xff]
      %v2302 = vld [vmem:[#allocation3 + $0x49] sm:$0xff]
      %v2303 = vld [vmem:[#allocation3 + $0x51] sm:$0xff]
      %v2304 = vld [vmem:[#allocation3 + $0x61] sm:$0xff]
      %v2305 = vld [vmem:[#allocation3 + $0x69] sm:$0xff]
      %v2306 = vld [vmem:[#allocation3 + $0x79] sm:$0xff]
      %v2307 = vld [vmem:[#allocation3 + $0x81] sm:$0xff]
      %v2308 = vld [vmem:[#allocation3 + $0x91] sm:$0xff]
      %v2309 = vld [vmem:[#allocation3 + $0x99] sm:$0xff]
      %v2310 = vld [vmem:[#allocation3 + $0xa9] sm:$0xff]
      %v2311 = vld [vmem:[#allocation3 + $0xb1] sm:$0xff]
      %v2312 = vld [vmem:[#allocation3 + $0xc1] sm:$0xff]
      %v2313 = vld [vmem:[#allocation3 + $0xc9] sm:$0xff]
      %v2314 = vld [vmem:[#allocation3 + $0xd9] sm:$0xff]
      %v2315 = vld [vmem:[#allocation3 + $0xe1] sm:$0xff]
      %v2316 = vld [vmem:[#allocation3 + $0xf1] sm:$0xff]
      %v2317 = vld [vmem:[#allocation3 + $0xf9] sm:$0xff]
      %v2318 = vld [vmem:[#allocation3 + $0x109] sm:$0xff]
      %v2319 = vld [vmem:[#allocation3 + $0x111] sm:$0xff]
      %v2320 = vld [vmem:[#allocation3 + $0x121] sm:$0xff]
      %v2321 = vld [vmem:[#allocation3 + $0x129] sm:$0xff]
      %v2322 = vld [vmem:[#allocation3 + $0x139] sm:$0xff]
      %v2323 = vld [vmem:[#allocation3 + $0x141] sm:$0xff]
      %v2324 = vld [vmem:[#allocation3 + $0x151] sm:$0xff]
      %v2325 = vld [vmem:[#allocation3 + $0x159] sm:$0xff]
      %v2326 = vld [vmem:[#allocation3 + $0x169] sm:$0xff]
      %v2327 = vld [vmem:[#allocation3 + $0x171] sm:$0xff]
      %v2328 = vld [vmem:[#allocation3 + $0x2] sm:$0xff]
      %v2329 = vld [vmem:[#allocation3 + $0xa] sm:$0xff]
      %v2330 = vld [vmem:[#allocation3 + $0x1a] sm:$0xff]
      %v2331 = vld [vmem:[#allocation3 + $0x22] sm:$0xff]
      %v2332 = vld [vmem:[#allocation3 + $0x32] sm:$0xff]
      %v2333 = vld [vmem:[#allocation3 + $0x3a] sm:$0xff]
      %v2334 = vld [vmem:[#allocation3 + $0x4a] sm:$0xff]
      %v2335 = vld [vmem:[#allocation3 + $0x52] sm:$0xff]
      %v2336 = vld [vmem:[#allocation3 + $0x62] sm:$0xff]
      %v2337 = vld [vmem:[#allocation3 + $0x6a] sm:$0xff]
      %v2338 = vld [vmem:[#allocation3 + $0x7a] sm:$0xff]
      %v2339 = vld [vmem:[#allocation3 + $0x82] sm:$0xff]
      %v2340 = vld [vmem:[#allocation3 + $0x92] sm:$0xff]
      %v2341 = vld [vmem:[#allocation3 + $0x9a] sm:$0xff]
      %v2342 = vld [vmem:[#allocation3 + $0xaa] sm:$0xff]
      %v2343 = vld [vmem:[#allocation3 + $0xb2] sm:$0xff]
      %v2344 = vld [vmem:[#allocation3 + $0xc2] sm:$0xff]
      %v2345 = vld [vmem:[#allocation3 + $0xca] sm:$0xff]
      %v2346 = vld [vmem:[#allocation3 + $0xda] sm:$0xff]
      %v2347 = vld [vmem:[#allocation3 + $0xe2] sm:$0xff]
      %v2348 = vld [vmem:[#allocation3 + $0xf2] sm:$0xff]
      %v2349 = vld [vmem:[#allocation3 + $0xfa] sm:$0xff]
      %v2350 = vld [vmem:[#allocation3 + $0x10a] sm:$0xff]
      %v2351 = vld [vmem:[#allocation3 + $0x112] sm:$0xff]
      %v2352 = vld [vmem:[#allocation3 + $0x122] sm:$0xff]
      %v2353 = vld [vmem:[#allocation3 + $0x12a] sm:$0xff]
      %v2354 = vld [vmem:[#allocation3 + $0x13a] sm:$0xff]
      %v2355 = vld [vmem:[#allocation3 + $0x142] sm:$0xff]
      %v2356 = vld [vmem:[#allocation3 + $0x152] sm:$0xff]
      %v2357 = vld [vmem:[#allocation3 + $0x15a] sm:$0xff]
      %v2358 = vld [vmem:[#allocation3 + $0x16a] sm:$0xff]
      %v2359 = vld [vmem:[#allocation3 + $0x172] sm:$0xff]
      %v2360 = vld [vmem:[%s2231] sm:$0xff]
      %v2361 = vld [vmem:[%s2231 + $0x8] sm:$0xff]
      %v2362 = vld [vmem:[%s2231 + $0x18] sm:$0xff]
      %v2363 = vld [vmem:[%s2231 + $0x20] sm:$0xff]
      %v2364 = vld [vmem:[%s2231 + $0x30] sm:$0xff]
      %v2365 = vld [vmem:[%s2231 + $0x38] sm:$0xff]
      %v2366 = vld [vmem:[%s2231 + $0x48] sm:$0xff]
      %v2367 = vld [vmem:[%s2231 + $0x50] sm:$0xff]
      %v2368 = vld [vmem:[%s2231 + $0x60] sm:$0xff]
      %v2369 = vld [vmem:[%s2231 + $0x68] sm:$0xff]
      %v2370 = vld [vmem:[%s2231 + $0x78] sm:$0xff]
      %v2371 = vld [vmem:[%s2231 + $0x80] sm:$0xff]
      %v2372 = vld [vmem:[%s2231 + $0x90] sm:$0xff]
      %v2373 = vld [vmem:[%s2231 + $0x98] sm:$0xff]
      %v2374 = vld [vmem:[%s2231 + $0xa8] sm:$0xff]
      %v2375 = vld [vmem:[%s2231 + $0xb0] sm:$0xff]
      %v2376 = vld [vmem:[%s2231 + $0xc0] sm:$0xff]
      %v2377 = vld [vmem:[%s2231 + $0xc8] sm:$0xff]
      %v2378 = vld [vmem:[%s2231 + $0xd8] sm:$0xff]
      %v2379 = vld [vmem:[%s2231 + $0xe0] sm:$0xff]
      %v2380 = vld [vmem:[%s2231 + $0xf0] sm:$0xff]
      %v2381 = vld [vmem:[%s2231 + $0xf8] sm:$0xff]
      %v2382 = vld [vmem:[%s2231 + $0x108] sm:$0xff]
      %v2383 = vld [vmem:[%s2231 + $0x110] sm:$0xff]
      %v2384 = vld [vmem:[%s2231 + $0x120] sm:$0xff]
      %v2385 = vld [vmem:[%s2231 + $0x128] sm:$0xff]
      %v2386 = vld [vmem:[%s2231 + $0x138] sm:$0xff]
      %v2387 = vld [vmem:[%s2231 + $0x140] sm:$0xff]
      %v2388 = vld [vmem:[%s2231 + $0x150] sm:$0xff]
      %v2389 = vld [vmem:[%s2231 + $0x158] sm:$0xff]
      %v2390 = vld [vmem:[%s2231 + $0x168] sm:$0xff]
      %v2391 = vld [vmem:[%s2231 + $0x170] sm:$0xff]
      %v2392 = vld [vmem:[%s2231 + $0x1] sm:$0xff]
      %v2393 = vld [vmem:[%s2231 + $0x9] sm:$0xff]
      %v2394 = vld [vmem:[%s2231 + $0x19] sm:$0xff]
      %v2395 = vld [vmem:[%s2231 + $0x21] sm:$0xff]
      %v2396 = vld [vmem:[%s2231 + $0x31] sm:$0xff]
      %v2397 = vld [vmem:[%s2231 + $0x39] sm:$0xff]
      %v2398 = vld [vmem:[%s2231 + $0x49] sm:$0xff]
      %v2399 = vld [vmem:[%s2231 + $0x51] sm:$0xff]
      %v2400 = vld [vmem:[%s2231 + $0x61] sm:$0xff]
      %v2401 = vld [vmem:[%s2231 + $0x69] sm:$0xff]
      %v2402 = vld [vmem:[%s2231 + $0x79] sm:$0xff]
      %v2403 = vld [vmem:[%s2231 + $0x81] sm:$0xff]
      %v2404 = vld [vmem:[%s2231 + $0x91] sm:$0xff]
      %v2405 = vld [vmem:[%s2231 + $0x99] sm:$0xff]
      %v2406 = vld [vmem:[%s2231 + $0xa9] sm:$0xff]
      %v2407 = vld [vmem:[%s2231 + $0xb1] sm:$0xff]
      %v2408 = vld [vmem:[%s2231 + $0xc1] sm:$0xff]
      %v2409 = vld [vmem:[%s2231 + $0xc9] sm:$0xff]
      %v2410 = vld [vmem:[%s2231 + $0xd9] sm:$0xff]
      %v2411 = vld [vmem:[%s2231 + $0xe1] sm:$0xff]
      %v2412 = vld [vmem:[%s2231 + $0xf1] sm:$0xff]
      %v2413 = vld [vmem:[%s2231 + $0xf9] sm:$0xff]
      %v2414 = vld [vmem:[%s2231 + $0x109] sm:$0xff]
      %v2415 = vld [vmem:[%s2231 + $0x111] sm:$0xff]
      %v2416 = vld [vmem:[%s2231 + $0x121] sm:$0xff]
      %v2417 = vld [vmem:[%s2231 + $0x129] sm:$0xff]
      %v2418 = vld [vmem:[%s2231 + $0x139] sm:$0xff]
      %v2419 = vld [vmem:[%s2231 + $0x141] sm:$0xff]
      %v2420 = vld [vmem:[%s2231 + $0x151] sm:$0xff]
      %v2421 = vld [vmem:[%s2231 + $0x159] sm:$0xff]
      %v2422 = vld [vmem:[%s2231 + $0x169] sm:$0xff]
      %v2423 = vld [vmem:[%s2231 + $0x171] sm:$0xff]
      %v2424 = vld [vmem:[%s2231 + $0x2] sm:$0xff]
      %v2425 = vld [vmem:[%s2231 + $0xa] sm:$0xff]
      %v2426 = vld [vmem:[%s2231 + $0x1a] sm:$0xff]
      %v2427 = vld [vmem:[%s2231 + $0x22] sm:$0xff]
      %v2428 = vld [vmem:[%s2231 + $0x32] sm:$0xff]
      %v2429 = vld [vmem:[%s2231 + $0x3a] sm:$0xff]
      %v2430 = vld [vmem:[%s2231 + $0x4a] sm:$0xff]
      %v2431 = vld [vmem:[%s2231 + $0x52] sm:$0xff]
      %v2432 = vld [vmem:[%s2231 + $0x62] sm:$0xff]
      %v2433 = vld [vmem:[%s2231 + $0x6a] sm:$0xff]
      %v2434 = vld [vmem:[%s2231 + $0x7a] sm:$0xff]
      %v2435 = vld [vmem:[%s2231 + $0x82] sm:$0xff]
      %v2436 = vld [vmem:[%s2231 + $0x92] sm:$0xff]
      %v2437 = vld [vmem:[%s2231 + $0x9a] sm:$0xff]
      %v2438 = vld [vmem:[%s2231 + $0xaa] sm:$0xff]
      %v2439 = vld [vmem:[%s2231 + $0xb2] sm:$0xff]
      %v2440 = vld [vmem:[%s2231 + $0xc2] sm:$0xff]
      %v2441 = vld [vmem:[%s2231 + $0xca] sm:$0xff]
      %v2442 = vld [vmem:[%s2231 + $0xda] sm:$0xff]
      %v2443 = vld [vmem:[%s2231 + $0xe2] sm:$0xff]
      %v2444 = vld [vmem:[%s2231 + $0xf2] sm:$0xff]
      %v2445 = vld [vmem:[%s2231 + $0xfa] sm:$0xff]
      %v2446 = vld [vmem:[%s2231 + $0x10a] sm:$0xff]
      %v2447 = vld [vmem:[%s2231 + $0x112] sm:$0xff]
      %v2448 = vld [vmem:[%s2231 + $0x122] sm:$0xff]
      %v2449 = vld [vmem:[%s2231 + $0x12a] sm:$0xff]
      %v2450 = vld [vmem:[%s2231 + $0x13a] sm:$0xff]
      %v2451 = vld [vmem:[%s2231 + $0x142] sm:$0xff]
      %v2452 = vld [vmem:[%s2231 + $0x152] sm:$0xff]
      %v2453 = vld [vmem:[%s2231 + $0x15a] sm:$0xff]
      %v2454 = vld [vmem:[%s2231 + $0x16a] sm:$0xff]
      %v2455 = vld [vmem:[%s2231 + $0x172] sm:$0xff]
      %s2456 = scalar_lea.vmem [#allocation3], 48
      %v2457 = vld [vmem:[%s2456] sm:$0xff]
      %v2458 = vld [vmem:[%s2456 + $0x8] sm:$0xff]
      %v2459 = vld [vmem:[%s2456 + $0x18] sm:$0xff]
      %v2460 = vld [vmem:[%s2456 + $0x20] sm:$0xff]
      %v2461 = vld [vmem:[%s2456 + $0x30] sm:$0xff]
      %v2462 = vld [vmem:[%s2456 + $0x38] sm:$0xff]
      %v2463 = vld [vmem:[%s2456 + $0x48] sm:$0xff]
      %v2464 = vld [vmem:[%s2456 + $0x50] sm:$0xff]
      %v2465 = vld [vmem:[%s2456 + $0x60] sm:$0xff]
      %v2466 = vld [vmem:[%s2456 + $0x68] sm:$0xff]
      %v2467 = vld [vmem:[%s2456 + $0x78] sm:$0xff]
      %v2468 = vld [vmem:[%s2456 + $0x80] sm:$0xff]
      %v2469 = vld [vmem:[%s2456 + $0x90] sm:$0xff]
      %v2470 = vld [vmem:[%s2456 + $0x98] sm:$0xff]
      %v2471 = vld [vmem:[%s2456 + $0xa8] sm:$0xff]
      %v2472 = vld [vmem:[%s2456 + $0xb0] sm:$0xff]
      %v2473 = vld [vmem:[%s2456 + $0xc0] sm:$0xff]
      %v2474 = vld [vmem:[%s2456 + $0xc8] sm:$0xff]
      %v2475 = vld [vmem:[%s2456 + $0xd8] sm:$0xff]
      %v2476 = vld [vmem:[%s2456 + $0xe0] sm:$0xff]
      %v2477 = vld [vmem:[%s2456 + $0xf0] sm:$0xff]
      %v2478 = vld [vmem:[%s2456 + $0xf8] sm:$0xff]
      %v2479 = vld [vmem:[%s2456 + $0x108] sm:$0xff]
      %v2480 = vld [vmem:[%s2456 + $0x110] sm:$0xff]
      %v2481 = vld [vmem:[%s2456 + $0x120] sm:$0xff]
      %v2482 = vld [vmem:[%s2456 + $0x128] sm:$0xff]
      %v2483 = vld [vmem:[%s2456 + $0x138] sm:$0xff]
      %v2484 = vld [vmem:[%s2456 + $0x140] sm:$0xff]
      %v2485 = vld [vmem:[%s2456 + $0x150] sm:$0xff]
      %v2486 = vld [vmem:[%s2456 + $0x158] sm:$0xff]
      %v2487 = vld [vmem:[%s2456 + $0x168] sm:$0xff]
      %v2488 = vld [vmem:[%s2456 + $0x170] sm:$0xff]
      %v2489 = vld [vmem:[%s2456 + $0x1] sm:$0xff]
      %v2490 = vld [vmem:[%s2456 + $0x9] sm:$0xff]
      %v2491 = vld [vmem:[%s2456 + $0x19] sm:$0xff]
      %v2492 = vld [vmem:[%s2456 + $0x21] sm:$0xff]
      %v2493 = vld [vmem:[%s2456 + $0x31] sm:$0xff]
      %v2494 = vld [vmem:[%s2456 + $0x39] sm:$0xff]
      %v2495 = vld [vmem:[%s2456 + $0x49] sm:$0xff]
      %v2496 = vld [vmem:[%s2456 + $0x51] sm:$0xff]
      %v2497 = vld [vmem:[%s2456 + $0x61] sm:$0xff]
      %v2498 = vld [vmem:[%s2456 + $0x69] sm:$0xff]
      %v2499 = vld [vmem:[%s2456 + $0x79] sm:$0xff]
      %v2500 = vld [vmem:[%s2456 + $0x81] sm:$0xff]
      %v2501 = vld [vmem:[%s2456 + $0x91] sm:$0xff]
      %v2502 = vld [vmem:[%s2456 + $0x99] sm:$0xff]
      %v2503 = vld [vmem:[%s2456 + $0xa9] sm:$0xff]
      %v2504 = vld [vmem:[%s2456 + $0xb1] sm:$0xff]
      %v2505 = vld [vmem:[%s2456 + $0xc1] sm:$0xff]
      %v2506 = vld [vmem:[%s2456 + $0xc9] sm:$0xff]
      %v2507 = vld [vmem:[%s2456 + $0xd9] sm:$0xff]
      %v2508 = vld [vmem:[%s2456 + $0xe1] sm:$0xff]
      %v2509 = vld [vmem:[%s2456 + $0xf1] sm:$0xff]
      %v2510 = vld [vmem:[%s2456 + $0xf9] sm:$0xff]
      %v2511 = vld [vmem:[%s2456 + $0x109] sm:$0xff]
      %v2512 = vld [vmem:[%s2456 + $0x111] sm:$0xff]
      %v2513 = vld [vmem:[%s2456 + $0x121] sm:$0xff]
      %v2514 = vld [vmem:[%s2456 + $0x129] sm:$0xff]
      %v2515 = vld [vmem:[%s2456 + $0x139] sm:$0xff]
      %v2516 = vld [vmem:[%s2456 + $0x141] sm:$0xff]
      %v2517 = vld [vmem:[%s2456 + $0x151] sm:$0xff]
      %v2518 = vld [vmem:[%s2456 + $0x159] sm:$0xff]
      %v2519 = vld [vmem:[%s2456 + $0x169] sm:$0xff]
      %v2520 = vld [vmem:[%s2456 + $0x171] sm:$0xff]
      %v2521 = vld [vmem:[%s2456 + $0x2] sm:$0xff]
      %v2522 = vld [vmem:[%s2456 + $0xa] sm:$0xff]
      %v2523 = vld [vmem:[%s2456 + $0x1a] sm:$0xff]
      %v2524 = vld [vmem:[%s2456 + $0x22] sm:$0xff]
      %v2525 = vld [vmem:[%s2456 + $0x32] sm:$0xff]
      %v2526 = vld [vmem:[%s2456 + $0x3a] sm:$0xff]
      %v2527 = vld [vmem:[%s2456 + $0x4a] sm:$0xff]
      %v2528 = vld [vmem:[%s2456 + $0x52] sm:$0xff]
      %v2529 = vld [vmem:[%s2456 + $0x62] sm:$0xff]
      %v2530 = vld [vmem:[%s2456 + $0x6a] sm:$0xff]
      %v2531 = vld [vmem:[%s2456 + $0x7a] sm:$0xff]
      %v2532 = vld [vmem:[%s2456 + $0x82] sm:$0xff]
      %v2533 = vld [vmem:[%s2456 + $0x92] sm:$0xff]
      %v2534 = vld [vmem:[%s2456 + $0x9a] sm:$0xff]
      %v2535 = vld [vmem:[%s2456 + $0xaa] sm:$0xff]
      %v2536 = vld [vmem:[%s2456 + $0xb2] sm:$0xff]
      %v2537 = vld [vmem:[%s2456 + $0xc2] sm:$0xff]
      %v2538 = vld [vmem:[%s2456 + $0xca] sm:$0xff]
      %v2539 = vld [vmem:[%s2456 + $0xda] sm:$0xff]
      %v2540 = vld [vmem:[%s2456 + $0xe2] sm:$0xff]
      %v2541 = vld [vmem:[%s2456 + $0xf2] sm:$0xff]
      %v2542 = vld [vmem:[%s2456 + $0xfa] sm:$0xff]
      %v2543 = vld [vmem:[%s2456 + $0x10a] sm:$0xff]
      %v2544 = vld [vmem:[%s2456 + $0x112] sm:$0xff]
      %v2545 = vld [vmem:[%s2456 + $0x122] sm:$0xff]
      %v2546 = vld [vmem:[%s2456 + $0x12a] sm:$0xff]
      %v2547 = vld [vmem:[%s2456 + $0x13a] sm:$0xff]
      %v2548 = vld [vmem:[%s2456 + $0x142] sm:$0xff]
      %v2549 = vld [vmem:[%s2456 + $0x152] sm:$0xff]
      %v2550 = vld [vmem:[%s2456 + $0x15a] sm:$0xff]
      %v2551 = vld [vmem:[%s2456 + $0x16a] sm:$0xff]
      %v2552 = vld [vmem:[%s2456 + $0x172] sm:$0xff]
      %2585 = vrot.lane.b32.xlu0 %v2296, 4
      %v2586 = vpop.permute.xlu0 %2585
      %2587 = vrot.lane.b32.xlu0 %v2297, 4
      %v2588 = vpop.permute.xlu0 %2587
      %2589 = vrot.lane.b32.xlu0 %v2298, 4
      %v2590 = vpop.permute.xlu0 %2589
      %2591 = vrot.lane.b32.xlu0 %v2299, 4
      %v2592 = vpop.permute.xlu0 %2591
      %2593 = vrot.lane.b32.xlu0 %v2300, 4
      %v2594 = vpop.permute.xlu0 %2593
      %2595 = vrot.lane.b32.xlu0 %v2301, 4
      %v2596 = vpop.permute.xlu0 %2595
      %2597 = vrot.lane.b32.xlu0 %v2302, 4
      %v2598 = vpop.permute.xlu0 %2597
      %2599 = vrot.lane.b32.xlu0 %v2303, 4
      %v2600 = vpop.permute.xlu0 %2599
      %2601 = vrot.lane.b32.xlu0 %v2304, 4
      %v2602 = vpop.permute.xlu0 %2601
      %2603 = vrot.lane.b32.xlu0 %v2305, 4
      %v2604 = vpop.permute.xlu0 %2603
      %2605 = vrot.lane.b32.xlu0 %v2306, 4
      %v2606 = vpop.permute.xlu0 %2605
      %2607 = vrot.lane.b32.xlu0 %v2307, 4
      %v2608 = vpop.permute.xlu0 %2607
      %2609 = vrot.lane.b32.xlu0 %v2308, 4
      %v2610 = vpop.permute.xlu0 %2609
      %2611 = vrot.lane.b32.xlu0 %v2309, 4
      %v2612 = vpop.permute.xlu0 %2611
      %2613 = vrot.lane.b32.xlu0 %v2310, 4
      %v2614 = vpop.permute.xlu0 %2613
      %2615 = vrot.lane.b32.xlu0 %v2311, 4
      %v2616 = vpop.permute.xlu0 %2615
      %2617 = vrot.lane.b32.xlu0 %v2312, 4
      %v2618 = vpop.permute.xlu0 %2617
      %2619 = vrot.lane.b32.xlu0 %v2313, 4
      %v2620 = vpop.permute.xlu0 %2619
      %2621 = vrot.lane.b32.xlu0 %v2314, 4
      %v2622 = vpop.permute.xlu0 %2621
      %2623 = vrot.lane.b32.xlu0 %v2315, 4
      %v2624 = vpop.permute.xlu0 %2623
      %2625 = vrot.lane.b32.xlu0 %v2316, 4
      %v2626 = vpop.permute.xlu0 %2625
      %2627 = vrot.lane.b32.xlu0 %v2317, 4
      %v2628 = vpop.permute.xlu0 %2627
      %2629 = vrot.lane.b32.xlu0 %v2318, 4
      %v2630 = vpop.permute.xlu0 %2629
      %2631 = vrot.lane.b32.xlu0 %v2319, 4
      %v2632 = vpop.permute.xlu0 %2631
      %2633 = vrot.lane.b32.xlu0 %v2320, 4
      %v2634 = vpop.permute.xlu0 %2633
      %2635 = vrot.lane.b32.xlu0 %v2321, 4
      %v2636 = vpop.permute.xlu0 %2635
      %2637 = vrot.lane.b32.xlu0 %v2322, 4
      %v2638 = vpop.permute.xlu0 %2637
      %2639 = vrot.lane.b32.xlu0 %v2323, 4
      %v2640 = vpop.permute.xlu0 %2639
      %2641 = vrot.lane.b32.xlu0 %v2324, 4
      %v2642 = vpop.permute.xlu0 %2641
      %2643 = vrot.lane.b32.xlu0 %v2325, 4
      %v2644 = vpop.permute.xlu0 %2643
      %2645 = vrot.lane.b32.xlu0 %v2326, 4
      %v2646 = vpop.permute.xlu0 %2645
      %2647 = vrot.lane.b32.xlu0 %v2327, 4
      %v2648 = vpop.permute.xlu0 %2647
      %2713 = vrot.lane.b32.xlu0 %v2328, 8
      %v2714 = vpop.permute.xlu0 %2713
      %2715 = vrot.lane.b32.xlu0 %v2329, 8
      %v2716 = vpop.permute.xlu0 %2715
      %2717 = vrot.lane.b32.xlu0 %v2330, 8
      %v2718 = vpop.permute.xlu0 %2717
      %2719 = vrot.lane.b32.xlu0 %v2331, 8
      %v2720 = vpop.permute.xlu0 %2719
      %2721 = vrot.lane.b32.xlu0 %v2332, 8
      %v2722 = vpop.permute.xlu0 %2721
      %2723 = vrot.lane.b32.xlu0 %v2333, 8
      %v2724 = vpop.permute.xlu0 %2723
      %2725 = vrot.lane.b32.xlu0 %v2334, 8
      %v2726 = vpop.permute.xlu0 %2725
      %2727 = vrot.lane.b32.xlu0 %v2335, 8
      %v2728 = vpop.permute.xlu0 %2727
      %2729 = vrot.lane.b32.xlu0 %v2336, 8
      %v2730 = vpop.permute.xlu0 %2729
      %2731 = vrot.lane.b32.xlu0 %v2337, 8
      %v2732 = vpop.permute.xlu0 %2731
      %2733 = vrot.lane.b32.xlu0 %v2338, 8
      %v2734 = vpop.permute.xlu0 %2733
      %2735 = vrot.lane.b32.xlu0 %v2339, 8
      %v2736 = vpop.permute.xlu0 %2735
      %2737 = vrot.lane.b32.xlu0 %v2340, 8
      %v2738 = vpop.permute.xlu0 %2737
      %2739 = vrot.lane.b32.xlu0 %v2341, 8
      %v2740 = vpop.permute.xlu0 %2739
      %2741 = vrot.lane.b32.xlu0 %v2342, 8
      %v2742 = vpop.permute.xlu0 %2741
      %2743 = vrot.lane.b32.xlu0 %v2343, 8
      %v2744 = vpop.permute.xlu0 %2743
      %2745 = vrot.lane.b32.xlu0 %v2344, 8
      %v2746 = vpop.permute.xlu0 %2745
      %2747 = vrot.lane.b32.xlu0 %v2345, 8
      %v2748 = vpop.permute.xlu0 %2747
      %2749 = vrot.lane.b32.xlu0 %v2346, 8
      %v2750 = vpop.permute.xlu0 %2749
      %2751 = vrot.lane.b32.xlu0 %v2347, 8
      %v2752 = vpop.permute.xlu0 %2751
      %2753 = vrot.lane.b32.xlu0 %v2348, 8
      %v2754 = vpop.permute.xlu0 %2753
      %2755 = vrot.lane.b32.xlu0 %v2349, 8
      %v2756 = vpop.permute.xlu0 %2755
      %2757 = vrot.lane.b32.xlu0 %v2350, 8
      %v2758 = vpop.permute.xlu0 %2757
      %2759 = vrot.lane.b32.xlu0 %v2351, 8
      %v2760 = vpop.permute.xlu0 %2759
      %2761 = vrot.lane.b32.xlu0 %v2352, 8
      %v2762 = vpop.permute.xlu0 %2761
      %2763 = vrot.lane.b32.xlu0 %v2353, 8
      %v2764 = vpop.permute.xlu0 %2763
      %2765 = vrot.lane.b32.xlu0 %v2354, 8
      %v2766 = vpop.permute.xlu0 %2765
      %2767 = vrot.lane.b32.xlu0 %v2355, 8
      %v2768 = vpop.permute.xlu0 %2767
      %2769 = vrot.lane.b32.xlu0 %v2356, 8
      %v2770 = vpop.permute.xlu0 %2769
      %2771 = vrot.lane.b32.xlu0 %v2357, 8
      %v2772 = vpop.permute.xlu0 %2771
      %2773 = vrot.lane.b32.xlu0 %v2358, 8
      %v2774 = vpop.permute.xlu0 %2773
      %2775 = vrot.lane.b32.xlu0 %v2359, 8
      %v2776 = vpop.permute.xlu0 %2775
      %2841 = vrot.lane.b32.xlu0 %v2360, 12
      %v2842 = vpop.permute.xlu0 %2841
      %2843 = vrot.lane.b32.xlu0 %v2361, 12
      %v2844 = vpop.permute.xlu0 %2843
      %2845 = vrot.lane.b32.xlu0 %v2362, 12
      %v2846 = vpop.permute.xlu0 %2845
      %2847 = vrot.lane.b32.xlu0 %v2363, 12
      %v2848 = vpop.permute.xlu0 %2847
      %2849 = vrot.lane.b32.xlu0 %v2364, 12
      %v2850 = vpop.permute.xlu0 %2849
      %2851 = vrot.lane.b32.xlu0 %v2365, 12
      %v2852 = vpop.permute.xlu0 %2851
      %2853 = vrot.lane.b32.xlu0 %v2366, 12
      %v2854 = vpop.permute.xlu0 %2853
      %2855 = vrot.lane.b32.xlu0 %v2367, 12
      %v2856 = vpop.permute.xlu0 %2855
      %2857 = vrot.lane.b32.xlu0 %v2368, 12
      %v2858 = vpop.permute.xlu0 %2857
      %2859 = vrot.lane.b32.xlu0 %v2369, 12
      %v2860 = vpop.permute.xlu0 %2859
      %2861 = vrot.lane.b32.xlu0 %v2370, 12
      %v2862 = vpop.permute.xlu0 %2861
      %2863 = vrot.lane.b32.xlu0 %v2371, 12
      %v2864 = vpop.permute.xlu0 %2863
      %2865 = vrot.lane.b32.xlu0 %v2372, 12
      %v2866 = vpop.permute.xlu0 %2865
      %2867 = vrot.lane.b32.xlu0 %v2373, 12
      %v2868 = vpop.permute.xlu0 %2867
      %2869 = vrot.lane.b32.xlu0 %v2374, 12
      %v2870 = vpop.permute.xlu0 %2869
      %2871 = vrot.lane.b32.xlu0 %v2375, 12
      %v2872 = vpop.permute.xlu0 %2871
      %2873 = vrot.lane.b32.xlu0 %v2376, 12
      %v2874 = vpop.permute.xlu0 %2873
      %2875 = vrot.lane.b32.xlu0 %v2377, 12
      %v2876 = vpop.permute.xlu0 %2875
      %2877 = vrot.lane.b32.xlu0 %v2378, 12
      %v2878 = vpop.permute.xlu0 %2877
      %2879 = vrot.lane.b32.xlu0 %v2379, 12
      %v2880 = vpop.permute.xlu0 %2879
      %2881 = vrot.lane.b32.xlu0 %v2380, 12
      %v2882 = vpop.permute.xlu0 %2881
      %2883 = vrot.lane.b32.xlu0 %v2381, 12
      %v2884 = vpop.permute.xlu0 %2883
      %2885 = vrot.lane.b32.xlu0 %v2382, 12
      %v2886 = vpop.permute.xlu0 %2885
      %2887 = vrot.lane.b32.xlu0 %v2383, 12
      %v2888 = vpop.permute.xlu0 %2887
      %2889 = vrot.lane.b32.xlu0 %v2384, 12
      %v2890 = vpop.permute.xlu0 %2889
      %2891 = vrot.lane.b32.xlu0 %v2385, 12
      %v2892 = vpop.permute.xlu0 %2891
      %2893 = vrot.lane.b32.xlu0 %v2386, 12
      %v2894 = vpop.permute.xlu0 %2893
      %2895 = vrot.lane.b32.xlu0 %v2387, 12
      %v2896 = vpop.permute.xlu0 %2895
      %2897 = vrot.lane.b32.xlu0 %v2388, 12
      %v2898 = vpop.permute.xlu0 %2897
      %2899 = vrot.lane.b32.xlu0 %v2389, 12
      %v2900 = vpop.permute.xlu0 %2899
      %2901 = vrot.lane.b32.xlu0 %v2390, 12
      %v2902 = vpop.permute.xlu0 %2901
      %2903 = vrot.lane.b32.xlu0 %v2391, 12
      %v2904 = vpop.permute.xlu0 %2903
      %2969 = vrot.lane.b32.xlu0 %v2392, 16
      %v2970 = vpop.permute.xlu0 %2969
      %2971 = vrot.lane.b32.xlu0 %v2393, 16
      %v2972 = vpop.permute.xlu0 %2971
      %2973 = vrot.lane.b32.xlu0 %v2394, 16
      %v2974 = vpop.permute.xlu0 %2973
      %2975 = vrot.lane.b32.xlu0 %v2395, 16
      %v2976 = vpop.permute.xlu0 %2975
      %2977 = vrot.lane.b32.xlu0 %v2396, 16
      %v2978 = vpop.permute.xlu0 %2977
      %2979 = vrot.lane.b32.xlu0 %v2397, 16
      %v2980 = vpop.permute.xlu0 %2979
      %2981 = vrot.lane.b32.xlu0 %v2398, 16
      %v2982 = vpop.permute.xlu0 %2981
      %2983 = vrot.lane.b32.xlu0 %v2399, 16
      %v2984 = vpop.permute.xlu0 %2983
      %2985 = vrot.lane.b32.xlu0 %v2400, 16
      %v2986 = vpop.permute.xlu0 %2985
      %2987 = vrot.lane.b32.xlu0 %v2401, 16
      %v2988 = vpop.permute.xlu0 %2987
      %2989 = vrot.lane.b32.xlu0 %v2402, 16
      %v2990 = vpop.permute.xlu0 %2989
      %2991 = vrot.lane.b32.xlu0 %v2403, 16
      %v2992 = vpop.permute.xlu0 %2991
      %2993 = vrot.lane.b32.xlu0 %v2404, 16
      %v2994 = vpop.permute.xlu0 %2993
      %2995 = vrot.lane.b32.xlu0 %v2405, 16
      %v2996 = vpop.permute.xlu0 %2995
      %2997 = vrot.lane.b32.xlu0 %v2406, 16
      %v2998 = vpop.permute.xlu0 %2997
      %2999 = vrot.lane.b32.xlu0 %v2407, 16
      %v3000 = vpop.permute.xlu0 %2999
      %3001 = vrot.lane.b32.xlu0 %v2408, 16
      %v3002 = vpop.permute.xlu0 %3001
      %3003 = vrot.lane.b32.xlu0 %v2409, 16
      %v3004 = vpop.permute.xlu0 %3003
      %3005 = vrot.lane.b32.xlu0 %v2410, 16
      %v3006 = vpop.permute.xlu0 %3005
      %3007 = vrot.lane.b32.xlu0 %v2411, 16
      %v3008 = vpop.permute.xlu0 %3007
      %3009 = vrot.lane.b32.xlu0 %v2412, 16
      %v3010 = vpop.permute.xlu0 %3009
      %3011 = vrot.lane.b32.xlu0 %v2413, 16
      %v3012 = vpop.permute.xlu0 %3011
      %3013 = vrot.lane.b32.xlu0 %v2414, 16
      %v3014 = vpop.permute.xlu0 %3013
      %3015 = vrot.lane.b32.xlu0 %v2415, 16
      %v3016 = vpop.permute.xlu0 %3015
      %3017 = vrot.lane.b32.xlu0 %v2416, 16
      %v3018 = vpop.permute.xlu0 %3017
      %3019 = vrot.lane.b32.xlu0 %v2417, 16
      %v3020 = vpop.permute.xlu0 %3019
      %3021 = vrot.lane.b32.xlu0 %v2418, 16
      %v3022 = vpop.permute.xlu0 %3021
      %3023 = vrot.lane.b32.xlu0 %v2419, 16
      %v3024 = vpop.permute.xlu0 %3023
      %3025 = vrot.lane.b32.xlu0 %v2420, 16
      %v3026 = vpop.permute.xlu0 %3025
      %3027 = vrot.lane.b32.xlu0 %v2421, 16
      %v3028 = vpop.permute.xlu0 %3027
      %3029 = vrot.lane.b32.xlu0 %v2422, 16
      %v3030 = vpop.permute.xlu0 %3029
      %3031 = vrot.lane.b32.xlu0 %v2423, 16
      %v3032 = vpop.permute.xlu0 %3031
      %3097 = vrot.lane.b32.xlu0 %v2424, 20
      %v3098 = vpop.permute.xlu0 %3097
      %3099 = vrot.lane.b32.xlu0 %v2425, 20
      %v3100 = vpop.permute.xlu0 %3099
      %3101 = vrot.lane.b32.xlu0 %v2426, 20
      %v3102 = vpop.permute.xlu0 %3101
      %3103 = vrot.lane.b32.xlu0 %v2427, 20
      %v3104 = vpop.permute.xlu0 %3103
      %3105 = vrot.lane.b32.xlu0 %v2428, 20
      %v3106 = vpop.permute.xlu0 %3105
      %3107 = vrot.lane.b32.xlu0 %v2429, 20
      %v3108 = vpop.permute.xlu0 %3107
      %3109 = vrot.lane.b32.xlu0 %v2430, 20
      %v3110 = vpop.permute.xlu0 %3109
      %3111 = vrot.lane.b32.xlu0 %v2431, 20
      %v3112 = vpop.permute.xlu0 %3111
      %3113 = vrot.lane.b32.xlu0 %v2432, 20
      %v3114 = vpop.permute.xlu0 %3113
      %3115 = vrot.lane.b32.xlu0 %v2433, 20
      %v3116 = vpop.permute.xlu0 %3115
      %3117 = vrot.lane.b32.xlu0 %v2434, 20
      %v3118 = vpop.permute.xlu0 %3117
      %3119 = vrot.lane.b32.xlu0 %v2435, 20
      %v3120 = vpop.permute.xlu0 %3119
      %3121 = vrot.lane.b32.xlu0 %v2436, 20
      %v3122 = vpop.permute.xlu0 %3121
      %3123 = vrot.lane.b32.xlu0 %v2437, 20
      %v3124 = vpop.permute.xlu0 %3123
      %3125 = vrot.lane.b32.xlu0 %v2438, 20
      %v3126 = vpop.permute.xlu0 %3125
      %3127 = vrot.lane.b32.xlu0 %v2439, 20
      %v3128 = vpop.permute.xlu0 %3127
      %3129 = vrot.lane.b32.xlu0 %v2440, 20
      %v3130 = vpop.permute.xlu0 %3129
      %3131 = vrot.lane.b32.xlu0 %v2441, 20
      %v3132 = vpop.permute.xlu0 %3131
      %3133 = vrot.lane.b32.xlu0 %v2442, 20
      %v3134 = vpop.permute.xlu0 %3133
      %3135 = vrot.lane.b32.xlu0 %v2443, 20
      %v3136 = vpop.permute.xlu0 %3135
      %3137 = vrot.lane.b32.xlu0 %v2444, 20
      %v3138 = vpop.permute.xlu0 %3137
      %3139 = vrot.lane.b32.xlu0 %v2445, 20
      %v3140 = vpop.permute.xlu0 %3139
      %3141 = vrot.lane.b32.xlu0 %v2446, 20
      %v3142 = vpop.permute.xlu0 %3141
      %3143 = vrot.lane.b32.xlu0 %v2447, 20
      %v3144 = vpop.permute.xlu0 %3143
      %3145 = vrot.lane.b32.xlu0 %v2448, 20
      %v3146 = vpop.permute.xlu0 %3145
      %3147 = vrot.lane.b32.xlu0 %v2449, 20
      %v3148 = vpop.permute.xlu0 %3147
      %3149 = vrot.lane.b32.xlu0 %v2450, 20
      %v3150 = vpop.permute.xlu0 %3149
      %3151 = vrot.lane.b32.xlu0 %v2451, 20
      %v3152 = vpop.permute.xlu0 %3151
      %3153 = vrot.lane.b32.xlu0 %v2452, 20
      %v3154 = vpop.permute.xlu0 %3153
      %3155 = vrot.lane.b32.xlu0 %v2453, 20
      %v3156 = vpop.permute.xlu0 %3155
      %3157 = vrot.lane.b32.xlu0 %v2454, 20
      %v3158 = vpop.permute.xlu0 %3157
      %3159 = vrot.lane.b32.xlu0 %v2455, 20
      %v3160 = vpop.permute.xlu0 %3159
      %3225 = vrot.lane.b32.xlu0 %v2457, 24
      %v3226 = vpop.permute.xlu0 %3225
      %3227 = vrot.lane.b32.xlu0 %v2458, 24
      %v3228 = vpop.permute.xlu0 %3227
      %3229 = vrot.lane.b32.xlu0 %v2459, 24
      %v3230 = vpop.permute.xlu0 %3229
      %3231 = vrot.lane.b32.xlu0 %v2460, 24
      %v3232 = vpop.permute.xlu0 %3231
      %3233 = vrot.lane.b32.xlu0 %v2461, 24
      %v3234 = vpop.permute.xlu0 %3233
      %3235 = vrot.lane.b32.xlu0 %v2462, 24
      %v3236 = vpop.permute.xlu0 %3235
      %3237 = vrot.lane.b32.xlu0 %v2463, 24
      %v3238 = vpop.permute.xlu0 %3237
      %3239 = vrot.lane.b32.xlu0 %v2464, 24
      %v3240 = vpop.permute.xlu0 %3239
      %3241 = vrot.lane.b32.xlu0 %v2465, 24
      %v3242 = vpop.permute.xlu0 %3241
      %3243 = vrot.lane.b32.xlu0 %v2466, 24
      %v3244 = vpop.permute.xlu0 %3243
      %3245 = vrot.lane.b32.xlu0 %v2467, 24
      %v3246 = vpop.permute.xlu0 %3245
      %3247 = vrot.lane.b32.xlu0 %v2468, 24
      %v3248 = vpop.permute.xlu0 %3247
      %3249 = vrot.lane.b32.xlu0 %v2469, 24
      %v3250 = vpop.permute.xlu0 %3249
      %3251 = vrot.lane.b32.xlu0 %v2470, 24
      %v3252 = vpop.permute.xlu0 %3251
      %3253 = vrot.lane.b32.xlu0 %v2471, 24
      %v3254 = vpop.permute.xlu0 %3253
      %3255 = vrot.lane.b32.xlu0 %v2472, 24
      %v3256 = vpop.permute.xlu0 %3255
      %3257 = vrot.lane.b32.xlu0 %v2473, 24
      %v3258 = vpop.permute.xlu0 %3257
      %3259 = vrot.lane.b32.xlu0 %v2474, 24
      %v3260 = vpop.permute.xlu0 %3259
      %3261 = vrot.lane.b32.xlu0 %v2475, 24
      %v3262 = vpop.permute.xlu0 %3261
      %3263 = vrot.lane.b32.xlu0 %v2476, 24
      %v3264 = vpop.permute.xlu0 %3263
      %3265 = vrot.lane.b32.xlu0 %v2477, 24
      %v3266 = vpop.permute.xlu0 %3265
      %3267 = vrot.lane.b32.xlu0 %v2478, 24
      %v3268 = vpop.permute.xlu0 %3267
      %3269 = vrot.lane.b32.xlu0 %v2479, 24
      %v3270 = vpop.permute.xlu0 %3269
      %3271 = vrot.lane.b32.xlu0 %v2480, 24
      %v3272 = vpop.permute.xlu0 %3271
      %3273 = vrot.lane.b32.xlu0 %v2481, 24
      %v3274 = vpop.permute.xlu0 %3273
      %3275 = vrot.lane.b32.xlu0 %v2482, 24
      %v3276 = vpop.permute.xlu0 %3275
      %3277 = vrot.lane.b32.xlu0 %v2483, 24
      %v3278 = vpop.permute.xlu0 %3277
      %3279 = vrot.lane.b32.xlu0 %v2484, 24
      %v3280 = vpop.permute.xlu0 %3279
      %3281 = vrot.lane.b32.xlu0 %v2485, 24
      %v3282 = vpop.permute.xlu0 %3281
      %3283 = vrot.lane.b32.xlu0 %v2486, 24
      %v3284 = vpop.permute.xlu0 %3283
      %3285 = vrot.lane.b32.xlu0 %v2487, 24
      %v3286 = vpop.permute.xlu0 %3285
      %3287 = vrot.lane.b32.xlu0 %v2488, 24
      %v3288 = vpop.permute.xlu0 %3287
      %3353 = vrot.lane.b32.xlu0 %v2489, 28
      %v3354 = vpop.permute.xlu0 %3353
      %3355 = vrot.lane.b32.xlu0 %v2490, 28
      %v3356 = vpop.permute.xlu0 %3355
      %3357 = vrot.lane.b32.xlu0 %v2491, 28
      %v3358 = vpop.permute.xlu0 %3357
      %3359 = vrot.lane.b32.xlu0 %v2492, 28
      %v3360 = vpop.permute.xlu0 %3359
      %3361 = vrot.lane.b32.xlu0 %v2493, 28
      %v3362 = vpop.permute.xlu0 %3361
      %3363 = vrot.lane.b32.xlu0 %v2494, 28
      %v3364 = vpop.permute.xlu0 %3363
      %3365 = vrot.lane.b32.xlu0 %v2495, 28
      %v3366 = vpop.permute.xlu0 %3365
      %3367 = vrot.lane.b32.xlu0 %v2496, 28
      %v3368 = vpop.permute.xlu0 %3367
      %3369 = vrot.lane.b32.xlu0 %v2497, 28
      %v3370 = vpop.permute.xlu0 %3369
      %3371 = vrot.lane.b32.xlu0 %v2498, 28
      %v3372 = vpop.permute.xlu0 %3371
      %3373 = vrot.lane.b32.xlu0 %v2499, 28
      %v3374 = vpop.permute.xlu0 %3373
      %3375 = vrot.lane.b32.xlu0 %v2500, 28
      %v3376 = vpop.permute.xlu0 %3375
      %3377 = vrot.lane.b32.xlu0 %v2501, 28
      %v3378 = vpop.permute.xlu0 %3377
      %3379 = vrot.lane.b32.xlu0 %v2502, 28
      %v3380 = vpop.permute.xlu0 %3379
      %3381 = vrot.lane.b32.xlu0 %v2503, 28
      %v3382 = vpop.permute.xlu0 %3381
      %3383 = vrot.lane.b32.xlu0 %v2504, 28
      %v3384 = vpop.permute.xlu0 %3383
      %3385 = vrot.lane.b32.xlu0 %v2505, 28
      %v3386 = vpop.permute.xlu0 %3385
      %3387 = vrot.lane.b32.xlu0 %v2506, 28
      %v3388 = vpop.permute.xlu0 %3387
      %3389 = vrot.lane.b32.xlu0 %v2507, 28
      %v3390 = vpop.permute.xlu0 %3389
      %3391 = vrot.lane.b32.xlu0 %v2508, 28
      %v3392 = vpop.permute.xlu0 %3391
      %3393 = vrot.lane.b32.xlu0 %v2509, 28
      %v3394 = vpop.permute.xlu0 %3393
      %3395 = vrot.lane.b32.xlu0 %v2510, 28
      %v3396 = vpop.permute.xlu0 %3395
      %3397 = vrot.lane.b32.xlu0 %v2511, 28
      %v3398 = vpop.permute.xlu0 %3397
      %3399 = vrot.lane.b32.xlu0 %v2512, 28
      %v3400 = vpop.permute.xlu0 %3399
      %3401 = vrot.lane.b32.xlu0 %v2513, 28
      %v3402 = vpop.permute.xlu0 %3401
      %3403 = vrot.lane.b32.xlu0 %v2514, 28
      %v3404 = vpop.permute.xlu0 %3403
      %3405 = vrot.lane.b32.xlu0 %v2515, 28
      %v3406 = vpop.permute.xlu0 %3405
      %3407 = vrot.lane.b32.xlu0 %v2516, 28
      %v3408 = vpop.permute.xlu0 %3407
      %3409 = vrot.lane.b32.xlu0 %v2517, 28
      %v3410 = vpop.permute.xlu0 %3409
      %3411 = vrot.lane.b32.xlu0 %v2518, 28
      %v3412 = vpop.permute.xlu0 %3411
      %3413 = vrot.lane.b32.xlu0 %v2519, 28
      %v3414 = vpop.permute.xlu0 %3413
      %3415 = vrot.lane.b32.xlu0 %v2520, 28
      %v3416 = vpop.permute.xlu0 %3415
      %3481 = vrot.lane.b32.xlu0 %v2521, 32
      %v3482 = vpop.permute.xlu0 %3481
      %3483 = vrot.lane.b32.xlu0 %v2522, 32
      %v3484 = vpop.permute.xlu0 %3483
      %3485 = vrot.lane.b32.xlu0 %v2523, 32
      %v3486 = vpop.permute.xlu0 %3485
      %3487 = vrot.lane.b32.xlu0 %v2524, 32
      %v3488 = vpop.permute.xlu0 %3487
      %3489 = vrot.lane.b32.xlu0 %v2525, 32
      %v3490 = vpop.permute.xlu0 %3489
      %3491 = vrot.lane.b32.xlu0 %v2526, 32
      %v3492 = vpop.permute.xlu0 %3491
      %3493 = vrot.lane.b32.xlu0 %v2527, 32
      %v3494 = vpop.permute.xlu0 %3493
      %3495 = vrot.lane.b32.xlu0 %v2528, 32
      %v3496 = vpop.permute.xlu0 %3495
      %3497 = vrot.lane.b32.xlu0 %v2529, 32
      %v3498 = vpop.permute.xlu0 %3497
      %3499 = vrot.lane.b32.xlu0 %v2530, 32
      %v3500 = vpop.permute.xlu0 %3499
      %3501 = vrot.lane.b32.xlu0 %v2531, 32
      %v3502 = vpop.permute.xlu0 %3501
      %3503 = vrot.lane.b32.xlu0 %v2532, 32
      %v3504 = vpop.permute.xlu0 %3503
      %3505 = vrot.lane.b32.xlu0 %v2533, 32
      %v3506 = vpop.permute.xlu0 %3505
      %3507 = vrot.lane.b32.xlu0 %v2534, 32
      %v3508 = vpop.permute.xlu0 %3507
      %3509 = vrot.lane.b32.xlu0 %v2535, 32
      %v3510 = vpop.permute.xlu0 %3509
      %3511 = vrot.lane.b32.xlu0 %v2536, 32
      %v3512 = vpop.permute.xlu0 %3511
      %3513 = vrot.lane.b32.xlu0 %v2537, 32
      %v3514 = vpop.permute.xlu0 %3513
      %3515 = vrot.lane.b32.xlu0 %v2538, 32
      %v3516 = vpop.permute.xlu0 %3515
      %3517 = vrot.lane.b32.xlu0 %v2539, 32
      %v3518 = vpop.permute.xlu0 %3517
      %3519 = vrot.lane.b32.xlu0 %v2540, 32
      %v3520 = vpop.permute.xlu0 %3519
      %3521 = vrot.lane.b32.xlu0 %v2541, 32
      %v3522 = vpop.permute.xlu0 %3521
      %3523 = vrot.lane.b32.xlu0 %v2542, 32
      %v3524 = vpop.permute.xlu0 %3523
      %3525 = vrot.lane.b32.xlu0 %v2543, 32
      %v3526 = vpop.permute.xlu0 %3525
      %3527 = vrot.lane.b32.xlu0 %v2544, 32
      %v3528 = vpop.permute.xlu0 %3527
      %3529 = vrot.lane.b32.xlu0 %v2545, 32
      %v3530 = vpop.permute.xlu0 %3529
      %3531 = vrot.lane.b32.xlu0 %v2546, 32
      %v3532 = vpop.permute.xlu0 %3531
      %3533 = vrot.lane.b32.xlu0 %v2547, 32
      %v3534 = vpop.permute.xlu0 %3533
      %3535 = vrot.lane.b32.xlu0 %v2548, 32
      %v3536 = vpop.permute.xlu0 %3535
      %3537 = vrot.lane.b32.xlu0 %v2549, 32
      %v3538 = vpop.permute.xlu0 %3537
      %3539 = vrot.lane.b32.xlu0 %v2550, 32
      %v3540 = vpop.permute.xlu0 %3539
      %3541 = vrot.lane.b32.xlu0 %v2551, 32
      %v3542 = vpop.permute.xlu0 %3541
      %3543 = vrot.lane.b32.xlu0 %v2552, 32
      %v3544 = vpop.permute.xlu0 %3543
      %v3577 = vsel %vm225, %v2264, %v2586
      %v3578 = vsel %vm225, %v2265, %v2588
      %v3579 = vsel %vm225, %v2266, %v2590
      %v3580 = vsel %vm225, %v2267, %v2592
      %v3581 = vsel %vm225, %v2268, %v2594
      %v3582 = vsel %vm225, %v2269, %v2596
      %v3583 = vsel %vm225, %v2270, %v2598
      %v3584 = vsel %vm225, %v2271, %v2600
      %v3585 = vsel %vm225, %v2272, %v2602
      %v3586 = vsel %vm225, %v2273, %v2604
      %v3587 = vsel %vm225, %v2274, %v2606
      %v3588 = vsel %vm225, %v2275, %v2608
      %v3589 = vsel %vm225, %v2276, %v2610
      %v3590 = vsel %vm225, %v2277, %v2612
      %v3591 = vsel %vm225, %v2278, %v2614
      %v3592 = vsel %vm225, %v2279, %v2616
      %v3593 = vsel %vm225, %v2280, %v2618
      %v3594 = vsel %vm225, %v2281, %v2620
      %v3595 = vsel %vm225, %v2282, %v2622
      %v3596 = vsel %vm225, %v2283, %v2624
      %v3597 = vsel %vm225, %v2284, %v2626
      %v3598 = vsel %vm225, %v2285, %v2628
      %v3599 = vsel %vm225, %v2286, %v2630
      %v3600 = vsel %vm225, %v2287, %v2632
      %v3601 = vsel %vm225, %v2288, %v2634
      %v3602 = vsel %vm225, %v2289, %v2636
      %v3603 = vsel %vm225, %v2290, %v2638
      %v3604 = vsel %vm225, %v2291, %v2640
      %v3605 = vsel %vm225, %v2292, %v2642
      %v3606 = vsel %vm225, %v2293, %v2644
      %v3607 = vsel %vm225, %v2294, %v2646
      %v3608 = vsel %vm225, %v2295, %v2648
      %v3609 = vsel %vm1691, %v3577, %v2714
      %v3610 = vsel %vm1691, %v3578, %v2716
      %v3611 = vsel %vm1691, %v3579, %v2718
      %v3612 = vsel %vm1691, %v3580, %v2720
      %v3613 = vsel %vm1691, %v3581, %v2722
      %v3614 = vsel %vm1691, %v3582, %v2724
      %v3615 = vsel %vm1691, %v3583, %v2726
      %v3616 = vsel %vm1691, %v3584, %v2728
      %v3617 = vsel %vm1691, %v3585, %v2730
      %v3618 = vsel %vm1691, %v3586, %v2732
      %v3619 = vsel %vm1691, %v3587, %v2734
      %v3620 = vsel %vm1691, %v3588, %v2736
      %v3621 = vsel %vm1691, %v3589, %v2738
      %v3622 = vsel %vm1691, %v3590, %v2740
      %v3623 = vsel %vm1691, %v3591, %v2742
      %v3624 = vsel %vm1691, %v3592, %v2744
      %v3625 = vsel %vm1691, %v3593, %v2746
      %v3626 = vsel %vm1691, %v3594, %v2748
      %v3627 = vsel %vm1691, %v3595, %v2750
      %v3628 = vsel %vm1691, %v3596, %v2752
      %v3629 = vsel %vm1691, %v3597, %v2754
      %v3630 = vsel %vm1691, %v3598, %v2756
      %v3631 = vsel %vm1691, %v3599, %v2758
      %v3632 = vsel %vm1691, %v3600, %v2760
      %v3633 = vsel %vm1691, %v3601, %v2762
      %v3634 = vsel %vm1691, %v3602, %v2764
      %v3635 = vsel %vm1691, %v3603, %v2766
      %v3636 = vsel %vm1691, %v3604, %v2768
      %v3637 = vsel %vm1691, %v3605, %v2770
      %v3638 = vsel %vm1691, %v3606, %v2772
      %v3639 = vsel %vm1691, %v3607, %v2774
      %v3640 = vsel %vm1691, %v3608, %v2776
      %v3641 = vsel %vm1724, %v3609, %v2842
      %v3642 = vsel %vm1724, %v3610, %v2844
      %v3643 = vsel %vm1724, %v3611, %v2846
      %v3644 = vsel %vm1724, %v3612, %v2848
      %v3645 = vsel %vm1724, %v3613, %v2850
      %v3646 = vsel %vm1724, %v3614, %v2852
      %v3647 = vsel %vm1724, %v3615, %v2854
      %v3648 = vsel %vm1724, %v3616, %v2856
      %v3649 = vsel %vm1724, %v3617, %v2858
      %v3650 = vsel %vm1724, %v3618, %v2860
      %v3651 = vsel %vm1724, %v3619, %v2862
      %v3652 = vsel %vm1724, %v3620, %v2864
      %v3653 = vsel %vm1724, %v3621, %v2866
      %v3654 = vsel %vm1724, %v3622, %v2868
      %v3655 = vsel %vm1724, %v3623, %v2870
      %v3656 = vsel %vm1724, %v3624, %v2872
      %v3657 = vsel %vm1724, %v3625, %v2874
      %v3658 = vsel %vm1724, %v3626, %v2876
      %v3659 = vsel %vm1724, %v3627, %v2878
      %v3660 = vsel %vm1724, %v3628, %v2880
      %v3661 = vsel %vm1724, %v3629, %v2882
      %v3662 = vsel %vm1724, %v3630, %v2884
      %v3663 = vsel %vm1724, %v3631, %v2886
      %v3664 = vsel %vm1724, %v3632, %v2888
      %v3665 = vsel %vm1724, %v3633, %v2890
      %v3666 = vsel %vm1724, %v3634, %v2892
      %v3667 = vsel %vm1724, %v3635, %v2894
      %v3668 = vsel %vm1724, %v3636, %v2896
      %v3669 = vsel %vm1724, %v3637, %v2898
      %v3670 = vsel %vm1724, %v3638, %v2900
      %v3671 = vsel %vm1724, %v3639, %v2902
      %v3672 = vsel %vm1724, %v3640, %v2904
      %v3673 = vsel %vm1757, %v3641, %v2970
      %v3674 = vsel %vm1757, %v3642, %v2972
      %v3675 = vsel %vm1757, %v3643, %v2974
      %v3676 = vsel %vm1757, %v3644, %v2976
      %v3677 = vsel %vm1757, %v3645, %v2978
      %v3678 = vsel %vm1757, %v3646, %v2980
      %v3679 = vsel %vm1757, %v3647, %v2982
      %v3680 = vsel %vm1757, %v3648, %v2984
      %v3681 = vsel %vm1757, %v3649, %v2986
      %v3682 = vsel %vm1757, %v3650, %v2988
      %v3683 = vsel %vm1757, %v3651, %v2990
      %v3684 = vsel %vm1757, %v3652, %v2992
      %v3685 = vsel %vm1757, %v3653, %v2994
      %v3686 = vsel %vm1757, %v3654, %v2996
      %v3687 = vsel %vm1757, %v3655, %v2998
      %v3688 = vsel %vm1757, %v3656, %v3000
      %v3689 = vsel %vm1757, %v3657, %v3002
      %v3690 = vsel %vm1757, %v3658, %v3004
      %v3691 = vsel %vm1757, %v3659, %v3006
      %v3692 = vsel %vm1757, %v3660, %v3008
      %v3693 = vsel %vm1757, %v3661, %v3010
      %v3694 = vsel %vm1757, %v3662, %v3012
      %v3695 = vsel %vm1757, %v3663, %v3014
      %v3696 = vsel %vm1757, %v3664, %v3016
      %v3697 = vsel %vm1757, %v3665, %v3018
      %v3698 = vsel %vm1757, %v3666, %v3020
      %v3699 = vsel %vm1757, %v3667, %v3022
      %v3700 = vsel %vm1757, %v3668, %v3024
      %v3701 = vsel %vm1757, %v3669, %v3026
      %v3702 = vsel %vm1757, %v3670, %v3028
      %v3703 = vsel %vm1757, %v3671, %v3030
      %v3704 = vsel %vm1757, %v3672, %v3032
      %v3705 = vsel %vm1790, %v3673, %v3098
      %v3706 = vsel %vm1790, %v3674, %v3100
      %v3707 = vsel %vm1790, %v3675, %v3102
      %v3708 = vsel %vm1790, %v3676, %v3104
      %v3709 = vsel %vm1790, %v3677, %v3106
      %v3710 = vsel %vm1790, %v3678, %v3108
      %v3711 = vsel %vm1790, %v3679, %v3110
      %v3712 = vsel %vm1790, %v3680, %v3112
      %v3713 = vsel %vm1790, %v3681, %v3114
      %v3714 = vsel %vm1790, %v3682, %v3116
      %v3715 = vsel %vm1790, %v3683, %v3118
      %v3716 = vsel %vm1790, %v3684, %v3120
      %v3717 = vsel %vm1790, %v3685, %v3122
      %v3718 = vsel %vm1790, %v3686, %v3124
      %v3719 = vsel %vm1790, %v3687, %v3126
      %v3720 = vsel %vm1790, %v3688, %v3128
      %v3721 = vsel %vm1790, %v3689, %v3130
      %v3722 = vsel %vm1790, %v3690, %v3132
      %v3723 = vsel %vm1790, %v3691, %v3134
      %v3724 = vsel %vm1790, %v3692, %v3136
      %v3725 = vsel %vm1790, %v3693, %v3138
      %v3726 = vsel %vm1790, %v3694, %v3140
      %v3727 = vsel %vm1790, %v3695, %v3142
      %v3728 = vsel %vm1790, %v3696, %v3144
      %v3729 = vsel %vm1790, %v3697, %v3146
      %v3730 = vsel %vm1790, %v3698, %v3148
      %v3731 = vsel %vm1790, %v3699, %v3150
      %v3732 = vsel %vm1790, %v3700, %v3152
      %v3733 = vsel %vm1790, %v3701, %v3154
      %v3734 = vsel %vm1790, %v3702, %v3156
      %v3735 = vsel %vm1790, %v3703, %v3158
      %v3736 = vsel %vm1790, %v3704, %v3160
      %v3737 = vsel %vm1823, %v3705, %v3226
      %v3738 = vsel %vm1823, %v3706, %v3228
      %v3739 = vsel %vm1823, %v3707, %v3230
      %v3740 = vsel %vm1823, %v3708, %v3232
      %v3741 = vsel %vm1823, %v3709, %v3234
      %v3742 = vsel %vm1823, %v3710, %v3236
      %v3743 = vsel %vm1823, %v3711, %v3238
      %v3744 = vsel %vm1823, %v3712, %v3240
      %v3745 = vsel %vm1823, %v3713, %v3242
      %v3746 = vsel %vm1823, %v3714, %v3244
      %v3747 = vsel %vm1823, %v3715, %v3246
      %v3748 = vsel %vm1823, %v3716, %v3248
      %v3749 = vsel %vm1823, %v3717, %v3250
      %v3750 = vsel %vm1823, %v3718, %v3252
      %v3751 = vsel %vm1823, %v3719, %v3254
      %v3752 = vsel %vm1823, %v3720, %v3256
      %v3753 = vsel %vm1823, %v3721, %v3258
      %v3754 = vsel %vm1823, %v3722, %v3260
      %v3755 = vsel %vm1823, %v3723, %v3262
      %v3756 = vsel %vm1823, %v3724, %v3264
      %v3757 = vsel %vm1823, %v3725, %v3266
      %v3758 = vsel %vm1823, %v3726, %v3268
      %v3759 = vsel %vm1823, %v3727, %v3270
      %v3760 = vsel %vm1823, %v3728, %v3272
      %v3761 = vsel %vm1823, %v3729, %v3274
      %v3762 = vsel %vm1823, %v3730, %v3276
      %v3763 = vsel %vm1823, %v3731, %v3278
      %v3764 = vsel %vm1823, %v3732, %v3280
      %v3765 = vsel %vm1823, %v3733, %v3282
      %v3766 = vsel %vm1823, %v3734, %v3284
      %v3767 = vsel %vm1823, %v3735, %v3286
      %v3768 = vsel %vm1823, %v3736, %v3288
      %v3769 = vsel %vm1856, %v3737, %v3354
      %v3770 = vsel %vm1856, %v3738, %v3356
      %v3771 = vsel %vm1856, %v3739, %v3358
      %v3772 = vsel %vm1856, %v3740, %v3360
      %v3773 = vsel %vm1856, %v3741, %v3362
      %v3774 = vsel %vm1856, %v3742, %v3364
      %v3775 = vsel %vm1856, %v3743, %v3366
      %v3776 = vsel %vm1856, %v3744, %v3368
      %v3777 = vsel %vm1856, %v3745, %v3370
      %v3778 = vsel %vm1856, %v3746, %v3372
      %v3779 = vsel %vm1856, %v3747, %v3374
      %v3780 = vsel %vm1856, %v3748, %v3376
      %v3781 = vsel %vm1856, %v3749, %v3378
      %v3782 = vsel %vm1856, %v3750, %v3380
      %v3783 = vsel %vm1856, %v3751, %v3382
      %v3784 = vsel %vm1856, %v3752, %v3384
      %v3785 = vsel %vm1856, %v3753, %v3386
      %v3786 = vsel %vm1856, %v3754, %v3388
      %v3787 = vsel %vm1856, %v3755, %v3390
      %v3788 = vsel %vm1856, %v3756, %v3392
      %v3789 = vsel %vm1856, %v3757, %v3394
      %v3790 = vsel %vm1856, %v3758, %v3396
      %v3791 = vsel %vm1856, %v3759, %v3398
      %v3792 = vsel %vm1856, %v3760, %v3400
      %v3793 = vsel %vm1856, %v3761, %v3402
      %v3794 = vsel %vm1856, %v3762, %v3404
      %v3795 = vsel %vm1856, %v3763, %v3406
      %v3796 = vsel %vm1856, %v3764, %v3408
      %v3797 = vsel %vm1856, %v3765, %v3410
      %v3798 = vsel %vm1856, %v3766, %v3412
      %v3799 = vsel %vm1856, %v3767, %v3414
      %v3800 = vsel %vm1856, %v3768, %v3416
      %v3801 = vsel %vm1889, %v3769, %v3482
      %v3802 = vsel %vm1889, %v3770, %v3484
      %v3803 = vsel %vm1889, %v3771, %v3486
      %v3804 = vsel %vm1889, %v3772, %v3488
      %v3805 = vsel %vm1889, %v3773, %v3490
      %v3806 = vsel %vm1889, %v3774, %v3492
      %v3807 = vsel %vm1889, %v3775, %v3494
      %v3808 = vsel %vm1889, %v3776, %v3496
      %v3809 = vsel %vm1889, %v3777, %v3498
      %v3810 = vsel %vm1889, %v3778, %v3500
      %v3811 = vsel %vm1889, %v3779, %v3502
      %v3812 = vsel %vm1889, %v3780, %v3504
      %v3813 = vsel %vm1889, %v3781, %v3506
      %v3814 = vsel %vm1889, %v3782, %v3508
      %v3815 = vsel %vm1889, %v3783, %v3510
      %v3816 = vsel %vm1889, %v3784, %v3512
      %v3817 = vsel %vm1889, %v3785, %v3514
      %v3818 = vsel %vm1889, %v3786, %v3516
      %v3819 = vsel %vm1889, %v3787, %v3518
      %v3820 = vsel %vm1889, %v3788, %v3520
      %v3821 = vsel %vm1889, %v3789, %v3522
      %v3822 = vsel %vm1889, %v3790, %v3524
      %v3823 = vsel %vm1889, %v3791, %v3526
      %v3824 = vsel %vm1889, %v3792, %v3528
      %v3825 = vsel %vm1889, %v3793, %v3530
      %v3826 = vsel %vm1889, %v3794, %v3532
      %v3827 = vsel %vm1889, %v3795, %v3534
      %v3828 = vsel %vm1889, %v3796, %v3536
      %v3829 = vsel %vm1889, %v3797, %v3538
      %v3830 = vsel %vm1889, %v3798, %v3540
      %v3831 = vsel %vm1889, %v3799, %v3542
      %v3832 = vsel %vm1889, %v3800, %v3544
      %v3833 = vld [vmem:[%s3] sm:$0xff]
      %v3834 = vld [vmem:[%s3 + $0x8] sm:$0xff]
      %v3835 = vld [vmem:[%s3 + $0x10] sm:$0xff]
      %v3836 = vld [vmem:[%s3 + $0x18] sm:$0xff]
      %v3837 = vld [vmem:[%s3 + $0x20] sm:$0xf]
      %v3838 = vld [vmem:[%s4] sm:$0x1]
      %v3840 = vperm.slane %v3838, 0
      %v3843 = vsel %vm1931, %v3801, 0
      %v3846 = vsel %vm1931, %v3802, 0
      %v3849 = vsel %vm1931, %v3803, 0
      %v3852 = vsel %vm1931, %v3804, 0
      %v3855 = vsel %vm1931, %v3805, 0
      %v3858 = vsel %vm1931, %v3806, 0
      %v3861 = vsel %vm1931, %v3807, 0
      %v3864 = vsel %vm1931, %v3808, 0
      %v3867 = vsel %vm1931, %v3809, 0
      %v3870 = vsel %vm1931, %v3810, 0
      %v3873 = vsel %vm1931, %v3811, 0
      %v3876 = vsel %vm1931, %v3812, 0
      %v3879 = vsel %vm1931, %v3813, 0
      %v3882 = vsel %vm1931, %v3814, 0
      %v3885 = vsel %vm1931, %v3815, 0
      %v3888 = vsel %vm1931, %v3816, 0
      %v3891 = vsel %vm1931, %v3817, 0
      %v3894 = vsel %vm1931, %v3818, 0
      %v3897 = vsel %vm1931, %v3819, 0
      %v3900 = vsel %vm1931, %v3820, 0
      %v3903 = vsel %vm1931, %v3821, 0
      %v3906 = vsel %vm1931, %v3822, 0
      %v3909 = vsel %vm1931, %v3823, 0
      %v3912 = vsel %vm1931, %v3824, 0
      %v3915 = vsel %vm1931, %v3825, 0
      %v3918 = vsel %vm1931, %v3826, 0
      %v3921 = vsel %vm1931, %v3827, 0
      %v3924 = vsel %vm1931, %v3828, 0
      %v3927 = vsel %vm1931, %v3829, 0
      %v3930 = vsel %vm1931, %v3830, 0
      %v3933 = vsel %vm1931, %v3831, 0
      %v3936 = vsel %vm1931, %v3832, 0
      %v3939 = vsel %vm2028, %v3837, 0
      %3941 = vmatpush.msra.mxu0 0.0
      %3942 = vmatpush.msra.mxu0 0.0
      %3943 = vmatpush.msra.mxu0 0.0
      %3944 = vmatpush.msra.mxu0 0.0
      %3945 = vmatpush.msra.mxu0 0.0
      %3946 = vmatpush.msra.mxu0 0.0
      %3947 = vmatpush.msra.mxu0 0.0
      %3948 = vmatpush.msra.mxu0 0.0
      %3949 = vmatpush.msra.mxu0 0.0
      %3950 = vmatpush.msra.mxu0 0.0
      %3951 = vmatpush.msra.mxu0 0.0
      %3952 = vmatpush.msra.mxu0 %v3939
      %3953 = vmatpush.msra.mxu0 %v3836
      %3954 = vmatpush.msra.mxu0 %v3835
      %3955 = vmatpush.msra.mxu0 %v3834
      %3956 = vmatpush.msra.mxu0 %v3833
      %3957 = vmatmul.f32.gmra.mxu0 %v3843
      %v3958 = vpop.f32.mrf.mxu0
      %v3959 = vadd.f32 %v3840, %v3958
      %3960 = vmatmul.f32.gmra.mxu0 %v3846
      %v3961 = vpop.f32.mrf.mxu0
      %v3962 = vadd.f32 %v3840, %v3961
      %3963 = vmatmul.f32.gmra.mxu0 %v3849
      %v3964 = vpop.f32.mrf.mxu0
      %v3965 = vadd.f32 %v3840, %v3964
      %3966 = vmatmul.f32.gmra.mxu0 %v3852
      %v3967 = vpop.f32.mrf.mxu0
      %v3968 = vadd.f32 %v3840, %v3967
      %3969 = vmatmul.f32.gmra.mxu0 %v3855
      %v3970 = vpop.f32.mrf.mxu0
      %v3971 = vadd.f32 %v3840, %v3970
      %3972 = vmatmul.f32.gmra.mxu0 %v3858
      %v3973 = vpop.f32.mrf.mxu0
      %v3974 = vadd.f32 %v3840, %v3973
      %3975 = vmatmul.f32.gmra.mxu0 %v3861
      %v3976 = vpop.f32.mrf.mxu0
      %v3977 = vadd.f32 %v3840, %v3976
      %3978 = vmatmul.f32.gmra.mxu0 %v3864
      %v3979 = vpop.f32.mrf.mxu0
      %v3980 = vadd.f32 %v3840, %v3979
      %3981 = vmatmul.f32.gmra.mxu0 %v3867
      %v3982 = vpop.f32.mrf.mxu0
      %v3983 = vadd.f32 %v3840, %v3982
      %3984 = vmatmul.f32.gmra.mxu0 %v3870
      %v3985 = vpop.f32.mrf.mxu0
      %v3986 = vadd.f32 %v3840, %v3985
      %3987 = vmatmul.f32.gmra.mxu0 %v3873
      %v3988 = vpop.f32.mrf.mxu0
      %v3989 = vadd.f32 %v3840, %v3988
      %3990 = vmatmul.f32.gmra.mxu0 %v3876
      %v3991 = vpop.f32.mrf.mxu0
      %v3992 = vadd.f32 %v3840, %v3991
      %3993 = vmatmul.f32.gmra.mxu0 %v3879
      %v3994 = vpop.f32.mrf.mxu0
      %v3995 = vadd.f32 %v3840, %v3994
      %3996 = vmatmul.f32.gmra.mxu0 %v3882
      %v3997 = vpop.f32.mrf.mxu0
      %v3998 = vadd.f32 %v3840, %v3997
      %3999 = vmatmul.f32.gmra.mxu0 %v3885
      %v4000 = vpop.f32.mrf.mxu0
      %v4001 = vadd.f32 %v3840, %v4000
      %4002 = vmatmul.f32.gmra.mxu0 %v3888
      %v4003 = vpop.f32.mrf.mxu0
      %v4004 = vadd.f32 %v3840, %v4003
      %4005 = vmatmul.f32.gmra.mxu0 %v3891
      %v4006 = vpop.f32.mrf.mxu0
      %v4007 = vadd.f32 %v3840, %v4006
      %4008 = vmatmul.f32.gmra.mxu0 %v3894
      %v4009 = vpop.f32.mrf.mxu0
      %v4010 = vadd.f32 %v3840, %v4009
      %4011 = vmatmul.f32.gmra.mxu0 %v3897
      %v4012 = vpop.f32.mrf.mxu0
      %v4013 = vadd.f32 %v3840, %v4012
      %4014 = vmatmul.f32.gmra.mxu0 %v3900
      %v4015 = vpop.f32.mrf.mxu0
      %v4016 = vadd.f32 %v3840, %v4015
      %4017 = vmatmul.f32.gmra.mxu0 %v3903
      %v4018 = vpop.f32.mrf.mxu0
      %v4019 = vadd.f32 %v3840, %v4018
      %4020 = vmatmul.f32.gmra.mxu0 %v3906
      %v4021 = vpop.f32.mrf.mxu0
      %v4022 = vadd.f32 %v3840, %v4021
      %4023 = vmatmul.f32.gmra.mxu0 %v3909
      %v4024 = vpop.f32.mrf.mxu0
      %v4025 = vadd.f32 %v3840, %v4024
      %4026 = vmatmul.f32.gmra.mxu0 %v3912
      %v4027 = vpop.f32.mrf.mxu0
      %v4028 = vadd.f32 %v3840, %v4027
      %4029 = vmatmul.f32.gmra.mxu0 %v3915
      %v4030 = vpop.f32.mrf.mxu0
      %v4031 = vadd.f32 %v3840, %v4030
      %4032 = vmatmul.f32.gmra.mxu0 %v3918
      %v4033 = vpop.f32.mrf.mxu0
      %v4034 = vadd.f32 %v3840, %v4033
      %4035 = vmatmul.f32.gmra.mxu0 %v3921
      %v4036 = vpop.f32.mrf.mxu0
      %v4037 = vadd.f32 %v3840, %v4036
      %4038 = vmatmul.f32.gmra.mxu0 %v3924
      %v4039 = vpop.f32.mrf.mxu0
      %v4040 = vadd.f32 %v3840, %v4039
      %4041 = vmatmul.f32.gmra.mxu0 %v3927
      %v4042 = vpop.f32.mrf.mxu0
      %v4043 = vadd.f32 %v3840, %v4042
      %4044 = vmatmul.f32.gmra.mxu0 %v3930
      %v4045 = vpop.f32.mrf.mxu0
      %v4046 = vadd.f32 %v3840, %v4045
      %4047 = vmatmul.f32.gmra.mxu0 %v3933
      %v4048 = vpop.f32.mrf.mxu0
      %v4049 = vadd.f32 %v3840, %v4048
      %4050 = vmatmul.f32.gmra.mxu0 %v3936
      %v4051 = vpop.f32.mrf.mxu0
      %v4052 = vadd.f32 %v3840, %v4051
      %4053 = vdwg.mxu0
      %v4054 = vld [vmem:[%s219] sm:$0xff]
      %v4055 = vld [vmem:[%s219 + $0x8] sm:$0xff]
      %v4056 = vld [vmem:[%s219 + $0x10] sm:$0xff]
      %v4057 = vld [vmem:[%s219 + $0x18] sm:$0xff]
      %v4058 = vld [vmem:[%s219 + $0x20] sm:$0xff]
      %v4059 = vld [vmem:[%s219 + $0x28] sm:$0xff]
      %v4060 = vld [vmem:[%s219 + $0x30] sm:$0xff]
      %v4061 = vld [vmem:[%s219 + $0x38] sm:$0xff]
      %v4062 = vld [vmem:[%s219 + $0x40] sm:$0xff]
      %v4063 = vld [vmem:[%s219 + $0x48] sm:$0xff]
      %v4064 = vld [vmem:[%s219 + $0x50] sm:$0xff]
      %v4065 = vld [vmem:[%s219 + $0x58] sm:$0xff]
      %v4066 = vld [vmem:[%s219 + $0x60] sm:$0xff]
      %v4067 = vld [vmem:[%s219 + $0x68] sm:$0xff]
      %v4068 = vld [vmem:[%s219 + $0x70] sm:$0xff]
      %v4069 = vld [vmem:[%s219 + $0x78] sm:$0xff]
      %v4070 = vld [vmem:[%s219 + $0x80] sm:$0xff]
      %v4071 = vld [vmem:[%s219 + $0x88] sm:$0xff]
      %v4072 = vld [vmem:[%s219 + $0x90] sm:$0xff]
      %v4073 = vld [vmem:[%s219 + $0x98] sm:$0xff]
      %v4074 = vld [vmem:[%s219 + $0xa0] sm:$0xff]
      %v4075 = vld [vmem:[%s219 + $0xa8] sm:$0xff]
      %v4076 = vld [vmem:[%s219 + $0xb0] sm:$0xff]
      %v4077 = vld [vmem:[%s219 + $0xb8] sm:$0xff]
      %v4078 = vld [vmem:[%s219 + $0xc0] sm:$0xff]
      %v4079 = vld [vmem:[%s219 + $0xc8] sm:$0xff]
      %v4080 = vld [vmem:[%s219 + $0xd0] sm:$0xff]
      %v4081 = vld [vmem:[%s219 + $0xd8] sm:$0xff]
      %v4082 = vld [vmem:[%s219 + $0xe0] sm:$0xff]
      %v4083 = vld [vmem:[%s219 + $0xe8] sm:$0xff]
      %v4084 = vld [vmem:[%s219 + $0xf0] sm:$0xff]
      %v4085 = vld [vmem:[%s219 + $0xf8] sm:$0xff]
      %v4086 = vadd.f32 %v3959, %v4054
      %v4087 = vadd.f32 %v3962, %v4055
      %v4088 = vadd.f32 %v3965, %v4056
      %v4089 = vadd.f32 %v3968, %v4057
      %v4090 = vadd.f32 %v3971, %v4058
      %v4091 = vadd.f32 %v3974, %v4059
      %v4092 = vadd.f32 %v3977, %v4060
      %v4093 = vadd.f32 %v3980, %v4061
      %v4094 = vadd.f32 %v3983, %v4062
      %v4095 = vadd.f32 %v3986, %v4063
      %v4096 = vadd.f32 %v3989, %v4064
      %v4097 = vadd.f32 %v3992, %v4065
      %v4098 = vadd.f32 %v3995, %v4066
      %v4099 = vadd.f32 %v3998, %v4067
      %v4100 = vadd.f32 %v4001, %v4068
      %v4101 = vadd.f32 %v4004, %v4069
      %v4102 = vadd.f32 %v4007, %v4070
      %v4103 = vadd.f32 %v4010, %v4071
      %v4104 = vadd.f32 %v4013, %v4072
      %v4105 = vadd.f32 %v4016, %v4073
      %v4106 = vadd.f32 %v4019, %v4074
      %v4107 = vadd.f32 %v4022, %v4075
      %v4108 = vadd.f32 %v4025, %v4076
      %v4109 = vadd.f32 %v4028, %v4077
      %v4110 = vadd.f32 %v4031, %v4078
      %v4111 = vadd.f32 %v4034, %v4079
      %v4112 = vadd.f32 %v4037, %v4080
      %v4113 = vadd.f32 %v4040, %v4081
      %v4114 = vadd.f32 %v4043, %v4082
      %v4115 = vadd.f32 %v4046, %v4083
      %v4116 = vadd.f32 %v4049, %v4084
      %v4117 = vadd.f32 %v4052, %v4085
      %v4118 = vmax.f32 %v4086, 0.0
      %v4119 = vmax.f32 %v4087, 0.0
      %v4120 = vmax.f32 %v4088, 0.0
      %v4121 = vmax.f32 %v4089, 0.0
      %v4122 = vmax.f32 %v4090, 0.0
      %v4123 = vmax.f32 %v4091, 0.0
      %v4124 = vmax.f32 %v4092, 0.0
      %v4125 = vmax.f32 %v4093, 0.0
      %v4126 = vmax.f32 %v4094, 0.0
      %v4127 = vmax.f32 %v4095, 0.0
      %v4128 = vmax.f32 %v4096, 0.0
      %v4129 = vmax.f32 %v4097, 0.0
      %v4130 = vmax.f32 %v4098, 0.0
      %v4131 = vmax.f32 %v4099, 0.0
      %v4132 = vmax.f32 %v4100, 0.0
      %v4133 = vmax.f32 %v4101, 0.0
      %v4134 = vmax.f32 %v4102, 0.0
      %v4135 = vmax.f32 %v4103, 0.0
      %v4136 = vmax.f32 %v4104, 0.0
      %v4137 = vmax.f32 %v4105, 0.0
      %v4138 = vmax.f32 %v4106, 0.0
      %v4139 = vmax.f32 %v4107, 0.0
      %v4140 = vmax.f32 %v4108, 0.0
      %v4141 = vmax.f32 %v4109, 0.0
      %v4142 = vmax.f32 %v4110, 0.0
      %v4143 = vmax.f32 %v4111, 0.0
      %v4144 = vmax.f32 %v4112, 0.0
      %v4145 = vmax.f32 %v4113, 0.0
      %v4146 = vmax.f32 %v4114, 0.0
      %v4147 = vmax.f32 %v4115, 0.0
      %v4148 = vmax.f32 %v4116, 0.0
      %v4149 = vmax.f32 %v4117, 0.0
      %4150 = vst.msk [vmem:[%s224] sm:$0xff] %vm225, %v4118
      %4151 = vst.msk [vmem:[%s224 + $0x8] sm:$0xff] %vm225, %v4119
      %4152 = vst.msk [vmem:[%s224 + $0x10] sm:$0xff] %vm225, %v4120
      %4153 = vst.msk [vmem:[%s224 + $0x18] sm:$0xff] %vm225, %v4121
      %4154 = vst.msk [vmem:[%s224 + $0x20] sm:$0xff] %vm225, %v4122
      %4155 = vst.msk [vmem:[%s224 + $0x28] sm:$0xff] %vm225, %v4123
      %4156 = vst.msk [vmem:[%s224 + $0x30] sm:$0xff] %vm225, %v4124
      %4157 = vst.msk [vmem:[%s224 + $0x38] sm:$0xff] %vm225, %v4125
      %4158 = vst.msk [vmem:[%s224 + $0x40] sm:$0xff] %vm225, %v4126
      %4159 = vst.msk [vmem:[%s224 + $0x48] sm:$0xff] %vm225, %v4127
      %4160 = vst.msk [vmem:[%s224 + $0x50] sm:$0xff] %vm225, %v4128
      %4161 = vst.msk [vmem:[%s224 + $0x58] sm:$0xff] %vm225, %v4129
      %4162 = vst.msk [vmem:[%s224 + $0x60] sm:$0xff] %vm225, %v4130
      %4163 = vst.msk [vmem:[%s224 + $0x68] sm:$0xff] %vm225, %v4131
      %4164 = vst.msk [vmem:[%s224 + $0x70] sm:$0xff] %vm225, %v4132
      %4165 = vst.msk [vmem:[%s224 + $0x78] sm:$0xff] %vm225, %v4133
      %4166 = vst.msk [vmem:[%s224 + $0x80] sm:$0xff] %vm225, %v4134
      %4167 = vst.msk [vmem:[%s224 + $0x88] sm:$0xff] %vm225, %v4135
      %4168 = vst.msk [vmem:[%s224 + $0x90] sm:$0xff] %vm225, %v4136
      %4169 = vst.msk [vmem:[%s224 + $0x98] sm:$0xff] %vm225, %v4137
      %4170 = vst.msk [vmem:[%s224 + $0xa0] sm:$0xff] %vm225, %v4138
      %4171 = vst.msk [vmem:[%s224 + $0xa8] sm:$0xff] %vm225, %v4139
      %4172 = vst.msk [vmem:[%s224 + $0xb0] sm:$0xff] %vm225, %v4140
      %4173 = vst.msk [vmem:[%s224 + $0xb8] sm:$0xff] %vm225, %v4141
      %4174 = vst.msk [vmem:[%s224 + $0xc0] sm:$0xff] %vm225, %v4142
      %4175 = vst.msk [vmem:[%s224 + $0xc8] sm:$0xff] %vm225, %v4143
      %4176 = vst.msk [vmem:[%s224 + $0xd0] sm:$0xff] %vm225, %v4144
      %4177 = vst.msk [vmem:[%s224 + $0xd8] sm:$0xff] %vm225, %v4145
      %4178 = vst.msk [vmem:[%s224 + $0xe0] sm:$0xff] %vm225, %v4146
      %4179 = vst.msk [vmem:[%s224 + $0xe8] sm:$0xff] %vm225, %v4147
      %4180 = vst.msk [vmem:[%s224 + $0xf0] sm:$0xff] %vm225, %v4148
      %4181 = vst.msk [vmem:[%s224 + $0xf8] sm:$0xff] %vm225, %v4149
      %p4182 = scmp.lt.s32.totalorder %s16, 1
      %s4183 = scalar_select %p4182, %s16, 1
      %s4184 = smul.addr %s4183, 32
      %s4185 = smul.addr %s4184, 8
      %s4186 = scalar_lea.vmem %s5, %s4185
      // Predicated region
      $region41: #{basic_block_forward.1} parent=39 // pred_check
        %p4187 = pneg %p144
      $region42: #{basic_block_forward.1} parent=39 // pred_check_branch
        %4189 = sbr.rel (%p4187) target = $region44
      $region43: #{basic_block_forward.1} parent=39 // pred_region
        _
      $region44: #{basic_block_forward.1} parent=39 // pred_fallthru
        _
    $region40: #{basic_block_forward.1} parent=5 // pred_fallthru
      _
    %p4190 = scmp.le.s32.totalorder 2, %s11
    // Predicated region
    $region45: #{basic_block_forward.1} parent=5 // pred_check
      %p4191 = pneg %p4190
    $region46: #{basic_block_forward.1} parent=5 // pred_check_branch
      %4193 = sbr.rel (%p4191) target = $region48
    $region47: #{basic_block_forward.1} parent=5 // pred_region
      %s4194 = ssub.s32 %s11, 2
      // Predicated region
      $region49: #{basic_block_forward.1} parent=47 // pred_check
        %p4195 = pneg %p150
      $region50: #{basic_block_forward.1} parent=47 // pred_check_branch
        %4197 = sbr.rel (%p4195) target = $region52
      $region51: #{basic_block_forward.1} parent=47 // pred_region
        %p4198 = scmp.lt.s32.totalorder %s17, 1
        %s4199 = scalar_select %p4198, %s17, 1
        %s4200 = smul.addr %s4199, 32
        %s4201 = smul.addr %s4200, 8
        %s4202 = scalar_lea.vmem %s5, %s4201
      $region52: #{basic_block_forward.1} parent=47 // pred_fallthru
        _
    $region48: #{basic_block_forward.1} parent=5 // pred_fallthru
      _
  $region6: #{basic_block_forward.1} parent=0 // loop_footer
    %s15 = sadd.s32 1, %s11
  $region7: #{basic_block_forward.1} parent=0 // loop_footer_branch
    %10 = sbr.rel target = $region3
  $region8: #{basic_block_forward.1} parent=0 // loop_exit
    _

</llo_original>
